<compile_context>
chip_gen: v7x
topology: tpu7x:2x2x1
jax: 0.10.0
libtpu: 0.0.40
codegen_flags: <defaults>
</compile_context>

<pallas_src>
import functools

import jax
import jax.numpy as jnp
from jax.experimental import pallas as pl
from jax.experimental.pallas import tpu as pltpu

BN_EPS = 1e-5


# ---------------------------------------------------------------------------
# Pallas kernels
# ---------------------------------------------------------------------------
def _head_kernel(z_ref, w1_ref, s1_ref, b1_ref, w2_ref, s2_ref, b2_ref, o_ref):
    """Fused conv1(1x1)+bn1+relu -> conv2(4x4 on a 1x1 input)+bn2+relu."""
    h = jnp.dot(z_ref[...], w1_ref[...], preferred_element_type=jnp.float32)
    h = jnp.maximum(h * s1_ref[...] + b1_ref[...], 0.0)
    y = jnp.dot(h.astype(jnp.bfloat16), w2_ref[...],
                preferred_element_type=jnp.float32)
    o_ref[...] = jnp.maximum(y * s2_ref[...] + b2_ref[...], 0.0)


def _gemm_colscale_kernel(x_ref, w_ref, s_ref, o_ref):
    """out = (X @ W) * col_scale  (bf16 MXU matmul, f32 accumulate/scale)."""
    acc = jnp.dot(x_ref[...], w_ref[...], preferred_element_type=jnp.float32)
    o_ref[...] = acc * s_ref[...]


# ---------------------------------------------------------------------------
# Pallas wrappers
# ---------------------------------------------------------------------------
def fused_head(z, l1, l2):
    B, K1 = z.shape
    N1 = l1["w"].shape[1]
    N2 = l2["w"].shape[1]
    return pl.pallas_call(
        _head_kernel,
        out_shape=jax.ShapeDtypeStruct((B, N2), jnp.float32),
        grid_spec=pltpu.PrefetchScalarGridSpec(
            num_scalar_prefetch=0,
            grid=(1,),
            in_specs=[
                pl.BlockSpec((B, K1), lambda i: (0, 0)),
                pl.BlockSpec((K1, N1), lambda i: (0, 0)),
                pl.BlockSpec((1, N1), lambda i: (0, 0)),
                pl.BlockSpec((1, N1), lambda i: (0, 0)),
                pl.BlockSpec((N1, N2), lambda i: (0, 0)),
                pl.BlockSpec((1, N2), lambda i: (0, 0)),
                pl.BlockSpec((1, N2), lambda i: (0, 0)),
            ],
            out_specs=pl.BlockSpec((B, N2), lambda i: (0, 0)),
        ),
        compiler_params=pltpu.CompilerParams(
            dimension_semantics=("arbitrary",)),
    )(z.astype(jnp.bfloat16), l1["w"], l1["scale"], l1["bias"],
      l2["w"], l2["scale"], l2["bias"])


def gemm_colscale(x, w, scale_col, *, tm_cap=1024):
    """x:(M,K) -> bf16, w:(K,N) bf16, per-column scale (1,N) f32, N%128==0."""
    M, K = x.shape
    Kw, N = w.shape
    assert K == Kw and N % 128 == 0
    tm = M if M <= tm_cap else tm_cap
    assert M % tm == 0 and (tm == M or tm % 8 == 0), (M, tm)
    return pl.pallas_call(
        _gemm_colscale_kernel,
        out_shape=jax.ShapeDtypeStruct((M, N), jnp.float32),
        grid_spec=pltpu.PrefetchScalarGridSpec(
            num_scalar_prefetch=0,
            grid=(M // tm,),
            in_specs=[
                pl.BlockSpec((tm, K), lambda i: (i, 0)),
                pl.BlockSpec((K, N), lambda i: (0, 0)),
                pl.BlockSpec((1, N), lambda i: (0, 0)),
            ],
            out_specs=pl.BlockSpec((tm, N), lambda i: (i, 0)),
        ),
        compiler_params=pltpu.CompilerParams(
            dimension_semantics=("parallel",)),
    )(x.astype(jnp.bfloat16), w, scale_col)


# ---------------------------------------------------------------------------
# Zero-free ConvTranspose2d(k=4, s=2, p=1): Pallas GEMM + overlap-add col2im
# ---------------------------------------------------------------------------
def _col2im_s2k4p1(y, B, Hin, Win, Cout):
    """y:(B*Hin*Win, 16*Cout) with columns ordered (ki, kj, co) -> NHWC."""
    y = y.reshape(B, Hin, Win, 4, 4, Cout)
    # Height: out row 2m   = Y[m, ki=1] + Y[m-1, ki=3]
    #         out row 2m+1 = Y[m+1, ki=0] + Y[m, ki=2]
    zr = jnp.zeros((B, 1, Win, 4, Cout), y.dtype)
    even_h = y[:, :, :, 1] + jnp.concatenate([zr, y[:, :-1, :, 3]], axis=1)
    odd_h = y[:, :, :, 2] + jnp.concatenate([y[:, 1:, :, 0], zr], axis=1)
    h = jnp.stack([even_h, odd_h], axis=2).reshape(B, 2 * Hin, Win, 4, Cout)
    # Width: same pattern on the remaining kernel-width axis.
    zc = jnp.zeros((B, 2 * Hin, 1, Cout), y.dtype)
    even_w = h[:, :, :, 1] + jnp.concatenate([zc, h[:, :, :-1, 3]], axis=2)
    odd_w = h[:, :, :, 2] + jnp.concatenate([h[:, :, 1:, 0], zc], axis=2)
    return jnp.stack([even_w, odd_w], axis=3).reshape(B, 2 * Hin, 2 * Win, Cout)


def conv_t_s2_layer(x_nhwc, layer):
    """ConvTranspose2d(Cin,Cout,4,2,1) [+ folded BN] [+ ReLU] on NHWC input."""
    B, H, W, Cin = x_nhwc.shape
    Cout = layer["cout"]
    y = gemm_colscale(x_nhwc.reshape(B * H * W, Cin), layer["w"],
                      layer["scale"])
    y = y[:, :16 * Cout]                 # drop lane padding (no-op if unpadded)
    out = _col2im_s2k4p1(y, B, H, W, Cout)
    out = out + layer["bias"].reshape(1, 1, 1, Cout)
    if layer["relu"]:
        out = jnp.maximum(out, 0.0)
    return out


# ---------------------------------------------------------------------------
# Parameter initialization (deterministic, PyTorch-like shapes) + folding
# ---------------------------------------------------------------------------
def init_conv_t(key, cin, cout, k):
    kw_, kb_ = jax.random.split(key)
    bound = 1.0 / float(cout * k * k) ** 0.5
    w = jax.random.uniform(kw_, (cin, cout, k, k), jnp.float32, -bound, bound)
    b = jax.random.uniform(kb_, (cout,), jnp.float32, -bound, bound)
    return w, b


def init_bn(key, c):
    k1, k2, k3, k4 = jax.random.split(key, 4)
    gamma = jax.random.uniform(k1, (c,), jnp.float32, 0.5, 1.5)
    beta = jax.random.uniform(k2, (c,), jnp.float32, -0.5, 0.5)
    mean = jax.random.uniform(k3, (c,), jnp.float32, -0.5, 0.5)
    var = jax.random.uniform(k4, (c,), jnp.float32, 0.5, 1.5)
    return gamma, beta, mean, var


def _fold_bn(conv_b, gamma, beta, mean, var):
    scale = gamma / jnp.sqrt(var + BN_EPS)
    return scale, scale * (conv_b - mean) + beta


def _wmat(w):
    """(Cin,Cout,kh,kw) -> (Cin, kh*kw*Cout), columns ordered (ki, kj, co)."""
    cin, cout, kh, kw = w.shape
    return jnp.transpose(w, (0, 2, 3, 1)).reshape(cin, kh * kw * cout)


def make_params(key, input_dim):
    params = {}

    # conv1 (1x1, s1, p0) + bn1 + relu  -> head kernel, stage 1
    key, kc, kb = jax.random.split(key, 3)
    w1, b1 = init_conv_t(kc, input_dim, 512, 1)
    s1, eb1 = _fold_bn(b1, *init_bn(kb, 512))
    params["l1"] = dict(w=_wmat(w1).astype(jnp.bfloat16),
                        scale=s1.reshape(1, 512), bias=eb1.reshape(1, 512))

    # conv2 (4x4, s1, p0 on a 1x1 input) + bn2 + relu -> head kernel, stage 2.
    # Each output pixel gets exactly one tap, so bias/shift folds per column.
    key, kc, kb = jax.random.split(key, 3)
    w2, b2 = init_conv_t(kc, 512, 64, 4)
    s2, eb2 = _fold_bn(b2, *init_bn(kb, 64))
    params["l2"] = dict(w=_wmat(w2).astype(jnp.bfloat16),
                        scale=jnp.tile(s2, 16).reshape(1, 1024),
                        bias=jnp.tile(eb2, 16).reshape(1, 1024))

    # Stride-2 layers: conv3..conv5 (+BN+ReLU) and conv_final (no BN, no ReLU).
    tail_cfg = [(64, 64, True), (64, 32, True), (32, 32, True), (32, 1, False)]
    tail = []
    for cin, cout, has_bn in tail_cfg:
        key, kc, kb = jax.random.split(key, 3)
        w, b = init_conv_t(kc, cin, cout, 4)
        if has_bn:
            scale, eff_bias = _fold_bn(b, *init_bn(kb, cout))
        else:
            scale, eff_bias = jnp.ones((cout,), jnp.float32), b
        wm = _wmat(w)                                # (cin, 16*cout)
        scol = jnp.tile(scale, 16)                   # per GEMM column
        n = wm.shape[1]
        n_pad = max(128, ((n + 127) // 128) * 128)   # lane-dense output N
        if n_pad != n:
            wm = jnp.pad(wm, ((0, 0), (0, n_pad - n)))
            scol = jnp.pad(scol, (0, n_pad - n))
        tail.append(dict(w=wm.astype(jnp.bfloat16),
                         scale=scol.reshape(1, n_pad),
                         bias=eff_bias, cout=cout, relu=has_bn))
    params["tail"] = tail
    return params


def conv_decoder_forward(z, params):
    B = z.shape[0]
    h = fused_head(z, params["l1"], params["l2"])   # (B, 16*64), (ki,kj,co)
    h = h.reshape(B, 4, 4, 64)                      # NHWC output of conv2
    for layer in params["tail"]:                    # conv3..conv5, conv_final
        h = conv_t_s2_layer(h, layer)
    return jnp.transpose(h, (0, 3, 1, 2))           # NCHW (B, 1, 64, 64)


if __name__ == "__main__":
    key = jax.random.PRNGKey(0)
    k_params, k_z = jax.random.split(key)

    batch, input_dim = 2, 16
    params = make_params(k_params, input_dim)
    z = jax.random.normal(k_z, (batch, input_dim), jnp.float32)

    fwd = jax.jit(functools.partial(conv_decoder_forward, params=params))
    mu_img = jax.block_until_ready(fwd(z))

    assert mu_img.shape == (batch, 1, 64, 64), mu_img.shape
    assert bool(jnp.all(jnp.isfinite(mu_img)))
    print("KERNEL_OK")
</pallas_src>

<mosaic_0001>
module attributes {stable_mosaic.version = 11 : i64} {
  func.func @_head_kernel(%arg0: i32, %arg1: memref<2x16xbf16, #tpu.memory_space<vmem>>, %arg2: memref<16x512xbf16, #tpu.memory_space<vmem>>, %arg3: memref<1x512xf32, #tpu.memory_space<vmem>>, %arg4: memref<1x512xf32, #tpu.memory_space<vmem>>, %arg5: memref<512x1024xbf16, #tpu.memory_space<vmem>>, %arg6: memref<1x1024xf32, #tpu.memory_space<vmem>>, %arg7: memref<1x1024xf32, #tpu.memory_space<vmem>>, %arg8: memref<2x1024xf32, #tpu.memory_space<vmem>>) attributes {dimension_semantics = [#tpu.dimension_semantics<arbitrary>], iteration_bounds = array<i64: 1>, scalar_prefetch = 0 : i64, scratch_operands = 0 : i64, tpu.core_type = #tpu.core_type<tc>, window_params = [{pipeline_mode = #tpu.pipeline_mode<synchronous>, transform_indices = @transform_0, window_bounds = array<i64: 2, 16>}, {pipeline_mode = #tpu.pipeline_mode<synchronous>, transform_indices = @transform_1, window_bounds = array<i64: 16, 512>}, {pipeline_mode = #tpu.pipeline_mode<synchronous>, transform_indices = @transform_2, window_bounds = array<i64: 1, 512>}, {pipeline_mode = #tpu.pipeline_mode<synchronous>, transform_indices = @transform_3, window_bounds = array<i64: 1, 512>}, {pipeline_mode = #tpu.pipeline_mode<synchronous>, transform_indices = @transform_4, window_bounds = array<i64: 512, 1024>}, {pipeline_mode = #tpu.pipeline_mode<synchronous>, transform_indices = @transform_5, window_bounds = array<i64: 1, 1024>}, {pipeline_mode = #tpu.pipeline_mode<synchronous>, transform_indices = @transform_6, window_bounds = array<i64: 1, 1024>}, {pipeline_mode = #tpu.pipeline_mode<synchronous>, transform_indices = @transform_7, window_bounds = array<i64: 2, 1024>}]} {
    %c0 = arith.constant 0 : index
    %c0_0 = arith.constant 0 : index
    %0 = vector.load %arg1[%c0, %c0_0] : memref<2x16xbf16, #tpu.memory_space<vmem>>, vector<2x16xbf16>
    %c0_1 = arith.constant 0 : index
    %c0_2 = arith.constant 0 : index
    %1 = vector.load %arg2[%c0_1, %c0_2] : memref<16x512xbf16, #tpu.memory_space<vmem>>, vector<16x512xbf16>
    %cst = arith.constant dense<0.000000e+00> : vector<2x512xf32>
    %2 = tpu.matmul %0, %1, %cst {dimension_numbers = #tpu.dot_dimension_numbers<[1], [0], [0], [1], [0, 0, 1, 1], [], []>} : vector<2x16xbf16>, vector<16x512xbf16>, vector<2x512xf32> -> vector<2x512xf32>
    %c0_3 = arith.constant 0 : index
    %c0_4 = arith.constant 0 : index
    %3 = vector.load %arg3[%c0_3, %c0_4] : memref<1x512xf32, #tpu.memory_space<vmem>>, vector<1x512xf32>
    %4 = vector.broadcast %3 : vector<1x512xf32> to vector<2x512xf32>
    %5 = arith.mulf %2, %4 : vector<2x512xf32>
    %c0_5 = arith.constant 0 : index
    %c0_6 = arith.constant 0 : index
    %6 = vector.load %arg4[%c0_5, %c0_6] : memref<1x512xf32, #tpu.memory_space<vmem>>, vector<1x512xf32>
    %7 = vector.broadcast %6 : vector<1x512xf32> to vector<2x512xf32>
    %8 = arith.addf %5, %7 : vector<2x512xf32>
    %cst_7 = arith.constant 0.000000e+00 : f32
    %9 = vector.broadcast %cst_7 : f32 to vector<2x512xf32>
    %10 = arith.maximumf %8, %9 : vector<2x512xf32>
    %11 = arith.truncf %10 : vector<2x512xf32> to vector<2x512xbf16>
    %c0_8 = arith.constant 0 : index
    %c0_9 = arith.constant 0 : index
    %12 = vector.load %arg5[%c0_8, %c0_9] : memref<512x1024xbf16, #tpu.memory_space<vmem>>, vector<512x1024xbf16>
    %cst_10 = arith.constant dense<0.000000e+00> : vector<2x1024xf32>
    %13 = tpu.matmul %11, %12, %cst_10 {dimension_numbers = #tpu.dot_dimension_numbers<[1], [0], [0], [1], [0, 0, 1, 1], [], []>} : vector<2x512xbf16>, vector<512x1024xbf16>, vector<2x1024xf32> -> vector<2x1024xf32>
    %c0_11 = arith.constant 0 : index
    %c0_12 = arith.constant 0 : index
    %14 = vector.load %arg6[%c0_11, %c0_12] : memref<1x1024xf32, #tpu.memory_space<vmem>>, vector<1x1024xf32>
    %15 = vector.broadcast %14 : vector<1x1024xf32> to vector<2x1024xf32>
    %16 = arith.mulf %13, %15 : vector<2x1024xf32>
    %c0_13 = arith.constant 0 : index
    %c0_14 = arith.constant 0 : index
    %17 = vector.load %arg7[%c0_13, %c0_14] : memref<1x1024xf32, #tpu.memory_space<vmem>>, vector<1x1024xf32>
    %18 = vector.broadcast %17 : vector<1x1024xf32> to vector<2x1024xf32>
    %19 = arith.addf %16, %18 : vector<2x1024xf32>
    %cst_15 = arith.constant 0.000000e+00 : f32
    %20 = vector.broadcast %cst_15 : f32 to vector<2x1024xf32>
    %21 = arith.maximumf %19, %20 : vector<2x1024xf32>
    %c0_16 = arith.constant 0 : index
    %c0_17 = arith.constant 0 : index
    %22 = vector.load %arg8[%c0_16, %c0_17] : memref<2x1024xf32, #tpu.memory_space<vmem>>, vector<2x1024xf32>
    tpu.vector_store %arg8[%c0_16, %c0_17], %21 {strides = array<i32>} : memref<2x1024xf32, #tpu.memory_space<vmem>>, vector<2x1024xf32>,
    return
  }
  func.func @transform_0(%arg0: i32) -> (i32, i32) {
    %c0_i32 = arith.constant 0 : i32
    %c0_i32_0 = arith.constant 0 : i32
    %c0_i32_1 = arith.constant 0 : i32
    return %c0_i32, %c0_i32_0 : i32, i32
  }
  func.func @transform_1(%arg0: i32) -> (i32, i32) {
    %c0_i32 = arith.constant 0 : i32
    %c0_i32_0 = arith.constant 0 : i32
    %c0_i32_1 = arith.constant 0 : i32
    return %c0_i32, %c0_i32_0 : i32, i32
  }
  func.func @transform_2(%arg0: i32) -> (i32, i32) {
    %c0_i32 = arith.constant 0 : i32
    %c0_i32_0 = arith.constant 0 : i32
    %c0_i32_1 = arith.constant 0 : i32
    return %c0_i32, %c0_i32_0 : i32, i32
  }
  func.func @transform_3(%arg0: i32) -> (i32, i32) {
    %c0_i32 = arith.constant 0 : i32
    %c0_i32_0 = arith.constant 0 : i32
    %c0_i32_1 = arith.constant 0 : i32
    return %c0_i32, %c0_i32_0 : i32, i32
  }
  func.func @transform_4(%arg0: i32) -> (i32, i32) {
    %c0_i32 = arith.constant 0 : i32
    %c0_i32_0 = arith.constant 0 : i32
    %c0_i32_1 = arith.constant 0 : i32
    return %c0_i32, %c0_i32_0 : i32, i32
  }
  func.func @transform_5(%arg0: i32) -> (i32, i32) {
    %c0_i32 = arith.constant 0 : i32
    %c0_i32_0 = arith.constant 0 : i32
    %c0_i32_1 = arith.constant 0 : i32
    return %c0_i32, %c0_i32_0 : i32, i32
  }
  func.func @transform_6(%arg0: i32) -> (i32, i32) {
    %c0_i32 = arith.constant 0 : i32
    %c0_i32_0 = arith.constant 0 : i32
    %c0_i32_1 = arith.constant 0 : i32
    return %c0_i32, %c0_i32_0 : i32, i32
  }
  func.func @transform_7(%arg0: i32) -> (i32, i32) {
    %c0_i32 = arith.constant 0 : i32
    %c0_i32_0 = arith.constant 0 : i32
    %c0_i32_1 = arith.constant 0 : i32
    return %c0_i32, %c0_i32_0 : i32, i32
  }
}

module attributes {stable_mosaic.version = 11 : i64} {
  func.func @_gemm_colscale_kernel(%arg0: i32, %arg1: memref<32x64xbf16, #tpu.memory_space<vmem>>, %arg2: memref<64x1024xbf16, #tpu.memory_space<vmem>>, %arg3: memref<1x1024xf32, #tpu.memory_space<vmem>>, %arg4: memref<32x1024xf32, #tpu.memory_space<vmem>>) attributes {dimension_semantics = [#tpu.dimension_semantics<parallel>], iteration_bounds = array<i64: 1>, scalar_prefetch = 0 : i64, scratch_operands = 0 : i64, tpu.core_type = #tpu.core_type<tc>, window_params = [{transform_indices = @transform_0, window_bounds = array<i64: 32, 64>}, {pipeline_mode = #tpu.pipeline_mode<synchronous>, transform_indices = @transform_1, window_bounds = array<i64: 64, 1024>}, {pipeline_mode = #tpu.pipeline_mode<synchronous>, transform_indices = @transform_2, window_bounds = array<i64: 1, 1024>}, {transform_indices = @transform_3, window_bounds = array<i64: 32, 1024>}]} {
    %c0 = arith.constant 0 : index
    %c0_0 = arith.constant 0 : index
    %0 = vector.load %arg1[%c0, %c0_0] : memref<32x64xbf16, #tpu.memory_space<vmem>>, vector<32x64xbf16>
    %c0_1 = arith.constant 0 : index
    %c0_2 = arith.constant 0 : index
    %1 = vector.load %arg2[%c0_1, %c0_2] : memref<64x1024xbf16, #tpu.memory_space<vmem>>, vector<64x1024xbf16>
    %cst = arith.constant dense<0.000000e+00> : vector<32x1024xf32>
    %2 = tpu.matmul %0, %1, %cst {dimension_numbers = #tpu.dot_dimension_numbers<[1], [0], [0], [1], [0, 0, 1, 1], [], []>} : vector<32x64xbf16>, vector<64x1024xbf16>, vector<32x1024xf32> -> vector<32x1024xf32>
    %c0_3 = arith.constant 0 : index
    %c0_4 = arith.constant 0 : index
    %3 = vector.load %arg3[%c0_3, %c0_4] : memref<1x1024xf32, #tpu.memory_space<vmem>>, vector<1x1024xf32>
    %4 = vector.broadcast %3 : vector<1x1024xf32> to vector<32x1024xf32>
    %5 = arith.mulf %2, %4 : vector<32x1024xf32>
    %c0_5 = arith.constant 0 : index
    %c0_6 = arith.constant 0 : index
    %6 = vector.load %arg4[%c0_5, %c0_6] : memref<32x1024xf32, #tpu.memory_space<vmem>>, vector<32x1024xf32>
    tpu.vector_store %arg4[%c0_5, %c0_6], %5 {strides = array<i32>} : memref<32x1024xf32, #tpu.memory_space<vmem>>, vector<32x1024xf32>,
    return
  }
  func.func @transform_0(%arg0: i32) -> (i32, i32) {
    %c0_i32 = arith.constant 0 : i32
    %c0_i32_0 = arith.constant 0 : i32
    return %arg0, %c0_i32 : i32, i32
  }
  func.func @transform_1(%arg0: i32) -> (i32, i32) {
    %c0_i32 = arith.constant 0 : i32
    %c0_i32_0 = arith.constant 0 : i32
    %c0_i32_1 = arith.constant 0 : i32
    return %c0_i32, %c0_i32_0 : i32, i32
  }
  func.func @transform_2(%arg0: i32) -> (i32, i32) {
    %c0_i32 = arith.constant 0 : i32
    %c0_i32_0 = arith.constant 0 : i32
    %c0_i32_1 = arith.constant 0 : i32
    return %c0_i32, %c0_i32_0 : i32, i32
  }
  func.func @transform_3(%arg0: i32) -> (i32, i32) {
    %c0_i32 = arith.constant 0 : i32
    %c0_i32_0 = arith.constant 0 : i32
    return %arg0, %c0_i32 : i32, i32
  }
}

module attributes {stable_mosaic.version = 11 : i64} {
  func.func @_gemm_colscale_kernel(%arg0: i32, %arg1: memref<128x64xbf16, #tpu.memory_space<vmem>>, %arg2: memref<64x512xbf16, #tpu.memory_space<vmem>>, %arg3: memref<1x512xf32, #tpu.memory_space<vmem>>, %arg4: memref<128x512xf32, #tpu.memory_space<vmem>>) attributes {dimension_semantics = [#tpu.dimension_semantics<parallel>], iteration_bounds = array<i64: 1>, scalar_prefetch = 0 : i64, scratch_operands = 0 : i64, tpu.core_type = #tpu.core_type<tc>, window_params = [{transform_indices = @transform_0, window_bounds = array<i64: 128, 64>}, {pipeline_mode = #tpu.pipeline_mode<synchronous>, transform_indices = @transform_1, window_bounds = array<i64: 64, 512>}, {pipeline_mode = #tpu.pipeline_mode<synchronous>, transform_indices = @transform_2, window_bounds = array<i64: 1, 512>}, {transform_indices = @transform_3, window_bounds = array<i64: 128, 512>}]} {
    %c0 = arith.constant 0 : index
    %c0_0 = arith.constant 0 : index
    %0 = vector.load %arg1[%c0, %c0_0] : memref<128x64xbf16, #tpu.memory_space<vmem>>, vector<128x64xbf16>
    %c0_1 = arith.constant 0 : index
    %c0_2 = arith.constant 0 : index
    %1 = vector.load %arg2[%c0_1, %c0_2] : memref<64x512xbf16, #tpu.memory_space<vmem>>, vector<64x512xbf16>
    %cst = arith.constant dense<0.000000e+00> : vector<128x512xf32>
    %2 = tpu.matmul %0, %1, %cst {dimension_numbers = #tpu.dot_dimension_numbers<[1], [0], [0], [1], [0, 0, 1, 1], [], []>} : vector<128x64xbf16>, vector<64x512xbf16>, vector<128x512xf32> -> vector<128x512xf32>
    %c0_3 = arith.constant 0 : index
    %c0_4 = arith.constant 0 : index
    %3 = vector.load %arg3[%c0_3, %c0_4] : memref<1x512xf32, #tpu.memory_space<vmem>>, vector<1x512xf32>
    %4 = vector.broadcast %3 : vector<1x512xf32> to vector<128x512xf32>
    %5 = arith.mulf %2, %4 : vector<128x512xf32>
    %c0_5 = arith.constant 0 : index
    %c0_6 = arith.constant 0 : index
    %6 = vector.load %arg4[%c0_5, %c0_6] : memref<128x512xf32, #tpu.memory_space<vmem>>, vector<128x512xf32>
    tpu.vector_store %arg4[%c0_5, %c0_6], %5 {strides = array<i32>} : memref<128x512xf32, #tpu.memory_space<vmem>>, vector<128x512xf32>,
    return
  }
  func.func @transform_0(%arg0: i32) -> (i32, i32) {
    %c0_i32 = arith.constant 0 : i32
    %c0_i32_0 = arith.constant 0 : i32
    return %arg0, %c0_i32 : i32, i32
  }
  func.func @transform_1(%arg0: i32) -> (i32, i32) {
    %c0_i32 = arith.constant 0 : i32
    %c0_i32_0 = arith.constant 0 : i32
    %c0_i32_1 = arith.constant 0 : i32
    return %c0_i32, %c0_i32_0 : i32, i32
  }
  func.func @transform_2(%arg0: i32) -> (i32, i32) {
    %c0_i32 = arith.constant 0 : i32
    %c0_i32_0 = arith.constant 0 : i32
    %c0_i32_1 = arith.constant 0 : i32
    return %c0_i32, %c0_i32_0 : i32, i32
  }
  func.func @transform_3(%arg0: i32) -> (i32, i32) {
    %c0_i32 = arith.constant 0 : i32
    %c0_i32_0 = arith.constant 0 : i32
    return %arg0, %c0_i32 : i32, i32
  }
}

module attributes {stable_mosaic.version = 11 : i64} {
  func.func @_gemm_colscale_kernel(%arg0: i32, %arg1: memref<512x32xbf16, #tpu.memory_space<vmem>>, %arg2: memref<32x512xbf16, #tpu.memory_space<vmem>>, %arg3: memref<1x512xf32, #tpu.memory_space<vmem>>, %arg4: memref<512x512xf32, #tpu.memory_space<vmem>>) attributes {dimension_semantics = [#tpu.dimension_semantics<parallel>], iteration_bounds = array<i64: 1>, scalar_prefetch = 0 : i64, scratch_operands = 0 : i64, tpu.core_type = #tpu.core_type<tc>, window_params = [{transform_indices = @transform_0, window_bounds = array<i64: 512, 32>}, {pipeline_mode = #tpu.pipeline_mode<synchronous>, transform_indices = @transform_1, window_bounds = array<i64: 32, 512>}, {pipeline_mode = #tpu.pipeline_mode<synchronous>, transform_indices = @transform_2, window_bounds = array<i64: 1, 512>}, {transform_indices = @transform_3, window_bounds = array<i64: 512, 512>}]} {
    %c0 = arith.constant 0 : index
    %c0_0 = arith.constant 0 : index
    %0 = vector.load %arg1[%c0, %c0_0] : memref<512x32xbf16, #tpu.memory_space<vmem>>, vector<512x32xbf16>
    %c0_1 = arith.constant 0 : index
    %c0_2 = arith.constant 0 : index
    %1 = vector.load %arg2[%c0_1, %c0_2] : memref<32x512xbf16, #tpu.memory_space<vmem>>, vector<32x512xbf16>
    %cst = arith.constant dense<0.000000e+00> : vector<512x512xf32>
    %2 = tpu.matmul %0, %1, %cst {dimension_numbers = #tpu.dot_dimension_numbers<[1], [0], [0], [1], [0, 0, 1, 1], [], []>} : vector<512x32xbf16>, vector<32x512xbf16>, vector<512x512xf32> -> vector<512x512xf32>
    %c0_3 = arith.constant 0 : index
    %c0_4 = arith.constant 0 : index
    %3 = vector.load %arg3[%c0_3, %c0_4] : memref<1x512xf32, #tpu.memory_space<vmem>>, vector<1x512xf32>
    %4 = vector.broadcast %3 : vector<1x512xf32> to vector<512x512xf32>
    %5 = arith.mulf %2, %4 : vector<512x512xf32>
    %c0_5 = arith.constant 0 : index
    %c0_6 = arith.constant 0 : index
    %6 = vector.load %arg4[%c0_5, %c0_6] : memref<512x512xf32, #tpu.memory_space<vmem>>, vector<512x512xf32>
    tpu.vector_store %arg4[%c0_5, %c0_6], %5 {strides = array<i32>} : memref<512x512xf32, #tpu.memory_space<vmem>>, vector<512x512xf32>,
    return
  }
  func.func @transform_0(%arg0: i32) -> (i32, i32) {
    %c0_i32 = arith.constant 0 : i32
    %c0_i32_0 = arith.constant 0 : i32
    return %arg0, %c0_i32 : i32, i32
  }
  func.func @transform_1(%arg0: i32) -> (i32, i32) {
    %c0_i32 = arith.constant 0 : i32
    %c0_i32_0 = arith.constant 0 : i32
    %c0_i32_1 = arith.constant 0 : i32
    return %c0_i32, %c0_i32_0 : i32, i32
  }
  func.func @transform_2(%arg0: i32) -> (i32, i32) {
    %c0_i32 = arith.constant 0 : i32
    %c0_i32_0 = arith.constant 0 : i32
    %c0_i32_1 = arith.constant 0 : i32
    return %c0_i32, %c0_i32_0 : i32, i32
  }
  func.func @transform_3(%arg0: i32) -> (i32, i32) {
    %c0_i32 = arith.constant 0 : i32
    %c0_i32_0 = arith.constant 0 : i32
    return %arg0, %c0_i32 : i32, i32
  }
}

module attributes {stable_mosaic.version = 11 : i64} {
  func.func @_gemm_colscale_kernel(%arg0: i32, %arg1: memref<1024x32xbf16, #tpu.memory_space<vmem>>, %arg2: memref<32x128xbf16, #tpu.memory_space<vmem>>, %arg3: memref<1x128xf32, #tpu.memory_space<vmem>>, %arg4: memref<1024x128xf32, #tpu.memory_space<vmem>>) attributes {dimension_semantics = [#tpu.dimension_semantics<parallel>], iteration_bounds = array<i64: 2>, scalar_prefetch = 0 : i64, scratch_operands = 0 : i64, tpu.core_type = #tpu.core_type<tc>, window_params = [{transform_indices = @transform_0, window_bounds = array<i64: 1024, 32>}, {pipeline_mode = #tpu.pipeline_mode<synchronous>, transform_indices = @transform_1, window_bounds = array<i64: 32, 128>}, {pipeline_mode = #tpu.pipeline_mode<synchronous>, transform_indices = @transform_2, window_bounds = array<i64: 1, 128>}, {transform_indices = @transform_3, window_bounds = array<i64: 1024, 128>}]} {
    %c0 = arith.constant 0 : index
    %c0_0 = arith.constant 0 : index
    %0 = vector.load %arg1[%c0, %c0_0] : memref<1024x32xbf16, #tpu.memory_space<vmem>>, vector<1024x32xbf16>
    %c0_1 = arith.constant 0 : index
    %c0_2 = arith.constant 0 : index
    %1 = vector.load %arg2[%c0_1, %c0_2] : memref<32x128xbf16, #tpu.memory_space<vmem>>, vector<32x128xbf16>
    %cst = arith.constant dense<0.000000e+00> : vector<1024x128xf32>
    %2 = tpu.matmul %0, %1, %cst {dimension_numbers = #tpu.dot_dimension_numbers<[1], [0], [0], [1], [0, 0, 1, 1], [], []>} : vector<1024x32xbf16>, vector<32x128xbf16>, vector<1024x128xf32> -> vector<1024x128xf32>
    %c0_3 = arith.constant 0 : index
    %c0_4 = arith.constant 0 : index
    %3 = vector.load %arg3[%c0_3, %c0_4] : memref<1x128xf32, #tpu.memory_space<vmem>>, vector<1x128xf32>
    %4 = vector.broadcast %3 : vector<1x128xf32> to vector<1024x128xf32>
    %5 = arith.mulf %2, %4 : vector<1024x128xf32>
    %c0_5 = arith.constant 0 : index
    %c0_6 = arith.constant 0 : index
    %6 = vector.load %arg4[%c0_5, %c0_6] : memref<1024x128xf32, #tpu.memory_space<vmem>>, vector<1024x128xf32>
    tpu.vector_store %arg4[%c0_5, %c0_6], %5 {strides = array<i32>} : memref<1024x128xf32, #tpu.memory_space<vmem>>, vector<1024x128xf32>,
    return
  }
  func.func @transform_0(%arg0: i32) -> (i32, i32) {
    %c0_i32 = arith.constant 0 : i32
    %c0_i32_0 = arith.constant 0 : i32
    return %arg0, %c0_i32 : i32, i32
  }
  func.func @transform_1(%arg0: i32) -> (i32, i32) {
    %c0_i32 = arith.constant 0 : i32
    %c0_i32_0 = arith.constant 0 : i32
    %c0_i32_1 = arith.constant 0 : i32
    return %c0_i32, %c0_i32_0 : i32, i32
  }
  func.func @transform_2(%arg0: i32) -> (i32, i32) {
    %c0_i32 = arith.constant 0 : i32
    %c0_i32_0 = arith.constant 0 : i32
    %c0_i32_1 = arith.constant 0 : i32
    return %c0_i32, %c0_i32_0 : i32, i32
  }
  func.func @transform_3(%arg0: i32) -> (i32, i32) {
    %c0_i32 = arith.constant 0 : i32
    %c0_i32_0 = arith.constant 0 : i32
    return %arg0, %c0_i32 : i32, i32
  }
}

</mosaic_0001>

<llo_original>
// kernel: conv_decoder_forward.6
$region0: #{conv_decoder_forward.6}
  #allocation0 [shape = 'u32[]', space=smem, size = 0x4, offset = 0x4, fixed_abs, tag = 'smem constant byte address 0x4 - core index']
  #allocation1 [shape = 'u32[144,128]{1,0:T(1,128)}', space=vmem, size = 0x12000, scoped, tag = 'internal scratch']
  %s0 = inlined_call_operand.vmem [shape: bf16[32,64], index: 0, kind: input, shape index: {}]
  %s1 = inlined_call_operand.vmem [shape: bf16[64,1024], index: 1, kind: input, shape index: {}]
  %s2 = inlined_call_operand.vmem [shape: f32[1,1024], index: 2, kind: input, shape index: {}]
  %s3 = inlined_call_operand.vmem [shape: f32[32,1024], index: 3, kind: output, shape index: {}]
  %s4 = sld [smem:[#allocation0]]
  $region22: #{conv_decoder_forward.6} parent=0
    _
  %s6 = ssub.s32 1, %s4
  %s7 = scalar_select 0, %s6, %s4
  // Predicated region
  $region2: #{conv_decoder_forward.6} parent=0 // pred_check
    _
  $region3: #{conv_decoder_forward.6} parent=0 // pred_check_branch
    %9 = sbr.rel (0) target = $region5
  $region4: #{conv_decoder_forward.6} parent=0 // pred_region
    _
  $region5: #{conv_decoder_forward.6} parent=0 // pred_fallthru
    _
  // Predicated region
  $region6: #{conv_decoder_forward.6} parent=0 // pred_check
    _
  $region7: #{conv_decoder_forward.6} parent=0 // pred_check_branch
    %11 = sbr.rel (0) target = $region9
  $region8: #{conv_decoder_forward.6} parent=0 // pred_region
    _
  $region9: #{conv_decoder_forward.6} parent=0 // pred_fallthru
    _
  // Predicated region
  $region10: #{conv_decoder_forward.6} parent=0 // pred_check
    _
  $region11: #{conv_decoder_forward.6} parent=0 // pred_check_branch
    %13 = sbr.rel (0) target = $region13
  $region12: #{conv_decoder_forward.6} parent=0 // pred_region
    _
  $region13: #{conv_decoder_forward.6} parent=0 // pred_fallthru
    _
  %v15 = vld [vmem:[%s0] sm:$0xf]
  %v16 = vld [vmem:[%s0 + $0x4] sm:$0xf]
  %v17 = vld [vmem:[%s0 + $0x8] sm:$0xf]
  %v18 = vld [vmem:[%s0 + $0xc] sm:$0xf]
  %v19 = vld [vmem:[%s1] sm:$0xff]
  %v20 = vld [vmem:[%s1 + $0x8] sm:$0xff]
  %v21 = vld [vmem:[%s1 + $0x10] sm:$0xff]
  %v22 = vld [vmem:[%s1 + $0x18] sm:$0xff]
  %v23 = vld [vmem:[%s1 + $0x20] sm:$0xff]
  %v24 = vld [vmem:[%s1 + $0x28] sm:$0xff]
  %v25 = vld [vmem:[%s1 + $0x30] sm:$0xff]
  %v26 = vld [vmem:[%s1 + $0x38] sm:$0xff]
  %v27 = vld [vmem:[%s1 + $0x40] sm:$0xff]
  %v28 = vld [vmem:[%s1 + $0x48] sm:$0xff]
  %v29 = vld [vmem:[%s1 + $0x50] sm:$0xff]
  %v30 = vld [vmem:[%s1 + $0x58] sm:$0xff]
  %v31 = vld [vmem:[%s1 + $0x60] sm:$0xff]
  %v32 = vld [vmem:[%s1 + $0x68] sm:$0xff]
  %v33 = vld [vmem:[%s1 + $0x70] sm:$0xff]
  %v34 = vld [vmem:[%s1 + $0x78] sm:$0xff]
  %v35 = vld [vmem:[%s1 + $0x80] sm:$0xff]
  %v36 = vld [vmem:[%s1 + $0x88] sm:$0xff]
  %v37 = vld [vmem:[%s1 + $0x90] sm:$0xff]
  %v38 = vld [vmem:[%s1 + $0x98] sm:$0xff]
  %v39 = vld [vmem:[%s1 + $0xa0] sm:$0xff]
  %v40 = vld [vmem:[%s1 + $0xa8] sm:$0xff]
  %v41 = vld [vmem:[%s1 + $0xb0] sm:$0xff]
  %v42 = vld [vmem:[%s1 + $0xb8] sm:$0xff]
  %v43 = vld [vmem:[%s1 + $0xc0] sm:$0xff]
  %v44 = vld [vmem:[%s1 + $0xc8] sm:$0xff]
  %v45 = vld [vmem:[%s1 + $0xd0] sm:$0xff]
  %v46 = vld [vmem:[%s1 + $0xd8] sm:$0xff]
  %v47 = vld [vmem:[%s1 + $0xe0] sm:$0xff]
  %v48 = vld [vmem:[%s1 + $0xe8] sm:$0xff]
  %v49 = vld [vmem:[%s1 + $0xf0] sm:$0xff]
  %v50 = vld [vmem:[%s1 + $0xf8] sm:$0xff]
  %v55 = vunpack.c.l.b16 %v15
  %v56 = vunpack.c.l.b16 %v16
  %v57 = vunpack.c.l.b16 %v17
  %v58 = vunpack.c.l.b16 %v18
  %v59 = vpack.c.b16 %v56, %v55
  %v60 = vpack.c.b16 %v58, %v57
  %v93 = vunpack.c.l.b16 %v19
  %v94 = vunpack.c.h.b16 %v19
  %v95 = vunpack.c.l.b16 %v20
  %v96 = vunpack.c.h.b16 %v20
  %v97 = vunpack.c.l.b16 %v21
  %v98 = vunpack.c.h.b16 %v21
  %v99 = vunpack.c.l.b16 %v22
  %v100 = vunpack.c.h.b16 %v22
  %v101 = vunpack.c.l.b16 %v23
  %v102 = vunpack.c.h.b16 %v23
  %v103 = vunpack.c.l.b16 %v24
  %v104 = vunpack.c.h.b16 %v24
  %v105 = vunpack.c.l.b16 %v25
  %v106 = vunpack.c.h.b16 %v25
  %v107 = vunpack.c.l.b16 %v26
  %v108 = vunpack.c.h.b16 %v26
  %v109 = vunpack.c.l.b16 %v27
  %v110 = vunpack.c.h.b16 %v27
  %v111 = vunpack.c.l.b16 %v28
  %v112 = vunpack.c.h.b16 %v28
  %v113 = vunpack.c.l.b16 %v29
  %v114 = vunpack.c.h.b16 %v29
  %v115 = vunpack.c.l.b16 %v30
  %v116 = vunpack.c.h.b16 %v30
  %v117 = vunpack.c.l.b16 %v31
  %v118 = vunpack.c.h.b16 %v31
  %v119 = vunpack.c.l.b16 %v32
  %v120 = vunpack.c.h.b16 %v32
  %v121 = vunpack.c.l.b16 %v33
  %v122 = vunpack.c.h.b16 %v33
  %v123 = vunpack.c.l.b16 %v34
  %v124 = vunpack.c.h.b16 %v34
  %v125 = vunpack.c.l.b16 %v35
  %v126 = vunpack.c.h.b16 %v35
  %v127 = vunpack.c.l.b16 %v36
  %v128 = vunpack.c.h.b16 %v36
  %v129 = vunpack.c.l.b16 %v37
  %v130 = vunpack.c.h.b16 %v37
  %v131 = vunpack.c.l.b16 %v38
  %v132 = vunpack.c.h.b16 %v38
  %v133 = vunpack.c.l.b16 %v39
  %v134 = vunpack.c.h.b16 %v39
  %v135 = vunpack.c.l.b16 %v40
  %v136 = vunpack.c.h.b16 %v40
  %v137 = vunpack.c.l.b16 %v41
  %v138 = vunpack.c.h.b16 %v41
  %v139 = vunpack.c.l.b16 %v42
  %v140 = vunpack.c.h.b16 %v42
  %v141 = vunpack.c.l.b16 %v43
  %v142 = vunpack.c.h.b16 %v43
  %v143 = vunpack.c.l.b16 %v44
  %v144 = vunpack.c.h.b16 %v44
  %v145 = vunpack.c.l.b16 %v45
  %v146 = vunpack.c.h.b16 %v45
  %v147 = vunpack.c.l.b16 %v46
  %v148 = vunpack.c.h.b16 %v46
  %v149 = vunpack.c.l.b16 %v47
  %v150 = vunpack.c.h.b16 %v47
  %v151 = vunpack.c.l.b16 %v48
  %v152 = vunpack.c.h.b16 %v48
  %v153 = vunpack.c.l.b16 %v49
  %v154 = vunpack.c.h.b16 %v49
  %v155 = vunpack.c.l.b16 %v50
  %v156 = vunpack.c.h.b16 %v50
  %v157 = vpack.c.b16 %v101, %v93
  %v158 = vpack.c.b16 %v102, %v94
  %v159 = vpack.c.b16 %v103, %v95
  %v160 = vpack.c.b16 %v104, %v96
  %v161 = vpack.c.b16 %v105, %v97
  %v162 = vpack.c.b16 %v106, %v98
  %v163 = vpack.c.b16 %v107, %v99
  %v164 = vpack.c.b16 %v108, %v100
  %v165 = vpack.c.b16 %v117, %v109
  %v166 = vpack.c.b16 %v118, %v110
  %v167 = vpack.c.b16 %v119, %v111
  %v168 = vpack.c.b16 %v120, %v112
  %v169 = vpack.c.b16 %v121, %v113
  %v170 = vpack.c.b16 %v122, %v114
  %v171 = vpack.c.b16 %v123, %v115
  %v172 = vpack.c.b16 %v124, %v116
  %v173 = vpack.c.b16 %v133, %v125
  %v174 = vpack.c.b16 %v134, %v126
  %v175 = vpack.c.b16 %v135, %v127
  %v176 = vpack.c.b16 %v136, %v128
  %v177 = vpack.c.b16 %v137, %v129
  %v178 = vpack.c.b16 %v138, %v130
  %v179 = vpack.c.b16 %v139, %v131
  %v180 = vpack.c.b16 %v140, %v132
  %v181 = vpack.c.b16 %v149, %v141
  %v182 = vpack.c.b16 %v150, %v142
  %v183 = vpack.c.b16 %v151, %v143
  %v184 = vpack.c.b16 %v152, %v144
  %v185 = vpack.c.b16 %v153, %v145
  %v186 = vpack.c.b16 %v154, %v146
  %v187 = vpack.c.b16 %v155, %v147
  %v188 = vpack.c.b16 %v156, %v148
  %vm221 = vcmask 523264
  %v223 = vsel %vm221, %v59, 0
  %v226 = vsel %vm221, %v60, 0
  %228 = vmatprep.subr.bf16.mxu0 %v158
  %229 = vmatpush1.bf16.msra.mxu0 %v157
  %230 = vmatprep.subr.bf16.mxu0 %v166
  %231 = vmatpush1.bf16.msra.mxu0 %v165
  %232 = vmatprep.subr.bf16.mxu0 %v174
  %233 = vmatpush1.bf16.msra.mxu0 %v173
  %234 = vmatprep.subr.bf16.mxu0 %v182
  %235 = vmatpush1.bf16.msra.mxu0 %v181
  %236 = vmatprep.subr.bf16.mxu0 0
  %237 = vmatpush1.bf16.msra.mxu0 0
  %238 = vmatprep.subr.bf16.mxu0 0
  %239 = vmatpush1.bf16.msra.mxu0 0
  %240 = vmatprep.subr.bf16.mxu0 0
  %241 = vmatpush1.bf16.msra.mxu0 0
  %242 = vmatprep.subr.bf16.mxu0 0
  %243 = vmatpush1.bf16.msra.mxu0 0
  %244 = vmatprep.subr.bf16.mxu0 0
  %245 = vmatpush1.bf16.msra.mxu0 0
  %246 = vmatprep.subr.bf16.mxu0 0
  %247 = vmatpush1.bf16.msra.mxu0 0
  %248 = vmatprep.subr.bf16.mxu0 0
  %249 = vmatpush1.bf16.msra.mxu0 0
  %250 = vmatprep.subr.bf16.mxu0 0
  %251 = vmatpush1.bf16.msra.mxu0 0
  %252 = vmatprep.subr.bf16.mxu0 0
  %253 = vmatpush1.bf16.msra.mxu0 0
  %254 = vmatprep.subr.bf16.mxu0 0
  %255 = vmatpush1.bf16.msra.mxu0 0
  %256 = vmatprep.subr.bf16.mxu0 0
  %257 = vmatpush1.bf16.msra.mxu0 0
  %258 = vmatprep.subr.bf16.mxu0 0
  %259 = vmatpush1.bf16.msra.mxu0 0
  %260 = vmatprep.mubr.bf16.mxu0 0
  %261 = vmatmul.mubr.bf16.gmra.mrb[0].mxu0 %v223
  %v262 = vpop.f32.mrb[0].mxu0
  %v263 = vadd.f32 0.0, %v262
  %v264 = vpop.f32.mrb[0].mxu0
  %v265 = vadd.f32 0.0, %v264
  %v266 = vpop.f32.mrb[0].mxu0
  %v267 = vadd.f32 0.0, %v266
  %v268 = vpop.f32.mrb[0].mxu0
  %v269 = vadd.f32 0.0, %v268
  %270 = vmatprep.mubr.bf16.mxu0 0
  %271 = vmatmul.mubr.bf16.gmra.mrb[0].mxu0 %v226
  %v272 = vpop.f32.mrb[0].mxu0
  %v273 = vadd.f32 0.0, %v272
  %v274 = vpop.f32.mrb[0].mxu0
  %v275 = vadd.f32 0.0, %v274
  %v276 = vpop.f32.mrb[0].mxu0
  %v277 = vadd.f32 0.0, %v276
  %v278 = vpop.f32.mrb[0].mxu0
  %v279 = vadd.f32 0.0, %v278
  %280 = vdwg.mxu0
  %281 = vmatprep.subr.bf16.mxu0 %v160
  %282 = vmatpush1.bf16.msra.mxu0 %v159
  %283 = vmatprep.subr.bf16.mxu0 %v168
  %284 = vmatpush1.bf16.msra.mxu0 %v167
  %285 = vmatprep.subr.bf16.mxu0 %v176
  %286 = vmatpush1.bf16.msra.mxu0 %v175
  %287 = vmatprep.subr.bf16.mxu0 %v184
  %288 = vmatpush1.bf16.msra.mxu0 %v183
  %289 = vmatprep.subr.bf16.mxu0 0
  %290 = vmatpush1.bf16.msra.mxu0 0
  %291 = vmatprep.subr.bf16.mxu0 0
  %292 = vmatpush1.bf16.msra.mxu0 0
  %293 = vmatprep.subr.bf16.mxu0 0
  %294 = vmatpush1.bf16.msra.mxu0 0
  %295 = vmatprep.subr.bf16.mxu0 0
  %296 = vmatpush1.bf16.msra.mxu0 0
  %297 = vmatprep.subr.bf16.mxu0 0
  %298 = vmatpush1.bf16.msra.mxu0 0
  %299 = vmatprep.subr.bf16.mxu0 0
  %300 = vmatpush1.bf16.msra.mxu0 0
  %301 = vmatprep.subr.bf16.mxu0 0
  %302 = vmatpush1.bf16.msra.mxu0 0
  %303 = vmatprep.subr.bf16.mxu0 0
  %304 = vmatpush1.bf16.msra.mxu0 0
  %305 = vmatprep.subr.bf16.mxu0 0
  %306 = vmatpush1.bf16.msra.mxu0 0
  %307 = vmatprep.subr.bf16.mxu0 0
  %308 = vmatpush1.bf16.msra.mxu0 0
  %309 = vmatprep.subr.bf16.mxu0 0
  %310 = vmatpush1.bf16.msra.mxu0 0
  %311 = vmatprep.subr.bf16.mxu0 0
  %312 = vmatpush1.bf16.msra.mxu0 0
  %313 = vmatprep.mubr.bf16.mxu0 0
  %314 = vmatmul.mubr.bf16.gmra.mrb[0].mxu0 %v223
  %v315 = vpop.f32.mrb[0].mxu0
  %v316 = vadd.f32 0.0, %v315
  %v317 = vpop.f32.mrb[0].mxu0
  %v318 = vadd.f32 0.0, %v317
  %v319 = vpop.f32.mrb[0].mxu0
  %v320 = vadd.f32 0.0, %v319
  %v321 = vpop.f32.mrb[0].mxu0
  %v322 = vadd.f32 0.0, %v321
  %323 = vmatprep.mubr.bf16.mxu0 0
  %324 = vmatmul.mubr.bf16.gmra.mrb[0].mxu0 %v226
  %v325 = vpop.f32.mrb[0].mxu0
  %v326 = vadd.f32 0.0, %v325
  %v327 = vpop.f32.mrb[0].mxu0
  %v328 = vadd.f32 0.0, %v327
  %v329 = vpop.f32.mrb[0].mxu0
  %v330 = vadd.f32 0.0, %v329
  %v331 = vpop.f32.mrb[0].mxu0
  %v332 = vadd.f32 0.0, %v331
  %333 = vdwg.mxu0
  %334 = vmatprep.subr.bf16.mxu0 %v162
  %335 = vmatpush1.bf16.msra.mxu0 %v161
  %336 = vmatprep.subr.bf16.mxu0 %v170
  %337 = vmatpush1.bf16.msra.mxu0 %v169
  %338 = vmatprep.subr.bf16.mxu0 %v178
  %339 = vmatpush1.bf16.msra.mxu0 %v177
  %340 = vmatprep.subr.bf16.mxu0 %v186
  %341 = vmatpush1.bf16.msra.mxu0 %v185
  %342 = vmatprep.subr.bf16.mxu0 0
  %343 = vmatpush1.bf16.msra.mxu0 0
  %344 = vmatprep.subr.bf16.mxu0 0
  %345 = vmatpush1.bf16.msra.mxu0 0
  %346 = vmatprep.subr.bf16.mxu0 0
  %347 = vmatpush1.bf16.msra.mxu0 0
  %348 = vmatprep.subr.bf16.mxu0 0
  %349 = vmatpush1.bf16.msra.mxu0 0
  %350 = vmatprep.subr.bf16.mxu0 0
  %351 = vmatpush1.bf16.msra.mxu0 0
  %352 = vmatprep.subr.bf16.mxu0 0
  %353 = vmatpush1.bf16.msra.mxu0 0
  %354 = vmatprep.subr.bf16.mxu0 0
  %355 = vmatpush1.bf16.msra.mxu0 0
  %356 = vmatprep.subr.bf16.mxu0 0
  %357 = vmatpush1.bf16.msra.mxu0 0
  %358 = vmatprep.subr.bf16.mxu0 0
  %359 = vmatpush1.bf16.msra.mxu0 0
  %360 = vmatprep.subr.bf16.mxu0 0
  %361 = vmatpush1.bf16.msra.mxu0 0
  %362 = vmatprep.subr.bf16.mxu0 0
  %363 = vmatpush1.bf16.msra.mxu0 0
  %364 = vmatprep.subr.bf16.mxu0 0
  %365 = vmatpush1.bf16.msra.mxu0 0
  %366 = vmatprep.mubr.bf16.mxu0 0
  %367 = vmatmul.mubr.bf16.gmra.mrb[0].mxu0 %v223
  %v368 = vpop.f32.mrb[0].mxu0
  %v369 = vadd.f32 0.0, %v368
  %v370 = vpop.f32.mrb[0].mxu0
  %v371 = vadd.f32 0.0, %v370
  %v372 = vpop.f32.mrb[0].mxu0
  %v373 = vadd.f32 0.0, %v372
  %v374 = vpop.f32.mrb[0].mxu0
  %v375 = vadd.f32 0.0, %v374
  %376 = vmatprep.mubr.bf16.mxu0 0
  %377 = vmatmul.mubr.bf16.gmra.mrb[0].mxu0 %v226
  %v378 = vpop.f32.mrb[0].mxu0
  %v379 = vadd.f32 0.0, %v378
  %v380 = vpop.f32.mrb[0].mxu0
  %v381 = vadd.f32 0.0, %v380
  %v382 = vpop.f32.mrb[0].mxu0
  %v383 = vadd.f32 0.0, %v382
  %v384 = vpop.f32.mrb[0].mxu0
  %v385 = vadd.f32 0.0, %v384
  %386 = vdwg.mxu0
  %387 = vmatprep.subr.bf16.mxu0 %v164
  %388 = vmatpush1.bf16.msra.mxu0 %v163
  %389 = vmatprep.subr.bf16.mxu0 %v172
  %390 = vmatpush1.bf16.msra.mxu0 %v171
  %391 = vmatprep.subr.bf16.mxu0 %v180
  %392 = vmatpush1.bf16.msra.mxu0 %v179
  %393 = vmatprep.subr.bf16.mxu0 %v188
  %394 = vmatpush1.bf16.msra.mxu0 %v187
  %395 = vmatprep.subr.bf16.mxu0 0
  %396 = vmatpush1.bf16.msra.mxu0 0
  %397 = vmatprep.subr.bf16.mxu0 0
  %398 = vmatpush1.bf16.msra.mxu0 0
  %399 = vmatprep.subr.bf16.mxu0 0
  %400 = vmatpush1.bf16.msra.mxu0 0
  %401 = vmatprep.subr.bf16.mxu0 0
  %402 = vmatpush1.bf16.msra.mxu0 0
  %403 = vmatprep.subr.bf16.mxu0 0
  %404 = vmatpush1.bf16.msra.mxu0 0
  %405 = vmatprep.subr.bf16.mxu0 0
  %406 = vmatpush1.bf16.msra.mxu0 0
  %407 = vmatprep.subr.bf16.mxu0 0
  %408 = vmatpush1.bf16.msra.mxu0 0
  %409 = vmatprep.subr.bf16.mxu0 0
  %410 = vmatpush1.bf16.msra.mxu0 0
  %411 = vmatprep.subr.bf16.mxu0 0
  %412 = vmatpush1.bf16.msra.mxu0 0
  %413 = vmatprep.subr.bf16.mxu0 0
  %414 = vmatpush1.bf16.msra.mxu0 0
  %415 = vmatprep.subr.bf16.mxu0 0
  %416 = vmatpush1.bf16.msra.mxu0 0
  %417 = vmatprep.subr.bf16.mxu0 0
  %418 = vmatpush1.bf16.msra.mxu0 0
  %419 = vmatprep.mubr.bf16.mxu0 0
  %420 = vmatmul.mubr.bf16.gmra.mrb[0].mxu0 %v223
  %v421 = vpop.f32.mrb[0].mxu0
  %v422 = vadd.f32 0.0, %v421
  %v423 = vpop.f32.mrb[0].mxu0
  %v424 = vadd.f32 0.0, %v423
  %v425 = vpop.f32.mrb[0].mxu0
  %v426 = vadd.f32 0.0, %v425
  %v427 = vpop.f32.mrb[0].mxu0
  %v428 = vadd.f32 0.0, %v427
  %429 = vmatprep.mubr.bf16.mxu0 0
  %430 = vmatmul.mubr.bf16.gmra.mrb[0].mxu0 %v226
  %v431 = vpop.f32.mrb[0].mxu0
  %v432 = vadd.f32 0.0, %v431
  %v433 = vpop.f32.mrb[0].mxu0
  %v434 = vadd.f32 0.0, %v433
  %v435 = vpop.f32.mrb[0].mxu0
  %v436 = vadd.f32 0.0, %v435
  %v437 = vpop.f32.mrb[0].mxu0
  %v438 = vadd.f32 0.0, %v437
  %439 = vdwg.mxu0
  %v440 = vld [vmem:[%s2] sm:$0xff]
  %v442 = vlaneseq
  %v443 = vshrl.u32 %v442, 7
  %v444 = vsub.s32 0, %v443
  %v445 = vrot.slane %v440, %v444
  %v446 = vlaneseq
  %v447 = vshrl.u32 %v446, 7
  %v448 = vsub.s32 1, %v447
  %v449 = vrot.slane %v440, %v448
  %v450 = vlaneseq
  %v451 = vshrl.u32 %v450, 7
  %v452 = vsub.s32 2, %v451
  %v453 = vrot.slane %v440, %v452
  %v454 = vlaneseq
  %v455 = vshrl.u32 %v454, 7
  %v456 = vsub.s32 3, %v455
  %v457 = vrot.slane %v440, %v456
  %v458 = vlaneseq
  %v459 = vshrl.u32 %v458, 7
  %v460 = vsub.s32 4, %v459
  %v461 = vrot.slane %v440, %v460
  %v462 = vlaneseq
  %v463 = vshrl.u32 %v462, 7
  %v464 = vsub.s32 5, %v463
  %v465 = vrot.slane %v440, %v464
  %v466 = vlaneseq
  %v467 = vshrl.u32 %v466, 7
  %v468 = vsub.s32 6, %v467
  %v469 = vrot.slane %v440, %v468
  %v470 = vlaneseq
  %v471 = vshrl.u32 %v470, 7
  %v472 = vsub.s32 7, %v471
  %v473 = vrot.slane %v440, %v472
  %v482 = vmul.f32 %v263, %v445
  %v483 = vmul.f32 %v265, %v449
  %v484 = vmul.f32 %v316, %v453
  %v485 = vmul.f32 %v318, %v457
  %v486 = vmul.f32 %v369, %v461
  %v487 = vmul.f32 %v371, %v465
  %v488 = vmul.f32 %v422, %v469
  %v489 = vmul.f32 %v424, %v473
  %v490 = vmul.f32 %v267, %v445
  %v491 = vmul.f32 %v269, %v449
  %v492 = vmul.f32 %v320, %v453
  %v493 = vmul.f32 %v322, %v457
  %v494 = vmul.f32 %v373, %v461
  %v495 = vmul.f32 %v375, %v465
  %v496 = vmul.f32 %v426, %v469
  %v497 = vmul.f32 %v428, %v473
  %v498 = vmul.f32 %v273, %v445
  %v499 = vmul.f32 %v275, %v449
  %v500 = vmul.f32 %v326, %v453
  %v501 = vmul.f32 %v328, %v457
  %v502 = vmul.f32 %v379, %v461
  %v503 = vmul.f32 %v381, %v465
  %v504 = vmul.f32 %v432, %v469
  %v505 = vmul.f32 %v434, %v473
  %v506 = vmul.f32 %v277, %v445
  %v507 = vmul.f32 %v279, %v449
  %v508 = vmul.f32 %v330, %v453
  %v509 = vmul.f32 %v332, %v457
  %v510 = vmul.f32 %v383, %v461
  %v511 = vmul.f32 %v385, %v465
  %v512 = vmul.f32 %v436, %v469
  %v513 = vmul.f32 %v438, %v473
  %514 = vst [vmem:[%s3] sm:$0xff] %v482
  %515 = vst [vmem:[%s3 + $0x8] sm:$0xff] %v483
  %516 = vst [vmem:[%s3 + $0x10] sm:$0xff] %v484
  %517 = vst [vmem:[%s3 + $0x18] sm:$0xff] %v485
  %518 = vst [vmem:[%s3 + $0x20] sm:$0xff] %v486
  %519 = vst [vmem:[%s3 + $0x28] sm:$0xff] %v487
  %520 = vst [vmem:[%s3 + $0x30] sm:$0xff] %v488
  %521 = vst [vmem:[%s3 + $0x38] sm:$0xff] %v489
  %522 = vst [vmem:[%s3 + $0x40] sm:$0xff] %v490
  %523 = vst [vmem:[%s3 + $0x48] sm:$0xff] %v491
  %524 = vst [vmem:[%s3 + $0x50] sm:$0xff] %v492
  %525 = vst [vmem:[%s3 + $0x58] sm:$0xff] %v493
  %526 = vst [vmem:[%s3 + $0x60] sm:$0xff] %v494
  %527 = vst [vmem:[%s3 + $0x68] sm:$0xff] %v495
  %528 = vst [vmem:[%s3 + $0x70] sm:$0xff] %v496
  %529 = vst [vmem:[%s3 + $0x78] sm:$0xff] %v497
  %530 = vst [vmem:[%s3 + $0x80] sm:$0xff] %v498
  %531 = vst [vmem:[%s3 + $0x88] sm:$0xff] %v499
  %532 = vst [vmem:[%s3 + $0x90] sm:$0xff] %v500
  %533 = vst [vmem:[%s3 + $0x98] sm:$0xff] %v501
  %534 = vst [vmem:[%s3 + $0xa0] sm:$0xff] %v502
  %535 = vst [vmem:[%s3 + $0xa8] sm:$0xff] %v503
  %536 = vst [vmem:[%s3 + $0xb0] sm:$0xff] %v504
  %537 = vst [vmem:[%s3 + $0xb8] sm:$0xff] %v505
  %538 = vst [vmem:[%s3 + $0xc0] sm:$0xff] %v506
  %539 = vst [vmem:[%s3 + $0xc8] sm:$0xff] %v507
  %540 = vst [vmem:[%s3 + $0xd0] sm:$0xff] %v508
  %541 = vst [vmem:[%s3 + $0xd8] sm:$0xff] %v509
  %542 = vst [vmem:[%s3 + $0xe0] sm:$0xff] %v510
  %543 = vst [vmem:[%s3 + $0xe8] sm:$0xff] %v511
  %544 = vst [vmem:[%s3 + $0xf0] sm:$0xff] %v512
  %545 = vst [vmem:[%s3 + $0xf8] sm:$0xff] %v513
  // Predicated region
  $region14: #{conv_decoder_forward.6} parent=0 // pred_check
    _
  $region15: #{conv_decoder_forward.6} parent=0 // pred_check_branch
    %547 = sbr.rel (0) target = $region17
  $region16: #{conv_decoder_forward.6} parent=0 // pred_region
    _
  $region17: #{conv_decoder_forward.6} parent=0 // pred_fallthru
    _
  // Predicated region
  $region18: #{conv_decoder_forward.6} parent=0 // pred_check
    _
  $region19: #{conv_decoder_forward.6} parent=0 // pred_check_branch
    %549 = sbr.rel (0) target = $region21
  $region20: #{conv_decoder_forward.6} parent=0 // pred_region
    _
  $region21: #{conv_decoder_forward.6} parent=0 // pred_fallthru
    _

// kernel: conv_decoder_forward.5
$region0: #{conv_decoder_forward.5}
  #allocation0 [shape = 'u32[]', space=smem, size = 0x4, offset = 0x4, fixed_abs, tag = 'smem constant byte address 0x4 - core index']
  #allocation1 [shape = 'u32[144,128]{1,0:T(1,128)}', space=vmem, size = 0x12000, scoped, tag = 'internal scratch']
  %s0 = inlined_call_operand.vmem [shape: bf16[2,16], index: 0, kind: input, shape index: {}]
  %s1 = inlined_call_operand.vmem [shape: bf16[16,512], index: 1, kind: input, shape index: {}]
  %s2 = inlined_call_operand.vmem [shape: f32[1,512], index: 2, kind: input, shape index: {}]
  %s3 = inlined_call_operand.vmem [shape: f32[1,512], index: 3, kind: input, shape index: {}]
  %s4 = inlined_call_operand.vmem [shape: bf16[512,1024], index: 4, kind: input, shape index: {}]
  %s5 = inlined_call_operand.vmem [shape: f32[1,1024], index: 5, kind: input, shape index: {}]
  %s6 = inlined_call_operand.vmem [shape: f32[1,1024], index: 6, kind: input, shape index: {}]
  %s7 = inlined_call_operand.vmem [shape: f32[2,1024], index: 7, kind: output, shape index: {}]
  %s8 = sld [smem:[#allocation0]]
  $region38: #{conv_decoder_forward.5} parent=0
    _
  %s10 = ssub.s32 1, %s8
  %s11 = scalar_select 0, %s10, %s8
  // Predicated region
  $region2: #{conv_decoder_forward.5} parent=0 // pred_check
    _
  $region3: #{conv_decoder_forward.5} parent=0 // pred_check_branch
    %13 = sbr.rel (0) target = $region5
  $region4: #{conv_decoder_forward.5} parent=0 // pred_region
    _
  $region5: #{conv_decoder_forward.5} parent=0 // pred_fallthru
    _
  // Predicated region
  $region6: #{conv_decoder_forward.5} parent=0 // pred_check
    _
  $region7: #{conv_decoder_forward.5} parent=0 // pred_check_branch
    %15 = sbr.rel (0) target = $region9
  $region8: #{conv_decoder_forward.5} parent=0 // pred_region
    _
  $region9: #{conv_decoder_forward.5} parent=0 // pred_fallthru
    _
  // Predicated region
  $region10: #{conv_decoder_forward.5} parent=0 // pred_check
    _
  $region11: #{conv_decoder_forward.5} parent=0 // pred_check_branch
    %17 = sbr.rel (0) target = $region13
  $region12: #{conv_decoder_forward.5} parent=0 // pred_region
    _
  $region13: #{conv_decoder_forward.5} parent=0 // pred_fallthru
    _
  // Predicated region
  $region14: #{conv_decoder_forward.5} parent=0 // pred_check
    _
  $region15: #{conv_decoder_forward.5} parent=0 // pred_check_branch
    %19 = sbr.rel (0) target = $region17
  $region16: #{conv_decoder_forward.5} parent=0 // pred_region
    _
  $region17: #{conv_decoder_forward.5} parent=0 // pred_fallthru
    _
  // Predicated region
  $region18: #{conv_decoder_forward.5} parent=0 // pred_check
    _
  $region19: #{conv_decoder_forward.5} parent=0 // pred_check_branch
    %21 = sbr.rel (0) target = $region21
  $region20: #{conv_decoder_forward.5} parent=0 // pred_region
    _
  $region21: #{conv_decoder_forward.5} parent=0 // pred_fallthru
    _
  // Predicated region
  $region22: #{conv_decoder_forward.5} parent=0 // pred_check
    _
  $region23: #{conv_decoder_forward.5} parent=0 // pred_check_branch
    %23 = sbr.rel (0) target = $region25
  $region24: #{conv_decoder_forward.5} parent=0 // pred_region
    _
  $region25: #{conv_decoder_forward.5} parent=0 // pred_fallthru
    _
  // Predicated region
  $region26: #{conv_decoder_forward.5} parent=0 // pred_check
    _
  $region27: #{conv_decoder_forward.5} parent=0 // pred_check_branch
    %25 = sbr.rel (0) target = $region29
  $region28: #{conv_decoder_forward.5} parent=0 // pred_region
    _
  $region29: #{conv_decoder_forward.5} parent=0 // pred_fallthru
    _
  %v27 = vld [vmem:[%s0] sm:$0x1]
  %v28 = vld [vmem:[%s1] sm:$0xff]
  %v29 = vld [vmem:[%s1 + $0x8] sm:$0xff]
  %v30 = vld [vmem:[%s1 + $0x10] sm:$0xff]
  %v31 = vld [vmem:[%s1 + $0x18] sm:$0xff]
  %v36 = vunpack.c.l.b16 %v28
  %v37 = vunpack.c.h.b16 %v28
  %v38 = vunpack.c.l.b16 %v29
  %v39 = vunpack.c.h.b16 %v29
  %v40 = vunpack.c.l.b16 %v30
  %v41 = vunpack.c.h.b16 %v30
  %v42 = vunpack.c.l.b16 %v31
  %v43 = vunpack.c.h.b16 %v31
  %v44 = vpack.c.b16 %v40, %v36
  %v45 = vpack.c.b16 %v41, %v37
  %v46 = vpack.c.b16 %v42, %v38
  %v47 = vpack.c.b16 %v43, %v39
  %vm52 = vcmask 130048
  %v54 = vsel %vm52, %v27, 0
  %56 = vmatprep.subr.bf16.mxu0 %v45
  %57 = vmatpush1.bf16.msra.mxu0 %v44
  %58 = vmatprep.subr.bf16.mxu0 0
  %59 = vmatpush1.bf16.msra.mxu0 0
  %60 = vmatprep.subr.bf16.mxu0 0
  %61 = vmatpush1.bf16.msra.mxu0 0
  %62 = vmatprep.subr.bf16.mxu0 0
  %63 = vmatpush1.bf16.msra.mxu0 0
  %64 = vmatprep.subr.bf16.mxu0 0
  %65 = vmatpush1.bf16.msra.mxu0 0
  %66 = vmatprep.subr.bf16.mxu0 0
  %67 = vmatpush1.bf16.msra.mxu0 0
  %68 = vmatprep.subr.bf16.mxu0 0
  %69 = vmatpush1.bf16.msra.mxu0 0
  %70 = vmatprep.subr.bf16.mxu0 0
  %71 = vmatpush1.bf16.msra.mxu0 0
  %72 = vmatprep.subr.bf16.mxu0 0
  %73 = vmatpush1.bf16.msra.mxu0 0
  %74 = vmatprep.subr.bf16.mxu0 0
  %75 = vmatpush1.bf16.msra.mxu0 0
  %76 = vmatprep.subr.bf16.mxu0 0
  %77 = vmatpush1.bf16.msra.mxu0 0
  %78 = vmatprep.subr.bf16.mxu0 0
  %79 = vmatpush1.bf16.msra.mxu0 0
  %80 = vmatprep.subr.bf16.mxu0 0
  %81 = vmatpush1.bf16.msra.mxu0 0
  %82 = vmatprep.subr.bf16.mxu0 0
  %83 = vmatpush1.bf16.msra.mxu0 0
  %84 = vmatprep.subr.bf16.mxu0 0
  %85 = vmatpush1.bf16.msra.mxu0 0
  %86 = vmatprep.subr.bf16.mxu0 0
  %87 = vmatpush1.bf16.msra.mxu0 0
  %88 = vmatprep.mubr.bf16.mxu0 0
  %89 = vmatmul.mubr.bf16.gmra.mrb[0].mxu0 %v54
  %v90 = vpop.f32.mrb[0].mxu0
  %v91 = vadd.f32 0.0, %v90
  %v92 = vpop.f32.mrb[0].mxu0
  %v93 = vadd.f32 0.0, %v92
  %v94 = vpop.f32.mrb[0].mxu0
  %v95 = vpop.f32.mrb[0].mxu0
  %96 = vdwg.mxu0
  %97 = vmatprep.subr.bf16.mxu0 %v47
  %98 = vmatpush1.bf16.msra.mxu0 %v46
  %99 = vmatprep.subr.bf16.mxu0 0
  %100 = vmatpush1.bf16.msra.mxu0 0
  %101 = vmatprep.subr.bf16.mxu0 0
  %102 = vmatpush1.bf16.msra.mxu0 0
  %103 = vmatprep.subr.bf16.mxu0 0
  %104 = vmatpush1.bf16.msra.mxu0 0
  %105 = vmatprep.subr.bf16.mxu0 0
  %106 = vmatpush1.bf16.msra.mxu0 0
  %107 = vmatprep.subr.bf16.mxu0 0
  %108 = vmatpush1.bf16.msra.mxu0 0
  %109 = vmatprep.subr.bf16.mxu0 0
  %110 = vmatpush1.bf16.msra.mxu0 0
  %111 = vmatprep.subr.bf16.mxu0 0
  %112 = vmatpush1.bf16.msra.mxu0 0
  %113 = vmatprep.subr.bf16.mxu0 0
  %114 = vmatpush1.bf16.msra.mxu0 0
  %115 = vmatprep.subr.bf16.mxu0 0
  %116 = vmatpush1.bf16.msra.mxu0 0
  %117 = vmatprep.subr.bf16.mxu0 0
  %118 = vmatpush1.bf16.msra.mxu0 0
  %119 = vmatprep.subr.bf16.mxu0 0
  %120 = vmatpush1.bf16.msra.mxu0 0
  %121 = vmatprep.subr.bf16.mxu0 0
  %122 = vmatpush1.bf16.msra.mxu0 0
  %123 = vmatprep.subr.bf16.mxu0 0
  %124 = vmatpush1.bf16.msra.mxu0 0
  %125 = vmatprep.subr.bf16.mxu0 0
  %126 = vmatpush1.bf16.msra.mxu0 0
  %127 = vmatprep.subr.bf16.mxu0 0
  %128 = vmatpush1.bf16.msra.mxu0 0
  %129 = vmatprep.mubr.bf16.mxu0 0
  %130 = vmatmul.mubr.bf16.gmra.mrb[0].mxu0 %v54
  %v131 = vpop.f32.mrb[0].mxu0
  %v132 = vadd.f32 0.0, %v131
  %v133 = vpop.f32.mrb[0].mxu0
  %v134 = vadd.f32 0.0, %v133
  %v135 = vpop.f32.mrb[0].mxu0
  %v136 = vpop.f32.mrb[0].mxu0
  %137 = vdwg.mxu0
  %v138 = vld [vmem:[%s2] sm:$0xf]
  %v140 = vlaneseq
  %v141 = vshrl.u32 %v140, 7
  %v142 = vsub.s32 0, %v141
  %v143 = vrot.slane %v138, %v142
  %v144 = vlaneseq
  %v145 = vshrl.u32 %v144, 7
  %v146 = vsub.s32 1, %v145
  %v147 = vrot.slane %v138, %v146
  %v148 = vlaneseq
  %v149 = vshrl.u32 %v148, 7
  %v150 = vsub.s32 2, %v149
  %v151 = vrot.slane %v138, %v150
  %v152 = vlaneseq
  %v153 = vshrl.u32 %v152, 7
  %v154 = vsub.s32 3, %v153
  %v155 = vrot.slane %v138, %v154
  %v160 = vmul.f32 %v91, %v143
  %v161 = vmul.f32 %v93, %v147
  %v162 = vmul.f32 %v132, %v151
  %v163 = vmul.f32 %v134, %v155
  %v164 = vld [vmem:[%s3] sm:$0xf]
  %v166 = vlaneseq
  %v167 = vshrl.u32 %v166, 7
  %v168 = vsub.s32 0, %v167
  %v169 = vrot.slane %v164, %v168
  %v170 = vlaneseq
  %v171 = vshrl.u32 %v170, 7
  %v172 = vsub.s32 1, %v171
  %v173 = vrot.slane %v164, %v172
  %v174 = vlaneseq
  %v175 = vshrl.u32 %v174, 7
  %v176 = vsub.s32 2, %v175
  %v177 = vrot.slane %v164, %v176
  %v178 = vlaneseq
  %v179 = vshrl.u32 %v178, 7
  %v180 = vsub.s32 3, %v179
  %v181 = vrot.slane %v164, %v180
  %v186 = vadd.f32 %v160, %v169
  %v187 = vadd.f32 %v161, %v173
  %v188 = vadd.f32 %v162, %v177
  %v189 = vadd.f32 %v163, %v181
  %v190 = vmax.f32 %v186, 0.0
  %v191 = vmax.f32 %v187, 0.0
  %v192 = vmax.f32 %v188, 0.0
  %v193 = vmax.f32 %v189, 0.0
  %v194 = vpack.c.bf16 %v190, %v190
  %v195 = vpack.c.bf16 %v191, %v191
  %v196 = vpack.c.bf16 %v192, %v192
  %v197 = vpack.c.bf16 %v193, %v193
  %v198 = vld [vmem:[%s4] sm:$0xff]
  %v199 = vld [vmem:[%s4 + $0x8] sm:$0xff]
  %v200 = vld [vmem:[%s4 + $0x10] sm:$0xff]
  %v201 = vld [vmem:[%s4 + $0x18] sm:$0xff]
  %v202 = vld [vmem:[%s4 + $0x20] sm:$0xff]
  %v203 = vld [vmem:[%s4 + $0x28] sm:$0xff]
  %v204 = vld [vmem:[%s4 + $0x30] sm:$0xff]
  %v205 = vld [vmem:[%s4 + $0x38] sm:$0xff]
  %v206 = vld [vmem:[%s4 + $0x40] sm:$0xff]
  %v207 = vld [vmem:[%s4 + $0x48] sm:$0xff]
  %v208 = vld [vmem:[%s4 + $0x50] sm:$0xff]
  %v209 = vld [vmem:[%s4 + $0x58] sm:$0xff]
  %v210 = vld [vmem:[%s4 + $0x60] sm:$0xff]
  %v211 = vld [vmem:[%s4 + $0x68] sm:$0xff]
  %v212 = vld [vmem:[%s4 + $0x70] sm:$0xff]
  %v213 = vld [vmem:[%s4 + $0x78] sm:$0xff]
  %v214 = vld [vmem:[%s4 + $0x80] sm:$0xff]
  %v215 = vld [vmem:[%s4 + $0x88] sm:$0xff]
  %v216 = vld [vmem:[%s4 + $0x90] sm:$0xff]
  %v217 = vld [vmem:[%s4 + $0x98] sm:$0xff]
  %v218 = vld [vmem:[%s4 + $0xa0] sm:$0xff]
  %v219 = vld [vmem:[%s4 + $0xa8] sm:$0xff]
  %v220 = vld [vmem:[%s4 + $0xb0] sm:$0xff]
  %v221 = vld [vmem:[%s4 + $0xb8] sm:$0xff]
  %v222 = vld [vmem:[%s4 + $0xc0] sm:$0xff]
  %v223 = vld [vmem:[%s4 + $0xc8] sm:$0xff]
  %v224 = vld [vmem:[%s4 + $0xd0] sm:$0xff]
  %v225 = vld [vmem:[%s4 + $0xd8] sm:$0xff]
  %v226 = vld [vmem:[%s4 + $0xe0] sm:$0xff]
  %v227 = vld [vmem:[%s4 + $0xe8] sm:$0xff]
  %v228 = vld [vmem:[%s4 + $0xf0] sm:$0xff]
  %v229 = vld [vmem:[%s4 + $0xf8] sm:$0xff]
  %v230 = vld [vmem:[%s4 + $0x100] sm:$0xff]
  %v231 = vld [vmem:[%s4 + $0x108] sm:$0xff]
  %v232 = vld [vmem:[%s4 + $0x110] sm:$0xff]
  %v233 = vld [vmem:[%s4 + $0x118] sm:$0xff]
  %v234 = vld [vmem:[%s4 + $0x120] sm:$0xff]
  %v235 = vld [vmem:[%s4 + $0x128] sm:$0xff]
  %v236 = vld [vmem:[%s4 + $0x130] sm:$0xff]
  %v237 = vld [vmem:[%s4 + $0x138] sm:$0xff]
  %v238 = vld [vmem:[%s4 + $0x140] sm:$0xff]
  %v239 = vld [vmem:[%s4 + $0x148] sm:$0xff]
  %v240 = vld [vmem:[%s4 + $0x150] sm:$0xff]
  %v241 = vld [vmem:[%s4 + $0x158] sm:$0xff]
  %v242 = vld [vmem:[%s4 + $0x160] sm:$0xff]
  %v243 = vld [vmem:[%s4 + $0x168] sm:$0xff]
  %v244 = vld [vmem:[%s4 + $0x170] sm:$0xff]
  %v245 = vld [vmem:[%s4 + $0x178] sm:$0xff]
  %v246 = vld [vmem:[%s4 + $0x180] sm:$0xff]
  %v247 = vld [vmem:[%s4 + $0x188] sm:$0xff]
  %v248 = vld [vmem:[%s4 + $0x190] sm:$0xff]
  %v249 = vld [vmem:[%s4 + $0x198] sm:$0xff]
  %v250 = vld [vmem:[%s4 + $0x1a0] sm:$0xff]
  %v251 = vld [vmem:[%s4 + $0x1a8] sm:$0xff]
  %v252 = vld [vmem:[%s4 + $0x1b0] sm:$0xff]
  %v253 = vld [vmem:[%s4 + $0x1b8] sm:$0xff]
  %v254 = vld [vmem:[%s4 + $0x1c0] sm:$0xff]
  %v255 = vld [vmem:[%s4 + $0x1c8] sm:$0xff]
  %v256 = vld [vmem:[%s4 + $0x1d0] sm:$0xff]
  %v257 = vld [vmem:[%s4 + $0x1d8] sm:$0xff]
  %v258 = vld [vmem:[%s4 + $0x1e0] sm:$0xff]
  %v259 = vld [vmem:[%s4 + $0x1e8] sm:$0xff]
  %v260 = vld [vmem:[%s4 + $0x1f0] sm:$0xff]
  %v261 = vld [vmem:[%s4 + $0x1f8] sm:$0xff]
  %v262 = vld [vmem:[%s4 + $0x200] sm:$0xff]
  %v263 = vld [vmem:[%s4 + $0x208] sm:$0xff]
  %v264 = vld [vmem:[%s4 + $0x210] sm:$0xff]
  %v265 = vld [vmem:[%s4 + $0x218] sm:$0xff]
  %v266 = vld [vmem:[%s4 + $0x220] sm:$0xff]
  %v267 = vld [vmem:[%s4 + $0x228] sm:$0xff]
  %v268 = vld [vmem:[%s4 + $0x230] sm:$0xff]
  %v269 = vld [vmem:[%s4 + $0x238] sm:$0xff]
  %v270 = vld [vmem:[%s4 + $0x240] sm:$0xff]
  %v271 = vld [vmem:[%s4 + $0x248] sm:$0xff]
  %v272 = vld [vmem:[%s4 + $0x250] sm:$0xff]
  %v273 = vld [vmem:[%s4 + $0x258] sm:$0xff]
  %v274 = vld [vmem:[%s4 + $0x260] sm:$0xff]
  %v275 = vld [vmem:[%s4 + $0x268] sm:$0xff]
  %v276 = vld [vmem:[%s4 + $0x270] sm:$0xff]
  %v277 = vld [vmem:[%s4 + $0x278] sm:$0xff]
  %v278 = vld [vmem:[%s4 + $0x280] sm:$0xff]
  %v279 = vld [vmem:[%s4 + $0x288] sm:$0xff]
  %v280 = vld [vmem:[%s4 + $0x290] sm:$0xff]
  %v281 = vld [vmem:[%s4 + $0x298] sm:$0xff]
  %v282 = vld [vmem:[%s4 + $0x2a0] sm:$0xff]
  %v283 = vld [vmem:[%s4 + $0x2a8] sm:$0xff]
  %v284 = vld [vmem:[%s4 + $0x2b0] sm:$0xff]
  %v285 = vld [vmem:[%s4 + $0x2b8] sm:$0xff]
  %v286 = vld [vmem:[%s4 + $0x2c0] sm:$0xff]
  %v287 = vld [vmem:[%s4 + $0x2c8] sm:$0xff]
  %v288 = vld [vmem:[%s4 + $0x2d0] sm:$0xff]
  %v289 = vld [vmem:[%s4 + $0x2d8] sm:$0xff]
  %v290 = vld [vmem:[%s4 + $0x2e0] sm:$0xff]
  %v291 = vld [vmem:[%s4 + $0x2e8] sm:$0xff]
  %v292 = vld [vmem:[%s4 + $0x2f0] sm:$0xff]
  %v293 = vld [vmem:[%s4 + $0x2f8] sm:$0xff]
  %v294 = vld [vmem:[%s4 + $0x300] sm:$0xff]
  %v295 = vld [vmem:[%s4 + $0x308] sm:$0xff]
  %v296 = vld [vmem:[%s4 + $0x310] sm:$0xff]
  %v297 = vld [vmem:[%s4 + $0x318] sm:$0xff]
  %v298 = vld [vmem:[%s4 + $0x320] sm:$0xff]
  %v299 = vld [vmem:[%s4 + $0x328] sm:$0xff]
  %v300 = vld [vmem:[%s4 + $0x330] sm:$0xff]
  %v301 = vld [vmem:[%s4 + $0x338] sm:$0xff]
  %v302 = vld [vmem:[%s4 + $0x340] sm:$0xff]
  %v303 = vld [vmem:[%s4 + $0x348] sm:$0xff]
  %v304 = vld [vmem:[%s4 + $0x350] sm:$0xff]
  %v305 = vld [vmem:[%s4 + $0x358] sm:$0xff]
  %v306 = vld [vmem:[%s4 + $0x360] sm:$0xff]
  %v307 = vld [vmem:[%s4 + $0x368] sm:$0xff]
  %v308 = vld [vmem:[%s4 + $0x370] sm:$0xff]
  %v309 = vld [vmem:[%s4 + $0x378] sm:$0xff]
  %v310 = vld [vmem:[%s4 + $0x380] sm:$0xff]
  %v311 = vld [vmem:[%s4 + $0x388] sm:$0xff]
  %v312 = vld [vmem:[%s4 + $0x390] sm:$0xff]
  %v313 = vld [vmem:[%s4 + $0x398] sm:$0xff]
  %v314 = vld [vmem:[%s4 + $0x3a0] sm:$0xff]
  %v315 = vld [vmem:[%s4 + $0x3a8] sm:$0xff]
  %v316 = vld [vmem:[%s4 + $0x3b0] sm:$0xff]
  %v317 = vld [vmem:[%s4 + $0x3b8] sm:$0xff]
  %v318 = vld [vmem:[%s4 + $0x3c0] sm:$0xff]
  %v319 = vld [vmem:[%s4 + $0x3c8] sm:$0xff]
  %v320 = vld [vmem:[%s4 + $0x3d0] sm:$0xff]
  %v321 = vld [vmem:[%s4 + $0x3d8] sm:$0xff]
  %v322 = vld [vmem:[%s4 + $0x3e0] sm:$0xff]
  %v323 = vld [vmem:[%s4 + $0x3e8] sm:$0xff]
  %v324 = vld [vmem:[%s4 + $0x3f0] sm:$0xff]
  %v325 = vld [vmem:[%s4 + $0x3f8] sm:$0xff]
  %v326 = vld [vmem:[%s4 + $0x400] sm:$0xff]
  %v327 = vld [vmem:[%s4 + $0x408] sm:$0xff]
  %v328 = vld [vmem:[%s4 + $0x410] sm:$0xff]
  %v329 = vld [vmem:[%s4 + $0x418] sm:$0xff]
  %v330 = vld [vmem:[%s4 + $0x420] sm:$0xff]
  %v331 = vld [vmem:[%s4 + $0x428] sm:$0xff]
  %v332 = vld [vmem:[%s4 + $0x430] sm:$0xff]
  %v333 = vld [vmem:[%s4 + $0x438] sm:$0xff]
  %v334 = vld [vmem:[%s4 + $0x440] sm:$0xff]
  %v335 = vld [vmem:[%s4 + $0x448] sm:$0xff]
  %v336 = vld [vmem:[%s4 + $0x450] sm:$0xff]
  %v337 = vld [vmem:[%s4 + $0x458] sm:$0xff]
  %v338 = vld [vmem:[%s4 + $0x460] sm:$0xff]
  %v339 = vld [vmem:[%s4 + $0x468] sm:$0xff]
  %v340 = vld [vmem:[%s4 + $0x470] sm:$0xff]
  %v341 = vld [vmem:[%s4 + $0x478] sm:$0xff]
  %v342 = vld [vmem:[%s4 + $0x480] sm:$0xff]
  %v343 = vld [vmem:[%s4 + $0x488] sm:$0xff]
  %v344 = vld [vmem:[%s4 + $0x490] sm:$0xff]
  %v345 = vld [vmem:[%s4 + $0x498] sm:$0xff]
  %v346 = vld [vmem:[%s4 + $0x4a0] sm:$0xff]
  %v347 = vld [vmem:[%s4 + $0x4a8] sm:$0xff]
  %v348 = vld [vmem:[%s4 + $0x4b0] sm:$0xff]
  %v349 = vld [vmem:[%s4 + $0x4b8] sm:$0xff]
  %v350 = vld [vmem:[%s4 + $0x4c0] sm:$0xff]
  %v351 = vld [vmem:[%s4 + $0x4c8] sm:$0xff]
  %v352 = vld [vmem:[%s4 + $0x4d0] sm:$0xff]
  %v353 = vld [vmem:[%s4 + $0x4d8] sm:$0xff]
  %v354 = vld [vmem:[%s4 + $0x4e0] sm:$0xff]
  %v355 = vld [vmem:[%s4 + $0x4e8] sm:$0xff]
  %v356 = vld [vmem:[%s4 + $0x4f0] sm:$0xff]
  %v357 = vld [vmem:[%s4 + $0x4f8] sm:$0xff]
  %v358 = vld [vmem:[%s4 + $0x500] sm:$0xff]
  %v359 = vld [vmem:[%s4 + $0x508] sm:$0xff]
  %v360 = vld [vmem:[%s4 + $0x510] sm:$0xff]
  %v361 = vld [vmem:[%s4 + $0x518] sm:$0xff]
  %v362 = vld [vmem:[%s4 + $0x520] sm:$0xff]
  %v363 = vld [vmem:[%s4 + $0x528] sm:$0xff]
  %v364 = vld [vmem:[%s4 + $0x530] sm:$0xff]
  %v365 = vld [vmem:[%s4 + $0x538] sm:$0xff]
  %v366 = vld [vmem:[%s4 + $0x540] sm:$0xff]
  %v367 = vld [vmem:[%s4 + $0x548] sm:$0xff]
  %v368 = vld [vmem:[%s4 + $0x550] sm:$0xff]
  %v369 = vld [vmem:[%s4 + $0x558] sm:$0xff]
  %v370 = vld [vmem:[%s4 + $0x560] sm:$0xff]
  %v371 = vld [vmem:[%s4 + $0x568] sm:$0xff]
  %v372 = vld [vmem:[%s4 + $0x570] sm:$0xff]
  %v373 = vld [vmem:[%s4 + $0x578] sm:$0xff]
  %v374 = vld [vmem:[%s4 + $0x580] sm:$0xff]
  %v375 = vld [vmem:[%s4 + $0x588] sm:$0xff]
  %v376 = vld [vmem:[%s4 + $0x590] sm:$0xff]
  %v377 = vld [vmem:[%s4 + $0x598] sm:$0xff]
  %v378 = vld [vmem:[%s4 + $0x5a0] sm:$0xff]
  %v379 = vld [vmem:[%s4 + $0x5a8] sm:$0xff]
  %v380 = vld [vmem:[%s4 + $0x5b0] sm:$0xff]
  %v381 = vld [vmem:[%s4 + $0x5b8] sm:$0xff]
  %v382 = vld [vmem:[%s4 + $0x5c0] sm:$0xff]
  %v383 = vld [vmem:[%s4 + $0x5c8] sm:$0xff]
  %v384 = vld [vmem:[%s4 + $0x5d0] sm:$0xff]
  %v385 = vld [vmem:[%s4 + $0x5d8] sm:$0xff]
  %v386 = vld [vmem:[%s4 + $0x5e0] sm:$0xff]
  %v387 = vld [vmem:[%s4 + $0x5e8] sm:$0xff]
  %v388 = vld [vmem:[%s4 + $0x5f0] sm:$0xff]
  %v389 = vld [vmem:[%s4 + $0x5f8] sm:$0xff]
  %v390 = vld [vmem:[%s4 + $0x600] sm:$0xff]
  %v391 = vld [vmem:[%s4 + $0x608] sm:$0xff]
  %v392 = vld [vmem:[%s4 + $0x610] sm:$0xff]
  %v393 = vld [vmem:[%s4 + $0x618] sm:$0xff]
  %v394 = vld [vmem:[%s4 + $0x620] sm:$0xff]
  %v395 = vld [vmem:[%s4 + $0x628] sm:$0xff]
  %v396 = vld [vmem:[%s4 + $0x630] sm:$0xff]
  %v397 = vld [vmem:[%s4 + $0x638] sm:$0xff]
  %v398 = vld [vmem:[%s4 + $0x640] sm:$0xff]
  %v399 = vld [vmem:[%s4 + $0x648] sm:$0xff]
  %v400 = vld [vmem:[%s4 + $0x650] sm:$0xff]
  %v401 = vld [vmem:[%s4 + $0x658] sm:$0xff]
  %v402 = vld [vmem:[%s4 + $0x660] sm:$0xff]
  %v403 = vld [vmem:[%s4 + $0x668] sm:$0xff]
  %v404 = vld [vmem:[%s4 + $0x670] sm:$0xff]
  %v405 = vld [vmem:[%s4 + $0x678] sm:$0xff]
  %v406 = vld [vmem:[%s4 + $0x680] sm:$0xff]
  %v407 = vld [vmem:[%s4 + $0x688] sm:$0xff]
  %v408 = vld [vmem:[%s4 + $0x690] sm:$0xff]
  %v409 = vld [vmem:[%s4 + $0x698] sm:$0xff]
  %v410 = vld [vmem:[%s4 + $0x6a0] sm:$0xff]
  %v411 = vld [vmem:[%s4 + $0x6a8] sm:$0xff]
  %v412 = vld [vmem:[%s4 + $0x6b0] sm:$0xff]
  %v413 = vld [vmem:[%s4 + $0x6b8] sm:$0xff]
  %v414 = vld [vmem:[%s4 + $0x6c0] sm:$0xff]
  %v415 = vld [vmem:[%s4 + $0x6c8] sm:$0xff]
  %v416 = vld [vmem:[%s4 + $0x6d0] sm:$0xff]
  %v417 = vld [vmem:[%s4 + $0x6d8] sm:$0xff]
  %v418 = vld [vmem:[%s4 + $0x6e0] sm:$0xff]
  %v419 = vld [vmem:[%s4 + $0x6e8] sm:$0xff]
  %v420 = vld [vmem:[%s4 + $0x6f0] sm:$0xff]
  %v421 = vld [vmem:[%s4 + $0x6f8] sm:$0xff]
  %v422 = vld [vmem:[%s4 + $0x700] sm:$0xff]
  %v423 = vld [vmem:[%s4 + $0x708] sm:$0xff]
  %v424 = vld [vmem:[%s4 + $0x710] sm:$0xff]
  %v425 = vld [vmem:[%s4 + $0x718] sm:$0xff]
  %v426 = vld [vmem:[%s4 + $0x720] sm:$0xff]
  %v427 = vld [vmem:[%s4 + $0x728] sm:$0xff]
  %v428 = vld [vmem:[%s4 + $0x730] sm:$0xff]
  %v429 = vld [vmem:[%s4 + $0x738] sm:$0xff]
  %v430 = vld [vmem:[%s4 + $0x740] sm:$0xff]
  %v431 = vld [vmem:[%s4 + $0x748] sm:$0xff]
  %v432 = vld [vmem:[%s4 + $0x750] sm:$0xff]
  %v433 = vld [vmem:[%s4 + $0x758] sm:$0xff]
  %v434 = vld [vmem:[%s4 + $0x760] sm:$0xff]
  %v435 = vld [vmem:[%s4 + $0x768] sm:$0xff]
  %v436 = vld [vmem:[%s4 + $0x770] sm:$0xff]
  %v437 = vld [vmem:[%s4 + $0x778] sm:$0xff]
  %v438 = vld [vmem:[%s4 + $0x780] sm:$0xff]
  %v439 = vld [vmem:[%s4 + $0x788] sm:$0xff]
  %v440 = vld [vmem:[%s4 + $0x790] sm:$0xff]
  %v441 = vld [vmem:[%s4 + $0x798] sm:$0xff]
  %v442 = vld [vmem:[%s4 + $0x7a0] sm:$0xff]
  %v443 = vld [vmem:[%s4 + $0x7a8] sm:$0xff]
  %v444 = vld [vmem:[%s4 + $0x7b0] sm:$0xff]
  %v445 = vld [vmem:[%s4 + $0x7b8] sm:$0xff]
  %v446 = vld [vmem:[%s4 + $0x7c0] sm:$0xff]
  %v447 = vld [vmem:[%s4 + $0x7c8] sm:$0xff]
  %v448 = vld [vmem:[%s4 + $0x7d0] sm:$0xff]
  %v449 = vld [vmem:[%s4 + $0x7d8] sm:$0xff]
  %v450 = vld [vmem:[%s4 + $0x7e0] sm:$0xff]
  %v451 = vld [vmem:[%s4 + $0x7e8] sm:$0xff]
  %v452 = vld [vmem:[%s4 + $0x7f0] sm:$0xff]
  %v453 = vld [vmem:[%s4 + $0x7f8] sm:$0xff]
  %v710 = vunpack.c.l.b16 %v198
  %v711 = vunpack.c.h.b16 %v198
  %v712 = vunpack.c.l.b16 %v199
  %v713 = vunpack.c.h.b16 %v199
  %v714 = vunpack.c.l.b16 %v200
  %v715 = vunpack.c.h.b16 %v200
  %v716 = vunpack.c.l.b16 %v201
  %v717 = vunpack.c.h.b16 %v201
  %v718 = vunpack.c.l.b16 %v202
  %v719 = vunpack.c.h.b16 %v202
  %v720 = vunpack.c.l.b16 %v203
  %v721 = vunpack.c.h.b16 %v203
  %v722 = vunpack.c.l.b16 %v204
  %v723 = vunpack.c.h.b16 %v204
  %v724 = vunpack.c.l.b16 %v205
  %v725 = vunpack.c.h.b16 %v205
  %v726 = vunpack.c.l.b16 %v206
  %v727 = vunpack.c.h.b16 %v206
  %v728 = vunpack.c.l.b16 %v207
  %v729 = vunpack.c.h.b16 %v207
  %v730 = vunpack.c.l.b16 %v208
  %v731 = vunpack.c.h.b16 %v208
  %v732 = vunpack.c.l.b16 %v209
  %v733 = vunpack.c.h.b16 %v209
  %v734 = vunpack.c.l.b16 %v210
  %v735 = vunpack.c.h.b16 %v210
  %v736 = vunpack.c.l.b16 %v211
  %v737 = vunpack.c.h.b16 %v211
  %v738 = vunpack.c.l.b16 %v212
  %v739 = vunpack.c.h.b16 %v212
  %v740 = vunpack.c.l.b16 %v213
  %v741 = vunpack.c.h.b16 %v213
  %v742 = vunpack.c.l.b16 %v214
  %v743 = vunpack.c.h.b16 %v214
  %v744 = vunpack.c.l.b16 %v215
  %v745 = vunpack.c.h.b16 %v215
  %v746 = vunpack.c.l.b16 %v216
  %v747 = vunpack.c.h.b16 %v216
  %v748 = vunpack.c.l.b16 %v217
  %v749 = vunpack.c.h.b16 %v217
  %v750 = vunpack.c.l.b16 %v218
  %v751 = vunpack.c.h.b16 %v218
  %v752 = vunpack.c.l.b16 %v219
  %v753 = vunpack.c.h.b16 %v219
  %v754 = vunpack.c.l.b16 %v220
  %v755 = vunpack.c.h.b16 %v220
  %v756 = vunpack.c.l.b16 %v221
  %v757 = vunpack.c.h.b16 %v221
  %v758 = vunpack.c.l.b16 %v222
  %v759 = vunpack.c.h.b16 %v222
  %v760 = vunpack.c.l.b16 %v223
  %v761 = vunpack.c.h.b16 %v223
  %v762 = vunpack.c.l.b16 %v224
  %v763 = vunpack.c.h.b16 %v224
  %v764 = vunpack.c.l.b16 %v225
  %v765 = vunpack.c.h.b16 %v225
  %v766 = vunpack.c.l.b16 %v226
  %v767 = vunpack.c.h.b16 %v226
  %v768 = vunpack.c.l.b16 %v227
  %v769 = vunpack.c.h.b16 %v227
  %v770 = vunpack.c.l.b16 %v228
  %v771 = vunpack.c.h.b16 %v228
  %v772 = vunpack.c.l.b16 %v229
  %v773 = vunpack.c.h.b16 %v229
  %v774 = vunpack.c.l.b16 %v230
  %v775 = vunpack.c.h.b16 %v230
  %v776 = vunpack.c.l.b16 %v231
  %v777 = vunpack.c.h.b16 %v231
  %v778 = vunpack.c.l.b16 %v232
  %v779 = vunpack.c.h.b16 %v232
  %v780 = vunpack.c.l.b16 %v233
  %v781 = vunpack.c.h.b16 %v233
  %v782 = vunpack.c.l.b16 %v234
  %v783 = vunpack.c.h.b16 %v234
  %v784 = vunpack.c.l.b16 %v235
  %v785 = vunpack.c.h.b16 %v235
  %v786 = vunpack.c.l.b16 %v236
  %v787 = vunpack.c.h.b16 %v236
  %v788 = vunpack.c.l.b16 %v237
  %v789 = vunpack.c.h.b16 %v237
  %v790 = vunpack.c.l.b16 %v238
  %v791 = vunpack.c.h.b16 %v238
  %v792 = vunpack.c.l.b16 %v239
  %v793 = vunpack.c.h.b16 %v239
  %v794 = vunpack.c.l.b16 %v240
  %v795 = vunpack.c.h.b16 %v240
  %v796 = vunpack.c.l.b16 %v241
  %v797 = vunpack.c.h.b16 %v241
  %v798 = vunpack.c.l.b16 %v242
  %v799 = vunpack.c.h.b16 %v242
  %v800 = vunpack.c.l.b16 %v243
  %v801 = vunpack.c.h.b16 %v243
  %v802 = vunpack.c.l.b16 %v244
  %v803 = vunpack.c.h.b16 %v244
  %v804 = vunpack.c.l.b16 %v245
  %v805 = vunpack.c.h.b16 %v245
  %v806 = vunpack.c.l.b16 %v246
  %v807 = vunpack.c.h.b16 %v246
  %v808 = vunpack.c.l.b16 %v247
  %v809 = vunpack.c.h.b16 %v247
  %v810 = vunpack.c.l.b16 %v248
  %v811 = vunpack.c.h.b16 %v248
  %v812 = vunpack.c.l.b16 %v249
  %v813 = vunpack.c.h.b16 %v249
  %v814 = vunpack.c.l.b16 %v250
  %v815 = vunpack.c.h.b16 %v250
  %v816 = vunpack.c.l.b16 %v251
  %v817 = vunpack.c.h.b16 %v251
  %v818 = vunpack.c.l.b16 %v252
  %v819 = vunpack.c.h.b16 %v252
  %v820 = vunpack.c.l.b16 %v253
  %v821 = vunpack.c.h.b16 %v253
  %v822 = vunpack.c.l.b16 %v254
  %v823 = vunpack.c.h.b16 %v254
  %v824 = vunpack.c.l.b16 %v255
  %v825 = vunpack.c.h.b16 %v255
  %v826 = vunpack.c.l.b16 %v256
  %v827 = vunpack.c.h.b16 %v256
  %v828 = vunpack.c.l.b16 %v257
  %v829 = vunpack.c.h.b16 %v257
  %v830 = vunpack.c.l.b16 %v258
  %v831 = vunpack.c.h.b16 %v258
  %v832 = vunpack.c.l.b16 %v259
  %v833 = vunpack.c.h.b16 %v259
  %v834 = vunpack.c.l.b16 %v260
  %v835 = vunpack.c.h.b16 %v260
  %v836 = vunpack.c.l.b16 %v261
  %v837 = vunpack.c.h.b16 %v261
  %v838 = vunpack.c.l.b16 %v262
  %v839 = vunpack.c.h.b16 %v262
  %v840 = vunpack.c.l.b16 %v263
  %v841 = vunpack.c.h.b16 %v263
  %v842 = vunpack.c.l.b16 %v264
  %v843 = vunpack.c.h.b16 %v264
  %v844 = vunpack.c.l.b16 %v265
  %v845 = vunpack.c.h.b16 %v265
  %v846 = vunpack.c.l.b16 %v266
  %v847 = vunpack.c.h.b16 %v266
  %v848 = vunpack.c.l.b16 %v267
  %v849 = vunpack.c.h.b16 %v267
  %v850 = vunpack.c.l.b16 %v268
  %v851 = vunpack.c.h.b16 %v268
  %v852 = vunpack.c.l.b16 %v269
  %v853 = vunpack.c.h.b16 %v269
  %v854 = vunpack.c.l.b16 %v270
  %v855 = vunpack.c.h.b16 %v270
  %v856 = vunpack.c.l.b16 %v271
  %v857 = vunpack.c.h.b16 %v271
  %v858 = vunpack.c.l.b16 %v272
  %v859 = vunpack.c.h.b16 %v272
  %v860 = vunpack.c.l.b16 %v273
  %v861 = vunpack.c.h.b16 %v273
  %v862 = vunpack.c.l.b16 %v274
  %v863 = vunpack.c.h.b16 %v274
  %v864 = vunpack.c.l.b16 %v275
  %v865 = vunpack.c.h.b16 %v275
  %v866 = vunpack.c.l.b16 %v276
  %v867 = vunpack.c.h.b16 %v276
  %v868 = vunpack.c.l.b16 %v277
  %v869 = vunpack.c.h.b16 %v277
  %v870 = vunpack.c.l.b16 %v278
  %v871 = vunpack.c.h.b16 %v278
  %v872 = vunpack.c.l.b16 %v279
  %v873 = vunpack.c.h.b16 %v279
  %v874 = vunpack.c.l.b16 %v280
  %v875 = vunpack.c.h.b16 %v280
  %v876 = vunpack.c.l.b16 %v281
  %v877 = vunpack.c.h.b16 %v281
  %v878 = vunpack.c.l.b16 %v282
  %v879 = vunpack.c.h.b16 %v282
  %v880 = vunpack.c.l.b16 %v283
  %v881 = vunpack.c.h.b16 %v283
  %v882 = vunpack.c.l.b16 %v284
  %v883 = vunpack.c.h.b16 %v284
  %v884 = vunpack.c.l.b16 %v285
  %v885 = vunpack.c.h.b16 %v285
  %v886 = vunpack.c.l.b16 %v286
  %v887 = vunpack.c.h.b16 %v286
  %v888 = vunpack.c.l.b16 %v287
  %v889 = vunpack.c.h.b16 %v287
  %v890 = vunpack.c.l.b16 %v288
  %v891 = vunpack.c.h.b16 %v288
  %v892 = vunpack.c.l.b16 %v289
  %v893 = vunpack.c.h.b16 %v289
  %v894 = vunpack.c.l.b16 %v290
  %v895 = vunpack.c.h.b16 %v290
  %v896 = vunpack.c.l.b16 %v291
  %v897 = vunpack.c.h.b16 %v291
  %v898 = vunpack.c.l.b16 %v292
  %v899 = vunpack.c.h.b16 %v292
  %v900 = vunpack.c.l.b16 %v293
  %v901 = vunpack.c.h.b16 %v293
  %v902 = vunpack.c.l.b16 %v294
  %v903 = vunpack.c.h.b16 %v294
  %v904 = vunpack.c.l.b16 %v295
  %v905 = vunpack.c.h.b16 %v295
  %v906 = vunpack.c.l.b16 %v296
  %v907 = vunpack.c.h.b16 %v296
  %v908 = vunpack.c.l.b16 %v297
  %v909 = vunpack.c.h.b16 %v297
  %v910 = vunpack.c.l.b16 %v298
  %v911 = vunpack.c.h.b16 %v298
  %v912 = vunpack.c.l.b16 %v299
  %v913 = vunpack.c.h.b16 %v299
  %v914 = vunpack.c.l.b16 %v300
  %v915 = vunpack.c.h.b16 %v300
  %v916 = vunpack.c.l.b16 %v301
  %v917 = vunpack.c.h.b16 %v301
  %v918 = vunpack.c.l.b16 %v302
  %v919 = vunpack.c.h.b16 %v302
  %v920 = vunpack.c.l.b16 %v303
  %v921 = vunpack.c.h.b16 %v303
  %v922 = vunpack.c.l.b16 %v304
  %v923 = vunpack.c.h.b16 %v304
  %v924 = vunpack.c.l.b16 %v305
  %v925 = vunpack.c.h.b16 %v305
  %v926 = vunpack.c.l.b16 %v306
  %v927 = vunpack.c.h.b16 %v306
  %v928 = vunpack.c.l.b16 %v307
  %v929 = vunpack.c.h.b16 %v307
  %v930 = vunpack.c.l.b16 %v308
  %v931 = vunpack.c.h.b16 %v308
  %v932 = vunpack.c.l.b16 %v309
  %v933 = vunpack.c.h.b16 %v309
  %v934 = vunpack.c.l.b16 %v310
  %v935 = vunpack.c.h.b16 %v310
  %v936 = vunpack.c.l.b16 %v311
  %v937 = vunpack.c.h.b16 %v311
  %v938 = vunpack.c.l.b16 %v312
  %v939 = vunpack.c.h.b16 %v312
  %v940 = vunpack.c.l.b16 %v313
  %v941 = vunpack.c.h.b16 %v313
  %v942 = vunpack.c.l.b16 %v314
  %v943 = vunpack.c.h.b16 %v314
  %v944 = vunpack.c.l.b16 %v315
  %v945 = vunpack.c.h.b16 %v315
  %v946 = vunpack.c.l.b16 %v316
  %v947 = vunpack.c.h.b16 %v316
  %v948 = vunpack.c.l.b16 %v317
  %v949 = vunpack.c.h.b16 %v317
  %v950 = vunpack.c.l.b16 %v318
  %v951 = vunpack.c.h.b16 %v318
  %v952 = vunpack.c.l.b16 %v319
  %v953 = vunpack.c.h.b16 %v319
  %v954 = vunpack.c.l.b16 %v320
  %v955 = vunpack.c.h.b16 %v320
  %v956 = vunpack.c.l.b16 %v321
  %v957 = vunpack.c.h.b16 %v321
  %v958 = vunpack.c.l.b16 %v322
  %v959 = vunpack.c.h.b16 %v322
  %v960 = vunpack.c.l.b16 %v323
  %v961 = vunpack.c.h.b16 %v323
  %v962 = vunpack.c.l.b16 %v324
  %v963 = vunpack.c.h.b16 %v324
  %v964 = vunpack.c.l.b16 %v325
  %v965 = vunpack.c.h.b16 %v325
  %v966 = vunpack.c.l.b16 %v326
  %v967 = vunpack.c.h.b16 %v326
  %v968 = vunpack.c.l.b16 %v327
  %v969 = vunpack.c.h.b16 %v327
  %v970 = vunpack.c.l.b16 %v328
  %v971 = vunpack.c.h.b16 %v328
  %v972 = vunpack.c.l.b16 %v329
  %v973 = vunpack.c.h.b16 %v329
  %v974 = vunpack.c.l.b16 %v330
  %v975 = vunpack.c.h.b16 %v330
  %v976 = vunpack.c.l.b16 %v331
  %v977 = vunpack.c.h.b16 %v331
  %v978 = vunpack.c.l.b16 %v332
  %v979 = vunpack.c.h.b16 %v332
  %v980 = vunpack.c.l.b16 %v333
  %v981 = vunpack.c.h.b16 %v333
  %v982 = vunpack.c.l.b16 %v334
  %v983 = vunpack.c.h.b16 %v334
  %v984 = vunpack.c.l.b16 %v335
  %v985 = vunpack.c.h.b16 %v335
  %v986 = vunpack.c.l.b16 %v336
  %v987 = vunpack.c.h.b16 %v336
  %v988 = vunpack.c.l.b16 %v337
  %v989 = vunpack.c.h.b16 %v337
  %v990 = vunpack.c.l.b16 %v338
  %v991 = vunpack.c.h.b16 %v338
  %v992 = vunpack.c.l.b16 %v339
  %v993 = vunpack.c.h.b16 %v339
  %v994 = vunpack.c.l.b16 %v340
  %v995 = vunpack.c.h.b16 %v340
  %v996 = vunpack.c.l.b16 %v341
  %v997 = vunpack.c.h.b16 %v341
  %v998 = vunpack.c.l.b16 %v342
  %v999 = vunpack.c.h.b16 %v342
  %v1000 = vunpack.c.l.b16 %v343
  %v1001 = vunpack.c.h.b16 %v343
  %v1002 = vunpack.c.l.b16 %v344
  %v1003 = vunpack.c.h.b16 %v344
  %v1004 = vunpack.c.l.b16 %v345
  %v1005 = vunpack.c.h.b16 %v345
  %v1006 = vunpack.c.l.b16 %v346
  %v1007 = vunpack.c.h.b16 %v346
  %v1008 = vunpack.c.l.b16 %v347
  %v1009 = vunpack.c.h.b16 %v347
  %v1010 = vunpack.c.l.b16 %v348
  %v1011 = vunpack.c.h.b16 %v348
  %v1012 = vunpack.c.l.b16 %v349
  %v1013 = vunpack.c.h.b16 %v349
  %v1014 = vunpack.c.l.b16 %v350
  %v1015 = vunpack.c.h.b16 %v350
  %v1016 = vunpack.c.l.b16 %v351
  %v1017 = vunpack.c.h.b16 %v351
  %v1018 = vunpack.c.l.b16 %v352
  %v1019 = vunpack.c.h.b16 %v352
  %v1020 = vunpack.c.l.b16 %v353
  %v1021 = vunpack.c.h.b16 %v353
  %v1022 = vunpack.c.l.b16 %v354
  %v1023 = vunpack.c.h.b16 %v354
  %v1024 = vunpack.c.l.b16 %v355
  %v1025 = vunpack.c.h.b16 %v355
  %v1026 = vunpack.c.l.b16 %v356
  %v1027 = vunpack.c.h.b16 %v356
  %v1028 = vunpack.c.l.b16 %v357
  %v1029 = vunpack.c.h.b16 %v357
  %v1030 = vunpack.c.l.b16 %v358
  %v1031 = vunpack.c.h.b16 %v358
  %v1032 = vunpack.c.l.b16 %v359
  %v1033 = vunpack.c.h.b16 %v359
  %v1034 = vunpack.c.l.b16 %v360
  %v1035 = vunpack.c.h.b16 %v360
  %v1036 = vunpack.c.l.b16 %v361
  %v1037 = vunpack.c.h.b16 %v361
  %v1038 = vunpack.c.l.b16 %v362
  %v1039 = vunpack.c.h.b16 %v362
  %v1040 = vunpack.c.l.b16 %v363
  %v1041 = vunpack.c.h.b16 %v363
  %v1042 = vunpack.c.l.b16 %v364
  %v1043 = vunpack.c.h.b16 %v364
  %v1044 = vunpack.c.l.b16 %v365
  %v1045 = vunpack.c.h.b16 %v365
  %v1046 = vunpack.c.l.b16 %v366
  %v1047 = vunpack.c.h.b16 %v366
  %v1048 = vunpack.c.l.b16 %v367
  %v1049 = vunpack.c.h.b16 %v367
  %v1050 = vunpack.c.l.b16 %v368
  %v1051 = vunpack.c.h.b16 %v368
  %v1052 = vunpack.c.l.b16 %v369
  %v1053 = vunpack.c.h.b16 %v369
  %v1054 = vunpack.c.l.b16 %v370
  %v1055 = vunpack.c.h.b16 %v370
  %v1056 = vunpack.c.l.b16 %v371
  %v1057 = vunpack.c.h.b16 %v371
  %v1058 = vunpack.c.l.b16 %v372
  %v1059 = vunpack.c.h.b16 %v372
  %v1060 = vunpack.c.l.b16 %v373
  %v1061 = vunpack.c.h.b16 %v373
  %v1062 = vunpack.c.l.b16 %v374
  %v1063 = vunpack.c.h.b16 %v374
  %v1064 = vunpack.c.l.b16 %v375
  %v1065 = vunpack.c.h.b16 %v375
  %v1066 = vunpack.c.l.b16 %v376
  %v1067 = vunpack.c.h.b16 %v376
  %v1068 = vunpack.c.l.b16 %v377
  %v1069 = vunpack.c.h.b16 %v377
  %v1070 = vunpack.c.l.b16 %v378
  %v1071 = vunpack.c.h.b16 %v378
  %v1072 = vunpack.c.l.b16 %v379
  %v1073 = vunpack.c.h.b16 %v379
  %v1074 = vunpack.c.l.b16 %v380
  %v1075 = vunpack.c.h.b16 %v380
  %v1076 = vunpack.c.l.b16 %v381
  %v1077 = vunpack.c.h.b16 %v381
  %v1078 = vunpack.c.l.b16 %v382
  %v1079 = vunpack.c.h.b16 %v382
  %v1080 = vunpack.c.l.b16 %v383
  %v1081 = vunpack.c.h.b16 %v383
  %v1082 = vunpack.c.l.b16 %v384
  %v1083 = vunpack.c.h.b16 %v384
  %v1084 = vunpack.c.l.b16 %v385
  %v1085 = vunpack.c.h.b16 %v385
  %v1086 = vunpack.c.l.b16 %v386
  %v1087 = vunpack.c.h.b16 %v386
  %v1088 = vunpack.c.l.b16 %v387
  %v1089 = vunpack.c.h.b16 %v387
  %v1090 = vunpack.c.l.b16 %v388
  %v1091 = vunpack.c.h.b16 %v388
  %v1092 = vunpack.c.l.b16 %v389
  %v1093 = vunpack.c.h.b16 %v389
  %v1094 = vunpack.c.l.b16 %v390
  %v1095 = vunpack.c.h.b16 %v390
  %v1096 = vunpack.c.l.b16 %v391
  %v1097 = vunpack.c.h.b16 %v391
  %v1098 = vunpack.c.l.b16 %v392
  %v1099 = vunpack.c.h.b16 %v392
  %v1100 = vunpack.c.l.b16 %v393
  %v1101 = vunpack.c.h.b16 %v393
  %v1102 = vunpack.c.l.b16 %v394
  %v1103 = vunpack.c.h.b16 %v394
  %v1104 = vunpack.c.l.b16 %v395
  %v1105 = vunpack.c.h.b16 %v395
  %v1106 = vunpack.c.l.b16 %v396
  %v1107 = vunpack.c.h.b16 %v396
  %v1108 = vunpack.c.l.b16 %v397
  %v1109 = vunpack.c.h.b16 %v397
  %v1110 = vunpack.c.l.b16 %v398
  %v1111 = vunpack.c.h.b16 %v398
  %v1112 = vunpack.c.l.b16 %v399
  %v1113 = vunpack.c.h.b16 %v399
  %v1114 = vunpack.c.l.b16 %v400
  %v1115 = vunpack.c.h.b16 %v400
  %v1116 = vunpack.c.l.b16 %v401
  %v1117 = vunpack.c.h.b16 %v401
  %v1118 = vunpack.c.l.b16 %v402
  %v1119 = vunpack.c.h.b16 %v402
  %v1120 = vunpack.c.l.b16 %v403
  %v1121 = vunpack.c.h.b16 %v403
  %v1122 = vunpack.c.l.b16 %v404
  %v1123 = vunpack.c.h.b16 %v404
  %v1124 = vunpack.c.l.b16 %v405
  %v1125 = vunpack.c.h.b16 %v405
  %v1126 = vunpack.c.l.b16 %v406
  %v1127 = vunpack.c.h.b16 %v406
  %v1128 = vunpack.c.l.b16 %v407
  %v1129 = vunpack.c.h.b16 %v407
  %v1130 = vunpack.c.l.b16 %v408
  %v1131 = vunpack.c.h.b16 %v408
  %v1132 = vunpack.c.l.b16 %v409
  %v1133 = vunpack.c.h.b16 %v409
  %v1134 = vunpack.c.l.b16 %v410
  %v1135 = vunpack.c.h.b16 %v410
  %v1136 = vunpack.c.l.b16 %v411
  %v1137 = vunpack.c.h.b16 %v411
  %v1138 = vunpack.c.l.b16 %v412
  %v1139 = vunpack.c.h.b16 %v412
  %v1140 = vunpack.c.l.b16 %v413
  %v1141 = vunpack.c.h.b16 %v413
  %v1142 = vunpack.c.l.b16 %v414
  %v1143 = vunpack.c.h.b16 %v414
  %v1144 = vunpack.c.l.b16 %v415
  %v1145 = vunpack.c.h.b16 %v415
  %v1146 = vunpack.c.l.b16 %v416
  %v1147 = vunpack.c.h.b16 %v416
  %v1148 = vunpack.c.l.b16 %v417
  %v1149 = vunpack.c.h.b16 %v417
  %v1150 = vunpack.c.l.b16 %v418
  %v1151 = vunpack.c.h.b16 %v418
  %v1152 = vunpack.c.l.b16 %v419
  %v1153 = vunpack.c.h.b16 %v419
  %v1154 = vunpack.c.l.b16 %v420
  %v1155 = vunpack.c.h.b16 %v420
  %v1156 = vunpack.c.l.b16 %v421
  %v1157 = vunpack.c.h.b16 %v421
  %v1158 = vunpack.c.l.b16 %v422
  %v1159 = vunpack.c.h.b16 %v422
  %v1160 = vunpack.c.l.b16 %v423
  %v1161 = vunpack.c.h.b16 %v423
  %v1162 = vunpack.c.l.b16 %v424
  %v1163 = vunpack.c.h.b16 %v424
  %v1164 = vunpack.c.l.b16 %v425
  %v1165 = vunpack.c.h.b16 %v425
  %v1166 = vunpack.c.l.b16 %v426
  %v1167 = vunpack.c.h.b16 %v426
  %v1168 = vunpack.c.l.b16 %v427
  %v1169 = vunpack.c.h.b16 %v427
  %v1170 = vunpack.c.l.b16 %v428
  %v1171 = vunpack.c.h.b16 %v428
  %v1172 = vunpack.c.l.b16 %v429
  %v1173 = vunpack.c.h.b16 %v429
  %v1174 = vunpack.c.l.b16 %v430
  %v1175 = vunpack.c.h.b16 %v430
  %v1176 = vunpack.c.l.b16 %v431
  %v1177 = vunpack.c.h.b16 %v431
  %v1178 = vunpack.c.l.b16 %v432
  %v1179 = vunpack.c.h.b16 %v432
  %v1180 = vunpack.c.l.b16 %v433
  %v1181 = vunpack.c.h.b16 %v433
  %v1182 = vunpack.c.l.b16 %v434
  %v1183 = vunpack.c.h.b16 %v434
  %v1184 = vunpack.c.l.b16 %v435
  %v1185 = vunpack.c.h.b16 %v435
  %v1186 = vunpack.c.l.b16 %v436
  %v1187 = vunpack.c.h.b16 %v436
  %v1188 = vunpack.c.l.b16 %v437
  %v1189 = vunpack.c.h.b16 %v437
  %v1190 = vunpack.c.l.b16 %v438
  %v1191 = vunpack.c.h.b16 %v438
  %v1192 = vunpack.c.l.b16 %v439
  %v1193 = vunpack.c.h.b16 %v439
  %v1194 = vunpack.c.l.b16 %v440
  %v1195 = vunpack.c.h.b16 %v440
  %v1196 = vunpack.c.l.b16 %v441
  %v1197 = vunpack.c.h.b16 %v441
  %v1198 = vunpack.c.l.b16 %v442
  %v1199 = vunpack.c.h.b16 %v442
  %v1200 = vunpack.c.l.b16 %v443
  %v1201 = vunpack.c.h.b16 %v443
  %v1202 = vunpack.c.l.b16 %v444
  %v1203 = vunpack.c.h.b16 %v444
  %v1204 = vunpack.c.l.b16 %v445
  %v1205 = vunpack.c.h.b16 %v445
  %v1206 = vunpack.c.l.b16 %v446
  %v1207 = vunpack.c.h.b16 %v446
  %v1208 = vunpack.c.l.b16 %v447
  %v1209 = vunpack.c.h.b16 %v447
  %v1210 = vunpack.c.l.b16 %v448
  %v1211 = vunpack.c.h.b16 %v448
  %v1212 = vunpack.c.l.b16 %v449
  %v1213 = vunpack.c.h.b16 %v449
  %v1214 = vunpack.c.l.b16 %v450
  %v1215 = vunpack.c.h.b16 %v450
  %v1216 = vunpack.c.l.b16 %v451
  %v1217 = vunpack.c.h.b16 %v451
  %v1218 = vunpack.c.l.b16 %v452
  %v1219 = vunpack.c.h.b16 %v452
  %v1220 = vunpack.c.l.b16 %v453
  %v1221 = vunpack.c.h.b16 %v453
  %v1222 = vpack.c.b16 %v718, %v710
  %v1223 = vpack.c.b16 %v719, %v711
  %v1224 = vpack.c.b16 %v720, %v712
  %v1225 = vpack.c.b16 %v721, %v713
  %v1226 = vpack.c.b16 %v722, %v714
  %v1227 = vpack.c.b16 %v723, %v715
  %v1228 = vpack.c.b16 %v724, %v716
  %v1229 = vpack.c.b16 %v725, %v717
  %v1230 = vpack.c.b16 %v734, %v726
  %v1231 = vpack.c.b16 %v735, %v727
  %v1232 = vpack.c.b16 %v736, %v728
  %v1233 = vpack.c.b16 %v737, %v729
  %v1234 = vpack.c.b16 %v738, %v730
  %v1235 = vpack.c.b16 %v739, %v731
  %v1236 = vpack.c.b16 %v740, %v732
  %v1237 = vpack.c.b16 %v741, %v733
  %v1238 = vpack.c.b16 %v750, %v742
  %v1239 = vpack.c.b16 %v751, %v743
  %v1240 = vpack.c.b16 %v752, %v744
  %v1241 = vpack.c.b16 %v753, %v745
  %v1242 = vpack.c.b16 %v754, %v746
  %v1243 = vpack.c.b16 %v755, %v747
  %v1244 = vpack.c.b16 %v756, %v748
  %v1245 = vpack.c.b16 %v757, %v749
  %v1246 = vpack.c.b16 %v766, %v758
  %v1247 = vpack.c.b16 %v767, %v759
  %v1248 = vpack.c.b16 %v768, %v760
  %v1249 = vpack.c.b16 %v769, %v761
  %v1250 = vpack.c.b16 %v770, %v762
  %v1251 = vpack.c.b16 %v771, %v763
  %v1252 = vpack.c.b16 %v772, %v764
  %v1253 = vpack.c.b16 %v773, %v765
  %v1254 = vpack.c.b16 %v782, %v774
  %v1255 = vpack.c.b16 %v783, %v775
  %v1256 = vpack.c.b16 %v784, %v776
  %v1257 = vpack.c.b16 %v785, %v777
  %v1258 = vpack.c.b16 %v786, %v778
  %v1259 = vpack.c.b16 %v787, %v779
  %v1260 = vpack.c.b16 %v788, %v780
  %v1261 = vpack.c.b16 %v789, %v781
  %v1262 = vpack.c.b16 %v798, %v790
  %v1263 = vpack.c.b16 %v799, %v791
  %v1264 = vpack.c.b16 %v800, %v792
  %v1265 = vpack.c.b16 %v801, %v793
  %v1266 = vpack.c.b16 %v802, %v794
  %v1267 = vpack.c.b16 %v803, %v795
  %v1268 = vpack.c.b16 %v804, %v796
  %v1269 = vpack.c.b16 %v805, %v797
  %v1270 = vpack.c.b16 %v814, %v806
  %v1271 = vpack.c.b16 %v815, %v807
  %v1272 = vpack.c.b16 %v816, %v808
  %v1273 = vpack.c.b16 %v817, %v809
  %v1274 = vpack.c.b16 %v818, %v810
  %v1275 = vpack.c.b16 %v819, %v811
  %v1276 = vpack.c.b16 %v820, %v812
  %v1277 = vpack.c.b16 %v821, %v813
  %v1278 = vpack.c.b16 %v830, %v822
  %v1279 = vpack.c.b16 %v831, %v823
  %v1280 = vpack.c.b16 %v832, %v824
  %v1281 = vpack.c.b16 %v833, %v825
  %v1282 = vpack.c.b16 %v834, %v826
  %v1283 = vpack.c.b16 %v835, %v827
  %v1284 = vpack.c.b16 %v836, %v828
  %v1285 = vpack.c.b16 %v837, %v829
  %v1286 = vpack.c.b16 %v846, %v838
  %v1287 = vpack.c.b16 %v847, %v839
  %v1288 = vpack.c.b16 %v848, %v840
  %v1289 = vpack.c.b16 %v849, %v841
  %v1290 = vpack.c.b16 %v850, %v842
  %v1291 = vpack.c.b16 %v851, %v843
  %v1292 = vpack.c.b16 %v852, %v844
  %v1293 = vpack.c.b16 %v853, %v845
  %v1294 = vpack.c.b16 %v862, %v854
  %v1295 = vpack.c.b16 %v863, %v855
  %v1296 = vpack.c.b16 %v864, %v856
  %v1297 = vpack.c.b16 %v865, %v857
  %v1298 = vpack.c.b16 %v866, %v858
  %v1299 = vpack.c.b16 %v867, %v859
  %v1300 = vpack.c.b16 %v868, %v860
  %v1301 = vpack.c.b16 %v869, %v861
  %v1302 = vpack.c.b16 %v878, %v870
  %v1303 = vpack.c.b16 %v879, %v871
  %v1304 = vpack.c.b16 %v880, %v872
  %v1305 = vpack.c.b16 %v881, %v873
  %v1306 = vpack.c.b16 %v882, %v874
  %v1307 = vpack.c.b16 %v883, %v875
  %v1308 = vpack.c.b16 %v884, %v876
  %v1309 = vpack.c.b16 %v885, %v877
  %v1310 = vpack.c.b16 %v894, %v886
  %v1311 = vpack.c.b16 %v895, %v887
  %v1312 = vpack.c.b16 %v896, %v888
  %v1313 = vpack.c.b16 %v897, %v889
  %v1314 = vpack.c.b16 %v898, %v890
  %v1315 = vpack.c.b16 %v899, %v891
  %v1316 = vpack.c.b16 %v900, %v892
  %v1317 = vpack.c.b16 %v901, %v893
  %v1318 = vpack.c.b16 %v910, %v902
  %v1319 = vpack.c.b16 %v911, %v903
  %v1320 = vpack.c.b16 %v912, %v904
  %v1321 = vpack.c.b16 %v913, %v905
  %v1322 = vpack.c.b16 %v914, %v906
  %v1323 = vpack.c.b16 %v915, %v907
  %v1324 = vpack.c.b16 %v916, %v908
  %v1325 = vpack.c.b16 %v917, %v909
  %v1326 = vpack.c.b16 %v926, %v918
  %v1327 = vpack.c.b16 %v927, %v919
  %v1328 = vpack.c.b16 %v928, %v920
  %v1329 = vpack.c.b16 %v929, %v921
  %v1330 = vpack.c.b16 %v930, %v922
  %v1331 = vpack.c.b16 %v931, %v923
  %v1332 = vpack.c.b16 %v932, %v924
  %v1333 = vpack.c.b16 %v933, %v925
  %v1334 = vpack.c.b16 %v942, %v934
  %v1335 = vpack.c.b16 %v943, %v935
  %v1336 = vpack.c.b16 %v944, %v936
  %v1337 = vpack.c.b16 %v945, %v937
  %v1338 = vpack.c.b16 %v946, %v938
  %v1339 = vpack.c.b16 %v947, %v939
  %v1340 = vpack.c.b16 %v948, %v940
  %v1341 = vpack.c.b16 %v949, %v941
  %v1342 = vpack.c.b16 %v958, %v950
  %v1343 = vpack.c.b16 %v959, %v951
  %v1344 = vpack.c.b16 %v960, %v952
  %v1345 = vpack.c.b16 %v961, %v953
  %v1346 = vpack.c.b16 %v962, %v954
  %v1347 = vpack.c.b16 %v963, %v955
  %v1348 = vpack.c.b16 %v964, %v956
  %v1349 = vpack.c.b16 %v965, %v957
  %v1350 = vpack.c.b16 %v974, %v966
  %v1351 = vpack.c.b16 %v975, %v967
  %v1352 = vpack.c.b16 %v976, %v968
  %v1353 = vpack.c.b16 %v977, %v969
  %v1354 = vpack.c.b16 %v978, %v970
  %v1355 = vpack.c.b16 %v979, %v971
  %v1356 = vpack.c.b16 %v980, %v972
  %v1357 = vpack.c.b16 %v981, %v973
  %v1358 = vpack.c.b16 %v990, %v982
  %v1359 = vpack.c.b16 %v991, %v983
  %v1360 = vpack.c.b16 %v992, %v984
  %v1361 = vpack.c.b16 %v993, %v985
  %v1362 = vpack.c.b16 %v994, %v986
  %v1363 = vpack.c.b16 %v995, %v987
  %v1364 = vpack.c.b16 %v996, %v988
  %v1365 = vpack.c.b16 %v997, %v989
  %v1366 = vpack.c.b16 %v1006, %v998
  %v1367 = vpack.c.b16 %v1007, %v999
  %v1368 = vpack.c.b16 %v1008, %v1000
  %v1369 = vpack.c.b16 %v1009, %v1001
  %v1370 = vpack.c.b16 %v1010, %v1002
  %v1371 = vpack.c.b16 %v1011, %v1003
  %v1372 = vpack.c.b16 %v1012, %v1004
  %v1373 = vpack.c.b16 %v1013, %v1005
  %v1374 = vpack.c.b16 %v1022, %v1014
  %v1375 = vpack.c.b16 %v1023, %v1015
  %v1376 = vpack.c.b16 %v1024, %v1016
  %v1377 = vpack.c.b16 %v1025, %v1017
  %v1378 = vpack.c.b16 %v1026, %v1018
  %v1379 = vpack.c.b16 %v1027, %v1019
  %v1380 = vpack.c.b16 %v1028, %v1020
  %v1381 = vpack.c.b16 %v1029, %v1021
  %v1382 = vpack.c.b16 %v1038, %v1030
  %v1383 = vpack.c.b16 %v1039, %v1031
  %v1384 = vpack.c.b16 %v1040, %v1032
  %v1385 = vpack.c.b16 %v1041, %v1033
  %v1386 = vpack.c.b16 %v1042, %v1034
  %v1387 = vpack.c.b16 %v1043, %v1035
  %v1388 = vpack.c.b16 %v1044, %v1036
  %v1389 = vpack.c.b16 %v1045, %v1037
  %v1390 = vpack.c.b16 %v1054, %v1046
  %v1391 = vpack.c.b16 %v1055, %v1047
  %v1392 = vpack.c.b16 %v1056, %v1048
  %v1393 = vpack.c.b16 %v1057, %v1049
  %v1394 = vpack.c.b16 %v1058, %v1050
  %v1395 = vpack.c.b16 %v1059, %v1051
  %v1396 = vpack.c.b16 %v1060, %v1052
  %v1397 = vpack.c.b16 %v1061, %v1053
  %v1398 = vpack.c.b16 %v1070, %v1062
  %v1399 = vpack.c.b16 %v1071, %v1063
  %v1400 = vpack.c.b16 %v1072, %v1064
  %v1401 = vpack.c.b16 %v1073, %v1065
  %v1402 = vpack.c.b16 %v1074, %v1066
  %v1403 = vpack.c.b16 %v1075, %v1067
  %v1404 = vpack.c.b16 %v1076, %v1068
  %v1405 = vpack.c.b16 %v1077, %v1069
  %v1406 = vpack.c.b16 %v1086, %v1078
  %v1407 = vpack.c.b16 %v1087, %v1079
  %v1408 = vpack.c.b16 %v1088, %v1080
  %v1409 = vpack.c.b16 %v1089, %v1081
  %v1410 = vpack.c.b16 %v1090, %v1082
  %v1411 = vpack.c.b16 %v1091, %v1083
  %v1412 = vpack.c.b16 %v1092, %v1084
  %v1413 = vpack.c.b16 %v1093, %v1085
  %v1414 = vpack.c.b16 %v1102, %v1094
  %v1415 = vpack.c.b16 %v1103, %v1095
  %v1416 = vpack.c.b16 %v1104, %v1096
  %v1417 = vpack.c.b16 %v1105, %v1097
  %v1418 = vpack.c.b16 %v1106, %v1098
  %v1419 = vpack.c.b16 %v1107, %v1099
  %v1420 = vpack.c.b16 %v1108, %v1100
  %v1421 = vpack.c.b16 %v1109, %v1101
  %v1422 = vpack.c.b16 %v1118, %v1110
  %v1423 = vpack.c.b16 %v1119, %v1111
  %v1424 = vpack.c.b16 %v1120, %v1112
  %v1425 = vpack.c.b16 %v1121, %v1113
  %v1426 = vpack.c.b16 %v1122, %v1114
  %v1427 = vpack.c.b16 %v1123, %v1115
  %v1428 = vpack.c.b16 %v1124, %v1116
  %v1429 = vpack.c.b16 %v1125, %v1117
  %v1430 = vpack.c.b16 %v1134, %v1126
  %v1431 = vpack.c.b16 %v1135, %v1127
  %v1432 = vpack.c.b16 %v1136, %v1128
  %v1433 = vpack.c.b16 %v1137, %v1129
  %v1434 = vpack.c.b16 %v1138, %v1130
  %v1435 = vpack.c.b16 %v1139, %v1131
  %v1436 = vpack.c.b16 %v1140, %v1132
  %v1437 = vpack.c.b16 %v1141, %v1133
  %v1438 = vpack.c.b16 %v1150, %v1142
  %v1439 = vpack.c.b16 %v1151, %v1143
  %v1440 = vpack.c.b16 %v1152, %v1144
  %v1441 = vpack.c.b16 %v1153, %v1145
  %v1442 = vpack.c.b16 %v1154, %v1146
  %v1443 = vpack.c.b16 %v1155, %v1147
  %v1444 = vpack.c.b16 %v1156, %v1148
  %v1445 = vpack.c.b16 %v1157, %v1149
  %v1446 = vpack.c.b16 %v1166, %v1158
  %v1447 = vpack.c.b16 %v1167, %v1159
  %v1448 = vpack.c.b16 %v1168, %v1160
  %v1449 = vpack.c.b16 %v1169, %v1161
  %v1450 = vpack.c.b16 %v1170, %v1162
  %v1451 = vpack.c.b16 %v1171, %v1163
  %v1452 = vpack.c.b16 %v1172, %v1164
  %v1453 = vpack.c.b16 %v1173, %v1165
  %v1454 = vpack.c.b16 %v1182, %v1174
  %v1455 = vpack.c.b16 %v1183, %v1175
  %v1456 = vpack.c.b16 %v1184, %v1176
  %v1457 = vpack.c.b16 %v1185, %v1177
  %v1458 = vpack.c.b16 %v1186, %v1178
  %v1459 = vpack.c.b16 %v1187, %v1179
  %v1460 = vpack.c.b16 %v1188, %v1180
  %v1461 = vpack.c.b16 %v1189, %v1181
  %v1462 = vpack.c.b16 %v1198, %v1190
  %v1463 = vpack.c.b16 %v1199, %v1191
  %v1464 = vpack.c.b16 %v1200, %v1192
  %v1465 = vpack.c.b16 %v1201, %v1193
  %v1466 = vpack.c.b16 %v1202, %v1194
  %v1467 = vpack.c.b16 %v1203, %v1195
  %v1468 = vpack.c.b16 %v1204, %v1196
  %v1469 = vpack.c.b16 %v1205, %v1197
  %v1470 = vpack.c.b16 %v1214, %v1206
  %v1471 = vpack.c.b16 %v1215, %v1207
  %v1472 = vpack.c.b16 %v1216, %v1208
  %v1473 = vpack.c.b16 %v1217, %v1209
  %v1474 = vpack.c.b16 %v1218, %v1210
  %v1475 = vpack.c.b16 %v1219, %v1211
  %v1476 = vpack.c.b16 %v1220, %v1212
  %v1477 = vpack.c.b16 %v1221, %v1213
  %1734 = vmatprep.subr.bf16.mxu0 %v1223
  %1735 = vmatpush1.bf16.msra.mxu0 %v1222
  %1736 = vmatprep.subr.bf16.mxu0 %v1231
  %1737 = vmatpush1.bf16.msra.mxu0 %v1230
  %1738 = vmatprep.subr.bf16.mxu0 %v1239
  %1739 = vmatpush1.bf16.msra.mxu0 %v1238
  %1740 = vmatprep.subr.bf16.mxu0 %v1247
  %1741 = vmatpush1.bf16.msra.mxu0 %v1246
  %1742 = vmatprep.subr.bf16.mxu0 %v1255
  %1743 = vmatpush1.bf16.msra.mxu0 %v1254
  %1744 = vmatprep.subr.bf16.mxu0 %v1263
  %1745 = vmatpush1.bf16.msra.mxu0 %v1262
  %1746 = vmatprep.subr.bf16.mxu0 %v1271
  %1747 = vmatpush1.bf16.msra.mxu0 %v1270
  %1748 = vmatprep.subr.bf16.mxu0 %v1279
  %1749 = vmatpush1.bf16.msra.mxu0 %v1278
  %1750 = vmatprep.subr.bf16.mxu0 %v1287
  %1751 = vmatpush1.bf16.msra.mxu0 %v1286
  %1752 = vmatprep.subr.bf16.mxu0 %v1295
  %1753 = vmatpush1.bf16.msra.mxu0 %v1294
  %1754 = vmatprep.subr.bf16.mxu0 %v1303
  %1755 = vmatpush1.bf16.msra.mxu0 %v1302
  %1756 = vmatprep.subr.bf16.mxu0 %v1311
  %1757 = vmatpush1.bf16.msra.mxu0 %v1310
  %1758 = vmatprep.subr.bf16.mxu0 %v1319
  %1759 = vmatpush1.bf16.msra.mxu0 %v1318
  %1760 = vmatprep.subr.bf16.mxu0 %v1327
  %1761 = vmatpush1.bf16.msra.mxu0 %v1326
  %1762 = vmatprep.subr.bf16.mxu0 %v1335
  %1763 = vmatpush1.bf16.msra.mxu0 %v1334
  %1764 = vmatprep.subr.bf16.mxu0 %v1343
  %1765 = vmatpush1.bf16.msra.mxu0 %v1342
  %1766 = vmatprep.mubr.bf16.mxu0 %v195
  %1767 = vmatmul.mubr.bf16.gmra.mrb[0].mxu0 %v194
  %v1768 = vpop.f32.mrb[0].mxu0
  %v1769 = vadd.f32 0.0, %v1768
  %v1770 = vpop.f32.mrb[0].mxu0
  %v1771 = vadd.f32 0.0, %v1770
  %v1772 = vpop.f32.mrb[0].mxu0
  %v1773 = vpop.f32.mrb[0].mxu0
  %1774 = vdwg.mxu0
  %1775 = vmatprep.subr.bf16.mxu0 %v1351
  %1776 = vmatpush1.bf16.msra.mxu0 %v1350
  %1777 = vmatprep.subr.bf16.mxu0 %v1359
  %1778 = vmatpush1.bf16.msra.mxu0 %v1358
  %1779 = vmatprep.subr.bf16.mxu0 %v1367
  %1780 = vmatpush1.bf16.msra.mxu0 %v1366
  %1781 = vmatprep.subr.bf16.mxu0 %v1375
  %1782 = vmatpush1.bf16.msra.mxu0 %v1374
  %1783 = vmatprep.subr.bf16.mxu0 %v1383
  %1784 = vmatpush1.bf16.msra.mxu0 %v1382
  %1785 = vmatprep.subr.bf16.mxu0 %v1391
  %1786 = vmatpush1.bf16.msra.mxu0 %v1390
  %1787 = vmatprep.subr.bf16.mxu0 %v1399
  %1788 = vmatpush1.bf16.msra.mxu0 %v1398
  %1789 = vmatprep.subr.bf16.mxu0 %v1407
  %1790 = vmatpush1.bf16.msra.mxu0 %v1406
  %1791 = vmatprep.subr.bf16.mxu0 %v1415
  %1792 = vmatpush1.bf16.msra.mxu0 %v1414
  %1793 = vmatprep.subr.bf16.mxu0 %v1423
  %1794 = vmatpush1.bf16.msra.mxu0 %v1422
  %1795 = vmatprep.subr.bf16.mxu0 %v1431
  %1796 = vmatpush1.bf16.msra.mxu0 %v1430
  %1797 = vmatprep.subr.bf16.mxu0 %v1439
  %1798 = vmatpush1.bf16.msra.mxu0 %v1438
  %1799 = vmatprep.subr.bf16.mxu0 %v1447
  %1800 = vmatpush1.bf16.msra.mxu0 %v1446
  %1801 = vmatprep.subr.bf16.mxu0 %v1455
  %1802 = vmatpush1.bf16.msra.mxu0 %v1454
  %1803 = vmatprep.subr.bf16.mxu0 %v1463
  %1804 = vmatpush1.bf16.msra.mxu0 %v1462
  %1805 = vmatprep.subr.bf16.mxu0 %v1471
  %1806 = vmatpush1.bf16.msra.mxu0 %v1470
  %1807 = vmatprep.mubr.bf16.mxu0 %v197
  %1808 = vmatmul.mubr.bf16.gmra.mrb[0].mxu0 %v196
  %v1809 = vpop.f32.mrb[0].mxu0
  %v1810 = vadd.f32 %v1769, %v1809
  %v1811 = vpop.f32.mrb[0].mxu0
  %v1812 = vadd.f32 %v1771, %v1811
  %v1813 = vpop.f32.mrb[0].mxu0
  %v1814 = vpop.f32.mrb[0].mxu0
  %1815 = vdwg.mxu0
  %1816 = vmatprep.subr.bf16.mxu0 %v1225
  %1817 = vmatpush1.bf16.msra.mxu0 %v1224
  %1818 = vmatprep.subr.bf16.mxu0 %v1233
  %1819 = vmatpush1.bf16.msra.mxu0 %v1232
  %1820 = vmatprep.subr.bf16.mxu0 %v1241
  %1821 = vmatpush1.bf16.msra.mxu0 %v1240
  %1822 = vmatprep.subr.bf16.mxu0 %v1249
  %1823 = vmatpush1.bf16.msra.mxu0 %v1248
  %1824 = vmatprep.subr.bf16.mxu0 %v1257
  %1825 = vmatpush1.bf16.msra.mxu0 %v1256
  %1826 = vmatprep.subr.bf16.mxu0 %v1265
  %1827 = vmatpush1.bf16.msra.mxu0 %v1264
  %1828 = vmatprep.subr.bf16.mxu0 %v1273
  %1829 = vmatpush1.bf16.msra.mxu0 %v1272
  %1830 = vmatprep.subr.bf16.mxu0 %v1281
  %1831 = vmatpush1.bf16.msra.mxu0 %v1280
  %1832 = vmatprep.subr.bf16.mxu0 %v1289
  %1833 = vmatpush1.bf16.msra.mxu0 %v1288
  %1834 = vmatprep.subr.bf16.mxu0 %v1297
  %1835 = vmatpush1.bf16.msra.mxu0 %v1296
  %1836 = vmatprep.subr.bf16.mxu0 %v1305
  %1837 = vmatpush1.bf16.msra.mxu0 %v1304
  %1838 = vmatprep.subr.bf16.mxu0 %v1313
  %1839 = vmatpush1.bf16.msra.mxu0 %v1312
  %1840 = vmatprep.subr.bf16.mxu0 %v1321
  %1841 = vmatpush1.bf16.msra.mxu0 %v1320
  %1842 = vmatprep.subr.bf16.mxu0 %v1329
  %1843 = vmatpush1.bf16.msra.mxu0 %v1328
  %1844 = vmatprep.subr.bf16.mxu0 %v1337
  %1845 = vmatpush1.bf16.msra.mxu0 %v1336
  %1846 = vmatprep.subr.bf16.mxu0 %v1345
  %1847 = vmatpush1.bf16.msra.mxu0 %v1344
  %1848 = vmatprep.mubr.bf16.mxu0 %v195
  %1849 = vmatmul.mubr.bf16.gmra.mrb[0].mxu0 %v194
  %v1850 = vpop.f32.mrb[0].mxu0
  %v1851 = vadd.f32 0.0, %v1850
  %v1852 = vpop.f32.mrb[0].mxu0
  %v1853 = vadd.f32 0.0, %v1852
  %v1854 = vpop.f32.mrb[0].mxu0
  %v1855 = vpop.f32.mrb[0].mxu0
  %1856 = vdwg.mxu0
  %1857 = vmatprep.subr.bf16.mxu0 %v1353
  %1858 = vmatpush1.bf16.msra.mxu0 %v1352
  %1859 = vmatprep.subr.bf16.mxu0 %v1361
  %1860 = vmatpush1.bf16.msra.mxu0 %v1360
  %1861 = vmatprep.subr.bf16.mxu0 %v1369
  %1862 = vmatpush1.bf16.msra.mxu0 %v1368
  %1863 = vmatprep.subr.bf16.mxu0 %v1377
  %1864 = vmatpush1.bf16.msra.mxu0 %v1376
  %1865 = vmatprep.subr.bf16.mxu0 %v1385
  %1866 = vmatpush1.bf16.msra.mxu0 %v1384
  %1867 = vmatprep.subr.bf16.mxu0 %v1393
  %1868 = vmatpush1.bf16.msra.mxu0 %v1392
  %1869 = vmatprep.subr.bf16.mxu0 %v1401
  %1870 = vmatpush1.bf16.msra.mxu0 %v1400
  %1871 = vmatprep.subr.bf16.mxu0 %v1409
  %1872 = vmatpush1.bf16.msra.mxu0 %v1408
  %1873 = vmatprep.subr.bf16.mxu0 %v1417
  %1874 = vmatpush1.bf16.msra.mxu0 %v1416
  %1875 = vmatprep.subr.bf16.mxu0 %v1425
  %1876 = vmatpush1.bf16.msra.mxu0 %v1424
  %1877 = vmatprep.subr.bf16.mxu0 %v1433
  %1878 = vmatpush1.bf16.msra.mxu0 %v1432
  %1879 = vmatprep.subr.bf16.mxu0 %v1441
  %1880 = vmatpush1.bf16.msra.mxu0 %v1440
  %1881 = vmatprep.subr.bf16.mxu0 %v1449
  %1882 = vmatpush1.bf16.msra.mxu0 %v1448
  %1883 = vmatprep.subr.bf16.mxu0 %v1457
  %1884 = vmatpush1.bf16.msra.mxu0 %v1456
  %1885 = vmatprep.subr.bf16.mxu0 %v1465
  %1886 = vmatpush1.bf16.msra.mxu0 %v1464
  %1887 = vmatprep.subr.bf16.mxu0 %v1473
  %1888 = vmatpush1.bf16.msra.mxu0 %v1472
  %1889 = vmatprep.mubr.bf16.mxu0 %v197
  %1890 = vmatmul.mubr.bf16.gmra.mrb[0].mxu0 %v196
  %v1891 = vpop.f32.mrb[0].mxu0
  %v1892 = vadd.f32 %v1851, %v1891
  %v1893 = vpop.f32.mrb[0].mxu0
  %v1894 = vadd.f32 %v1853, %v1893
  %v1895 = vpop.f32.mrb[0].mxu0
  %v1896 = vpop.f32.mrb[0].mxu0
  %1897 = vdwg.mxu0
  %1898 = vmatprep.subr.bf16.mxu0 %v1227
  %1899 = vmatpush1.bf16.msra.mxu0 %v1226
  %1900 = vmatprep.subr.bf16.mxu0 %v1235
  %1901 = vmatpush1.bf16.msra.mxu0 %v1234
  %1902 = vmatprep.subr.bf16.mxu0 %v1243
  %1903 = vmatpush1.bf16.msra.mxu0 %v1242
  %1904 = vmatprep.subr.bf16.mxu0 %v1251
  %1905 = vmatpush1.bf16.msra.mxu0 %v1250
  %1906 = vmatprep.subr.bf16.mxu0 %v1259
  %1907 = vmatpush1.bf16.msra.mxu0 %v1258
  %1908 = vmatprep.subr.bf16.mxu0 %v1267
  %1909 = vmatpush1.bf16.msra.mxu0 %v1266
  %1910 = vmatprep.subr.bf16.mxu0 %v1275
  %1911 = vmatpush1.bf16.msra.mxu0 %v1274
  %1912 = vmatprep.subr.bf16.mxu0 %v1283
  %1913 = vmatpush1.bf16.msra.mxu0 %v1282
  %1914 = vmatprep.subr.bf16.mxu0 %v1291
  %1915 = vmatpush1.bf16.msra.mxu0 %v1290
  %1916 = vmatprep.subr.bf16.mxu0 %v1299
  %1917 = vmatpush1.bf16.msra.mxu0 %v1298
  %1918 = vmatprep.subr.bf16.mxu0 %v1307
  %1919 = vmatpush1.bf16.msra.mxu0 %v1306
  %1920 = vmatprep.subr.bf16.mxu0 %v1315
  %1921 = vmatpush1.bf16.msra.mxu0 %v1314
  %1922 = vmatprep.subr.bf16.mxu0 %v1323
  %1923 = vmatpush1.bf16.msra.mxu0 %v1322
  %1924 = vmatprep.subr.bf16.mxu0 %v1331
  %1925 = vmatpush1.bf16.msra.mxu0 %v1330
  %1926 = vmatprep.subr.bf16.mxu0 %v1339
  %1927 = vmatpush1.bf16.msra.mxu0 %v1338
  %1928 = vmatprep.subr.bf16.mxu0 %v1347
  %1929 = vmatpush1.bf16.msra.mxu0 %v1346
  %1930 = vmatprep.mubr.bf16.mxu0 %v195
  %1931 = vmatmul.mubr.bf16.gmra.mrb[0].mxu0 %v194
  %v1932 = vpop.f32.mrb[0].mxu0
  %v1933 = vadd.f32 0.0, %v1932
  %v1934 = vpop.f32.mrb[0].mxu0
  %v1935 = vadd.f32 0.0, %v1934
  %v1936 = vpop.f32.mrb[0].mxu0
  %v1937 = vpop.f32.mrb[0].mxu0
  %1938 = vdwg.mxu0
  %1939 = vmatprep.subr.bf16.mxu0 %v1355
  %1940 = vmatpush1.bf16.msra.mxu0 %v1354
  %1941 = vmatprep.subr.bf16.mxu0 %v1363
  %1942 = vmatpush1.bf16.msra.mxu0 %v1362
  %1943 = vmatprep.subr.bf16.mxu0 %v1371
  %1944 = vmatpush1.bf16.msra.mxu0 %v1370
  %1945 = vmatprep.subr.bf16.mxu0 %v1379
  %1946 = vmatpush1.bf16.msra.mxu0 %v1378
  %1947 = vmatprep.subr.bf16.mxu0 %v1387
  %1948 = vmatpush1.bf16.msra.mxu0 %v1386
  %1949 = vmatprep.subr.bf16.mxu0 %v1395
  %1950 = vmatpush1.bf16.msra.mxu0 %v1394
  %1951 = vmatprep.subr.bf16.mxu0 %v1403
  %1952 = vmatpush1.bf16.msra.mxu0 %v1402
  %1953 = vmatprep.subr.bf16.mxu0 %v1411
  %1954 = vmatpush1.bf16.msra.mxu0 %v1410
  %1955 = vmatprep.subr.bf16.mxu0 %v1419
  %1956 = vmatpush1.bf16.msra.mxu0 %v1418
  %1957 = vmatprep.subr.bf16.mxu0 %v1427
  %1958 = vmatpush1.bf16.msra.mxu0 %v1426
  %1959 = vmatprep.subr.bf16.mxu0 %v1435
  %1960 = vmatpush1.bf16.msra.mxu0 %v1434
  %1961 = vmatprep.subr.bf16.mxu0 %v1443
  %1962 = vmatpush1.bf16.msra.mxu0 %v1442
  %1963 = vmatprep.subr.bf16.mxu0 %v1451
  %1964 = vmatpush1.bf16.msra.mxu0 %v1450
  %1965 = vmatprep.subr.bf16.mxu0 %v1459
  %1966 = vmatpush1.bf16.msra.mxu0 %v1458
  %1967 = vmatprep.subr.bf16.mxu0 %v1467
  %1968 = vmatpush1.bf16.msra.mxu0 %v1466
  %1969 = vmatprep.subr.bf16.mxu0 %v1475
  %1970 = vmatpush1.bf16.msra.mxu0 %v1474
  %1971 = vmatprep.mubr.bf16.mxu0 %v197
  %1972 = vmatmul.mubr.bf16.gmra.mrb[0].mxu0 %v196
  %v1973 = vpop.f32.mrb[0].mxu0
  %v1974 = vadd.f32 %v1933, %v1973
  %v1975 = vpop.f32.mrb[0].mxu0
  %v1976 = vadd.f32 %v1935, %v1975
  %v1977 = vpop.f32.mrb[0].mxu0
  %v1978 = vpop.f32.mrb[0].mxu0
  %1979 = vdwg.mxu0
  %1980 = vmatprep.subr.bf16.mxu0 %v1229
  %1981 = vmatpush1.bf16.msra.mxu0 %v1228
  %1982 = vmatprep.subr.bf16.mxu0 %v1237
  %1983 = vmatpush1.bf16.msra.mxu0 %v1236
  %1984 = vmatprep.subr.bf16.mxu0 %v1245
  %1985 = vmatpush1.bf16.msra.mxu0 %v1244
  %1986 = vmatprep.subr.bf16.mxu0 %v1253
  %1987 = vmatpush1.bf16.msra.mxu0 %v1252
  %1988 = vmatprep.subr.bf16.mxu0 %v1261
  %1989 = vmatpush1.bf16.msra.mxu0 %v1260
  %1990 = vmatprep.subr.bf16.mxu0 %v1269
  %1991 = vmatpush1.bf16.msra.mxu0 %v1268
  %1992 = vmatprep.subr.bf16.mxu0 %v1277
  %1993 = vmatpush1.bf16.msra.mxu0 %v1276
  %1994 = vmatprep.subr.bf16.mxu0 %v1285
  %1995 = vmatpush1.bf16.msra.mxu0 %v1284
  %1996 = vmatprep.subr.bf16.mxu0 %v1293
  %1997 = vmatpush1.bf16.msra.mxu0 %v1292
  %1998 = vmatprep.subr.bf16.mxu0 %v1301
  %1999 = vmatpush1.bf16.msra.mxu0 %v1300
  %2000 = vmatprep.subr.bf16.mxu0 %v1309
  %2001 = vmatpush1.bf16.msra.mxu0 %v1308
  %2002 = vmatprep.subr.bf16.mxu0 %v1317
  %2003 = vmatpush1.bf16.msra.mxu0 %v1316
  %2004 = vmatprep.subr.bf16.mxu0 %v1325
  %2005 = vmatpush1.bf16.msra.mxu0 %v1324
  %2006 = vmatprep.subr.bf16.mxu0 %v1333
  %2007 = vmatpush1.bf16.msra.mxu0 %v1332
  %2008 = vmatprep.subr.bf16.mxu0 %v1341
  %2009 = vmatpush1.bf16.msra.mxu0 %v1340
  %2010 = vmatprep.subr.bf16.mxu0 %v1349
  %2011 = vmatpush1.bf16.msra.mxu0 %v1348
  %2012 = vmatprep.mubr.bf16.mxu0 %v195
  %2013 = vmatmul.mubr.bf16.gmra.mrb[0].mxu0 %v194
  %v2014 = vpop.f32.mrb[0].mxu0
  %v2015 = vadd.f32 0.0, %v2014
  %v2016 = vpop.f32.mrb[0].mxu0
  %v2017 = vadd.f32 0.0, %v2016
  %v2018 = vpop.f32.mrb[0].mxu0
  %v2019 = vpop.f32.mrb[0].mxu0
  %2020 = vdwg.mxu0
  %2021 = vmatprep.subr.bf16.mxu0 %v1357
  %2022 = vmatpush1.bf16.msra.mxu0 %v1356
  %2023 = vmatprep.subr.bf16.mxu0 %v1365
  %2024 = vmatpush1.bf16.msra.mxu0 %v1364
  %2025 = vmatprep.subr.bf16.mxu0 %v1373
  %2026 = vmatpush1.bf16.msra.mxu0 %v1372
  %2027 = vmatprep.subr.bf16.mxu0 %v1381
  %2028 = vmatpush1.bf16.msra.mxu0 %v1380
  %2029 = vmatprep.subr.bf16.mxu0 %v1389
  %2030 = vmatpush1.bf16.msra.mxu0 %v1388
  %2031 = vmatprep.subr.bf16.mxu0 %v1397
  %2032 = vmatpush1.bf16.msra.mxu0 %v1396
  %2033 = vmatprep.subr.bf16.mxu0 %v1405
  %2034 = vmatpush1.bf16.msra.mxu0 %v1404
  %2035 = vmatprep.subr.bf16.mxu0 %v1413
  %2036 = vmatpush1.bf16.msra.mxu0 %v1412
  %2037 = vmatprep.subr.bf16.mxu0 %v1421
  %2038 = vmatpush1.bf16.msra.mxu0 %v1420
  %2039 = vmatprep.subr.bf16.mxu0 %v1429
  %2040 = vmatpush1.bf16.msra.mxu0 %v1428
  %2041 = vmatprep.subr.bf16.mxu0 %v1437
  %2042 = vmatpush1.bf16.msra.mxu0 %v1436
  %2043 = vmatprep.subr.bf16.mxu0 %v1445
  %2044 = vmatpush1.bf16.msra.mxu0 %v1444
  %2045 = vmatprep.subr.bf16.mxu0 %v1453
  %2046 = vmatpush1.bf16.msra.mxu0 %v1452
  %2047 = vmatprep.subr.bf16.mxu0 %v1461
  %2048 = vmatpush1.bf16.msra.mxu0 %v1460
  %2049 = vmatprep.subr.bf16.mxu0 %v1469
  %2050 = vmatpush1.bf16.msra.mxu0 %v1468
  %2051 = vmatprep.subr.bf16.mxu0 %v1477
  %2052 = vmatpush1.bf16.msra.mxu0 %v1476
  %2053 = vmatprep.mubr.bf16.mxu0 %v197
  %2054 = vmatmul.mubr.bf16.gmra.mrb[0].mxu0 %v196
  %v2055 = vpop.f32.mrb[0].mxu0
  %v2056 = vadd.f32 %v2015, %v2055
  %v2057 = vpop.f32.mrb[0].mxu0
  %v2058 = vadd.f32 %v2017, %v2057
  %v2059 = vpop.f32.mrb[0].mxu0
  %v2060 = vpop.f32.mrb[0].mxu0
  %2061 = vdwg.mxu0
  %v2062 = vld [vmem:[%s5] sm:$0xff]
  %v2064 = vlaneseq
  %v2065 = vshrl.u32 %v2064, 7
  %v2066 = vsub.s32 0, %v2065
  %v2067 = vrot.slane %v2062, %v2066
  %v2068 = vlaneseq
  %v2069 = vshrl.u32 %v2068, 7
  %v2070 = vsub.s32 1, %v2069
  %v2071 = vrot.slane %v2062, %v2070
  %v2072 = vlaneseq
  %v2073 = vshrl.u32 %v2072, 7
  %v2074 = vsub.s32 2, %v2073
  %v2075 = vrot.slane %v2062, %v2074
  %v2076 = vlaneseq
  %v2077 = vshrl.u32 %v2076, 7
  %v2078 = vsub.s32 3, %v2077
  %v2079 = vrot.slane %v2062, %v2078
  %v2080 = vlaneseq
  %v2081 = vshrl.u32 %v2080, 7
  %v2082 = vsub.s32 4, %v2081
  %v2083 = vrot.slane %v2062, %v2082
  %v2084 = vlaneseq
  %v2085 = vshrl.u32 %v2084, 7
  %v2086 = vsub.s32 5, %v2085
  %v2087 = vrot.slane %v2062, %v2086
  %v2088 = vlaneseq
  %v2089 = vshrl.u32 %v2088, 7
  %v2090 = vsub.s32 6, %v2089
  %v2091 = vrot.slane %v2062, %v2090
  %v2092 = vlaneseq
  %v2093 = vshrl.u32 %v2092, 7
  %v2094 = vsub.s32 7, %v2093
  %v2095 = vrot.slane %v2062, %v2094
  %v2104 = vmul.f32 %v1810, %v2067
  %v2105 = vmul.f32 %v1812, %v2071
  %v2106 = vmul.f32 %v1892, %v2075
  %v2107 = vmul.f32 %v1894, %v2079
  %v2108 = vmul.f32 %v1974, %v2083
  %v2109 = vmul.f32 %v1976, %v2087
  %v2110 = vmul.f32 %v2056, %v2091
  %v2111 = vmul.f32 %v2058, %v2095
  %v2112 = vld [vmem:[%s6] sm:$0xff]
  %v2114 = vlaneseq
  %v2115 = vshrl.u32 %v2114, 7
  %v2116 = vsub.s32 0, %v2115
  %v2117 = vrot.slane %v2112, %v2116
  %v2118 = vlaneseq
  %v2119 = vshrl.u32 %v2118, 7
  %v2120 = vsub.s32 1, %v2119
  %v2121 = vrot.slane %v2112, %v2120
  %v2122 = vlaneseq
  %v2123 = vshrl.u32 %v2122, 7
  %v2124 = vsub.s32 2, %v2123
  %v2125 = vrot.slane %v2112, %v2124
  %v2126 = vlaneseq
  %v2127 = vshrl.u32 %v2126, 7
  %v2128 = vsub.s32 3, %v2127
  %v2129 = vrot.slane %v2112, %v2128
  %v2130 = vlaneseq
  %v2131 = vshrl.u32 %v2130, 7
  %v2132 = vsub.s32 4, %v2131
  %v2133 = vrot.slane %v2112, %v2132
  %v2134 = vlaneseq
  %v2135 = vshrl.u32 %v2134, 7
  %v2136 = vsub.s32 5, %v2135
  %v2137 = vrot.slane %v2112, %v2136
  %v2138 = vlaneseq
  %v2139 = vshrl.u32 %v2138, 7
  %v2140 = vsub.s32 6, %v2139
  %v2141 = vrot.slane %v2112, %v2140
  %v2142 = vlaneseq
  %v2143 = vshrl.u32 %v2142, 7
  %v2144 = vsub.s32 7, %v2143
  %v2145 = vrot.slane %v2112, %v2144
  %v2154 = vadd.f32 %v2104, %v2117
  %v2155 = vadd.f32 %v2105, %v2121
  %v2156 = vadd.f32 %v2106, %v2125
  %v2157 = vadd.f32 %v2107, %v2129
  %v2158 = vadd.f32 %v2108, %v2133
  %v2159 = vadd.f32 %v2109, %v2137
  %v2160 = vadd.f32 %v2110, %v2141
  %v2161 = vadd.f32 %v2111, %v2145
  %v2162 = vmax.f32 %v2154, 0.0
  %v2163 = vmax.f32 %v2155, 0.0
  %v2164 = vmax.f32 %v2156, 0.0
  %v2165 = vmax.f32 %v2157, 0.0
  %v2166 = vmax.f32 %v2158, 0.0
  %v2167 = vmax.f32 %v2159, 0.0
  %v2168 = vmax.f32 %v2160, 0.0
  %v2169 = vmax.f32 %v2161, 0.0
  %v2178 = vcombine.low %v2162, %v2163
  %v2179 = vcombine.low %v2164, %v2165
  %v2181 = vunpack.c.l.s4 1983009808
  %v2182 = vunpack.c.0.s8 %v2181
  %v2183 = vlaneseq
  %v2184 = vshrl.u32 %v2183, 7
  %v2185 = vsub.s32 %v2182, %v2184
  %v2186 = vrot.slane %v2178, %v2185
  %v2188 = vunpack.c.l.s4 1983009808
  %v2189 = vunpack.c.0.s8 %v2188
  %v2190 = vlaneseq
  %v2191 = vshrl.u32 %v2190, 7
  %v2192 = vsub.s32 %v2189, %v2191
  %v2193 = vrot.slane %v2179, %v2192
  %v2194 = vcombine.low %v2186, %v2193
  %v2195 = vcombine.low %v2166, %v2167
  %v2196 = vcombine.low %v2168, %v2169
  %v2198 = vunpack.c.l.s4 1983009808
  %v2199 = vunpack.c.0.s8 %v2198
  %v2200 = vlaneseq
  %v2201 = vshrl.u32 %v2200, 7
  %v2202 = vsub.s32 %v2199, %v2201
  %v2203 = vrot.slane %v2195, %v2202
  %v2205 = vunpack.c.l.s4 1983009808
  %v2206 = vunpack.c.0.s8 %v2205
  %v2207 = vlaneseq
  %v2208 = vshrl.u32 %v2207, 7
  %v2209 = vsub.s32 %v2206, %v2208
  %v2210 = vrot.slane %v2196, %v2209
  %v2211 = vcombine.low %v2203, %v2210
  %2214 = vst [vmem:[%s7] sm:$0xff] %v2194
  %2215 = vst [vmem:[%s7 + $0x8] sm:$0xff] %v2211
  // Predicated region
  $region30: #{conv_decoder_forward.5} parent=0 // pred_check
    _
  $region31: #{conv_decoder_forward.5} parent=0 // pred_check_branch
    %2217 = sbr.rel (0) target = $region33
  $region32: #{conv_decoder_forward.5} parent=0 // pred_region
    _
  $region33: #{conv_decoder_forward.5} parent=0 // pred_fallthru
    _
  // Predicated region
  $region34: #{conv_decoder_forward.5} parent=0 // pred_check
    _
  $region35: #{conv_decoder_forward.5} parent=0 // pred_check_branch
    %2219 = sbr.rel (0) target = $region37
  $region36: #{conv_decoder_forward.5} parent=0 // pred_region
    _
  $region37: #{conv_decoder_forward.5} parent=0 // pred_fallthru
    _

// kernel: conv_decoder_forward.7
$region0: #{conv_decoder_forward.7}
  #allocation0 [shape = 'u32[]', space=smem, size = 0x4, offset = 0x4, fixed_abs, tag = 'smem constant byte address 0x4 - core index']
  #allocation1 [shape = 'u32[144,128]{1,0:T(1,128)}', space=vmem, size = 0x12000, scoped, tag = 'internal scratch']
  %s0 = inlined_call_operand.vmem [shape: bf16[128,64], index: 0, kind: input, shape index: {}]
  %s1 = inlined_call_operand.vmem [shape: bf16[64,512], index: 1, kind: input, shape index: {}]
  %s2 = inlined_call_operand.vmem [shape: f32[1,512], index: 2, kind: input, shape index: {}]
  %s3 = inlined_call_operand.vmem [shape: f32[128,512], index: 3, kind: output, shape index: {}]
  %s4 = sld [smem:[#allocation0]]
  $region22: #{conv_decoder_forward.7} parent=0
    _
  %s6 = ssub.s32 1, %s4
  %s7 = scalar_select 0, %s6, %s4
  // Predicated region
  $region2: #{conv_decoder_forward.7} parent=0 // pred_check
    _
  $region3: #{conv_decoder_forward.7} parent=0 // pred_check_branch
    %9 = sbr.rel (0) target = $region5
  $region4: #{conv_decoder_forward.7} parent=0 // pred_region
    _
  $region5: #{conv_decoder_forward.7} parent=0 // pred_fallthru
    _
  // Predicated region
  $region6: #{conv_decoder_forward.7} parent=0 // pred_check
    _
  $region7: #{conv_decoder_forward.7} parent=0 // pred_check_branch
    %11 = sbr.rel (0) target = $region9
  $region8: #{conv_decoder_forward.7} parent=0 // pred_region
    _
  $region9: #{conv_decoder_forward.7} parent=0 // pred_fallthru
    _
  // Predicated region
  $region10: #{conv_decoder_forward.7} parent=0 // pred_check
    _
  $region11: #{conv_decoder_forward.7} parent=0 // pred_check_branch
    %13 = sbr.rel (0) target = $region13
  $region12: #{conv_decoder_forward.7} parent=0 // pred_region
    _
  $region13: #{conv_decoder_forward.7} parent=0 // pred_fallthru
    _
  %v15 = vld [vmem:[%s0] sm:$0xf]
  %v16 = vld [vmem:[%s0 + $0x4] sm:$0xf]
  %v17 = vld [vmem:[%s0 + $0x8] sm:$0xf]
  %v18 = vld [vmem:[%s0 + $0xc] sm:$0xf]
  %v19 = vld [vmem:[%s0 + $0x10] sm:$0xf]
  %v20 = vld [vmem:[%s0 + $0x14] sm:$0xf]
  %v21 = vld [vmem:[%s0 + $0x18] sm:$0xf]
  %v22 = vld [vmem:[%s0 + $0x1c] sm:$0xf]
  %v23 = vld [vmem:[%s0 + $0x20] sm:$0xf]
  %v24 = vld [vmem:[%s0 + $0x24] sm:$0xf]
  %v25 = vld [vmem:[%s0 + $0x28] sm:$0xf]
  %v26 = vld [vmem:[%s0 + $0x2c] sm:$0xf]
  %v27 = vld [vmem:[%s0 + $0x30] sm:$0xf]
  %v28 = vld [vmem:[%s0 + $0x34] sm:$0xf]
  %v29 = vld [vmem:[%s0 + $0x38] sm:$0xf]
  %v30 = vld [vmem:[%s0 + $0x3c] sm:$0xf]
  %v31 = vld [vmem:[%s1] sm:$0xff]
  %v32 = vld [vmem:[%s1 + $0x8] sm:$0xff]
  %v33 = vld [vmem:[%s1 + $0x10] sm:$0xff]
  %v34 = vld [vmem:[%s1 + $0x18] sm:$0xff]
  %v35 = vld [vmem:[%s1 + $0x20] sm:$0xff]
  %v36 = vld [vmem:[%s1 + $0x28] sm:$0xff]
  %v37 = vld [vmem:[%s1 + $0x30] sm:$0xff]
  %v38 = vld [vmem:[%s1 + $0x38] sm:$0xff]
  %v39 = vld [vmem:[%s1 + $0x40] sm:$0xff]
  %v40 = vld [vmem:[%s1 + $0x48] sm:$0xff]
  %v41 = vld [vmem:[%s1 + $0x50] sm:$0xff]
  %v42 = vld [vmem:[%s1 + $0x58] sm:$0xff]
  %v43 = vld [vmem:[%s1 + $0x60] sm:$0xff]
  %v44 = vld [vmem:[%s1 + $0x68] sm:$0xff]
  %v45 = vld [vmem:[%s1 + $0x70] sm:$0xff]
  %v46 = vld [vmem:[%s1 + $0x78] sm:$0xff]
  %v63 = vunpack.c.l.b16 %v15
  %v64 = vunpack.c.l.b16 %v16
  %v65 = vunpack.c.l.b16 %v17
  %v66 = vunpack.c.l.b16 %v18
  %v67 = vunpack.c.l.b16 %v19
  %v68 = vunpack.c.l.b16 %v20
  %v69 = vunpack.c.l.b16 %v21
  %v70 = vunpack.c.l.b16 %v22
  %v71 = vunpack.c.l.b16 %v23
  %v72 = vunpack.c.l.b16 %v24
  %v73 = vunpack.c.l.b16 %v25
  %v74 = vunpack.c.l.b16 %v26
  %v75 = vunpack.c.l.b16 %v27
  %v76 = vunpack.c.l.b16 %v28
  %v77 = vunpack.c.l.b16 %v29
  %v78 = vunpack.c.l.b16 %v30
  %v79 = vpack.c.b16 %v64, %v63
  %v80 = vpack.c.b16 %v66, %v65
  %v81 = vpack.c.b16 %v68, %v67
  %v82 = vpack.c.b16 %v70, %v69
  %v83 = vpack.c.b16 %v72, %v71
  %v84 = vpack.c.b16 %v74, %v73
  %v85 = vpack.c.b16 %v76, %v75
  %v86 = vpack.c.b16 %v78, %v77
  %v103 = vunpack.c.l.b16 %v31
  %v104 = vunpack.c.h.b16 %v31
  %v105 = vunpack.c.l.b16 %v32
  %v106 = vunpack.c.h.b16 %v32
  %v107 = vunpack.c.l.b16 %v33
  %v108 = vunpack.c.h.b16 %v33
  %v109 = vunpack.c.l.b16 %v34
  %v110 = vunpack.c.h.b16 %v34
  %v111 = vunpack.c.l.b16 %v35
  %v112 = vunpack.c.h.b16 %v35
  %v113 = vunpack.c.l.b16 %v36
  %v114 = vunpack.c.h.b16 %v36
  %v115 = vunpack.c.l.b16 %v37
  %v116 = vunpack.c.h.b16 %v37
  %v117 = vunpack.c.l.b16 %v38
  %v118 = vunpack.c.h.b16 %v38
  %v119 = vunpack.c.l.b16 %v39
  %v120 = vunpack.c.h.b16 %v39
  %v121 = vunpack.c.l.b16 %v40
  %v122 = vunpack.c.h.b16 %v40
  %v123 = vunpack.c.l.b16 %v41
  %v124 = vunpack.c.h.b16 %v41
  %v125 = vunpack.c.l.b16 %v42
  %v126 = vunpack.c.h.b16 %v42
  %v127 = vunpack.c.l.b16 %v43
  %v128 = vunpack.c.h.b16 %v43
  %v129 = vunpack.c.l.b16 %v44
  %v130 = vunpack.c.h.b16 %v44
  %v131 = vunpack.c.l.b16 %v45
  %v132 = vunpack.c.h.b16 %v45
  %v133 = vunpack.c.l.b16 %v46
  %v134 = vunpack.c.h.b16 %v46
  %v135 = vpack.c.b16 %v107, %v103
  %v136 = vpack.c.b16 %v108, %v104
  %v137 = vpack.c.b16 %v109, %v105
  %v138 = vpack.c.b16 %v110, %v106
  %v139 = vpack.c.b16 %v115, %v111
  %v140 = vpack.c.b16 %v116, %v112
  %v141 = vpack.c.b16 %v117, %v113
  %v142 = vpack.c.b16 %v118, %v114
  %v143 = vpack.c.b16 %v123, %v119
  %v144 = vpack.c.b16 %v124, %v120
  %v145 = vpack.c.b16 %v125, %v121
  %v146 = vpack.c.b16 %v126, %v122
  %v147 = vpack.c.b16 %v131, %v127
  %v148 = vpack.c.b16 %v132, %v128
  %v149 = vpack.c.b16 %v133, %v129
  %v150 = vpack.c.b16 %v134, %v130
  %vm167 = vcmask 523264
  %v169 = vsel %vm167, %v79, 0
  %v172 = vsel %vm167, %v80, 0
  %v175 = vsel %vm167, %v81, 0
  %v178 = vsel %vm167, %v82, 0
  %v181 = vsel %vm167, %v83, 0
  %v184 = vsel %vm167, %v84, 0
  %v187 = vsel %vm167, %v85, 0
  %v190 = vsel %vm167, %v86, 0
  %192 = vmatprep.subr.bf16.mxu0 %v136
  %193 = vmatpush1.bf16.msra.mxu0 %v135
  %194 = vmatprep.subr.bf16.mxu0 %v140
  %195 = vmatpush1.bf16.msra.mxu0 %v139
  %196 = vmatprep.subr.bf16.mxu0 %v144
  %197 = vmatpush1.bf16.msra.mxu0 %v143
  %198 = vmatprep.subr.bf16.mxu0 %v148
  %199 = vmatpush1.bf16.msra.mxu0 %v147
  %200 = vmatprep.subr.bf16.mxu0 0
  %201 = vmatpush1.bf16.msra.mxu0 0
  %202 = vmatprep.subr.bf16.mxu0 0
  %203 = vmatpush1.bf16.msra.mxu0 0
  %204 = vmatprep.subr.bf16.mxu0 0
  %205 = vmatpush1.bf16.msra.mxu0 0
  %206 = vmatprep.subr.bf16.mxu0 0
  %207 = vmatpush1.bf16.msra.mxu0 0
  %208 = vmatprep.subr.bf16.mxu0 0
  %209 = vmatpush1.bf16.msra.mxu0 0
  %210 = vmatprep.subr.bf16.mxu0 0
  %211 = vmatpush1.bf16.msra.mxu0 0
  %212 = vmatprep.subr.bf16.mxu0 0
  %213 = vmatpush1.bf16.msra.mxu0 0
  %214 = vmatprep.subr.bf16.mxu0 0
  %215 = vmatpush1.bf16.msra.mxu0 0
  %216 = vmatprep.subr.bf16.mxu0 0
  %217 = vmatpush1.bf16.msra.mxu0 0
  %218 = vmatprep.subr.bf16.mxu0 0
  %219 = vmatpush1.bf16.msra.mxu0 0
  %220 = vmatprep.subr.bf16.mxu0 0
  %221 = vmatpush1.bf16.msra.mxu0 0
  %222 = vmatprep.subr.bf16.mxu0 0
  %223 = vmatpush1.bf16.msra.mxu0 0
  %224 = vmatprep.mubr.bf16.mxu0 0
  %225 = vmatmul.mubr.bf16.gmra.mrb[0].mxu0 %v169
  %v226 = vpop.f32.mrb[0].mxu0
  %v227 = vadd.f32 0.0, %v226
  %v228 = vpop.f32.mrb[0].mxu0
  %v229 = vadd.f32 0.0, %v228
  %v230 = vpop.f32.mrb[0].mxu0
  %v231 = vadd.f32 0.0, %v230
  %v232 = vpop.f32.mrb[0].mxu0
  %v233 = vadd.f32 0.0, %v232
  %234 = vmatprep.mubr.bf16.mxu0 0
  %235 = vmatmul.mubr.bf16.gmra.mrb[0].mxu0 %v172
  %v236 = vpop.f32.mrb[0].mxu0
  %v237 = vadd.f32 0.0, %v236
  %v238 = vpop.f32.mrb[0].mxu0
  %v239 = vadd.f32 0.0, %v238
  %v240 = vpop.f32.mrb[0].mxu0
  %v241 = vadd.f32 0.0, %v240
  %v242 = vpop.f32.mrb[0].mxu0
  %v243 = vadd.f32 0.0, %v242
  %244 = vmatprep.mubr.bf16.mxu0 0
  %245 = vmatmul.mubr.bf16.gmra.mrb[0].mxu0 %v175
  %v246 = vpop.f32.mrb[0].mxu0
  %v247 = vadd.f32 0.0, %v246
  %v248 = vpop.f32.mrb[0].mxu0
  %v249 = vadd.f32 0.0, %v248
  %v250 = vpop.f32.mrb[0].mxu0
  %v251 = vadd.f32 0.0, %v250
  %v252 = vpop.f32.mrb[0].mxu0
  %v253 = vadd.f32 0.0, %v252
  %254 = vmatprep.mubr.bf16.mxu0 0
  %255 = vmatmul.mubr.bf16.gmra.mrb[0].mxu0 %v178
  %v256 = vpop.f32.mrb[0].mxu0
  %v257 = vadd.f32 0.0, %v256
  %v258 = vpop.f32.mrb[0].mxu0
  %v259 = vadd.f32 0.0, %v258
  %v260 = vpop.f32.mrb[0].mxu0
  %v261 = vadd.f32 0.0, %v260
  %v262 = vpop.f32.mrb[0].mxu0
  %v263 = vadd.f32 0.0, %v262
  %264 = vmatprep.mubr.bf16.mxu0 0
  %265 = vmatmul.mubr.bf16.gmra.mrb[0].mxu0 %v181
  %v266 = vpop.f32.mrb[0].mxu0
  %v267 = vadd.f32 0.0, %v266
  %v268 = vpop.f32.mrb[0].mxu0
  %v269 = vadd.f32 0.0, %v268
  %v270 = vpop.f32.mrb[0].mxu0
  %v271 = vadd.f32 0.0, %v270
  %v272 = vpop.f32.mrb[0].mxu0
  %v273 = vadd.f32 0.0, %v272
  %274 = vmatprep.mubr.bf16.mxu0 0
  %275 = vmatmul.mubr.bf16.gmra.mrb[0].mxu0 %v184
  %v276 = vpop.f32.mrb[0].mxu0
  %v277 = vadd.f32 0.0, %v276
  %v278 = vpop.f32.mrb[0].mxu0
  %v279 = vadd.f32 0.0, %v278
  %v280 = vpop.f32.mrb[0].mxu0
  %v281 = vadd.f32 0.0, %v280
  %v282 = vpop.f32.mrb[0].mxu0
  %v283 = vadd.f32 0.0, %v282
  %284 = vmatprep.mubr.bf16.mxu0 0
  %285 = vmatmul.mubr.bf16.gmra.mrb[0].mxu0 %v187
  %v286 = vpop.f32.mrb[0].mxu0
  %v287 = vadd.f32 0.0, %v286
  %v288 = vpop.f32.mrb[0].mxu0
  %v289 = vadd.f32 0.0, %v288
  %v290 = vpop.f32.mrb[0].mxu0
  %v291 = vadd.f32 0.0, %v290
  %v292 = vpop.f32.mrb[0].mxu0
  %v293 = vadd.f32 0.0, %v292
  %294 = vmatprep.mubr.bf16.mxu0 0
  %295 = vmatmul.mubr.bf16.gmra.mrb[0].mxu0 %v190
  %v296 = vpop.f32.mrb[0].mxu0
  %v297 = vadd.f32 0.0, %v296
  %v298 = vpop.f32.mrb[0].mxu0
  %v299 = vadd.f32 0.0, %v298
  %v300 = vpop.f32.mrb[0].mxu0
  %v301 = vadd.f32 0.0, %v300
  %v302 = vpop.f32.mrb[0].mxu0
  %v303 = vadd.f32 0.0, %v302
  %304 = vdwg.mxu0
  %305 = vmatprep.subr.bf16.mxu0 %v138
  %306 = vmatpush1.bf16.msra.mxu0 %v137
  %307 = vmatprep.subr.bf16.mxu0 %v142
  %308 = vmatpush1.bf16.msra.mxu0 %v141
  %309 = vmatprep.subr.bf16.mxu0 %v146
  %310 = vmatpush1.bf16.msra.mxu0 %v145
  %311 = vmatprep.subr.bf16.mxu0 %v150
  %312 = vmatpush1.bf16.msra.mxu0 %v149
  %313 = vmatprep.subr.bf16.mxu0 0
  %314 = vmatpush1.bf16.msra.mxu0 0
  %315 = vmatprep.subr.bf16.mxu0 0
  %316 = vmatpush1.bf16.msra.mxu0 0
  %317 = vmatprep.subr.bf16.mxu0 0
  %318 = vmatpush1.bf16.msra.mxu0 0
  %319 = vmatprep.subr.bf16.mxu0 0
  %320 = vmatpush1.bf16.msra.mxu0 0
  %321 = vmatprep.subr.bf16.mxu0 0
  %322 = vmatpush1.bf16.msra.mxu0 0
  %323 = vmatprep.subr.bf16.mxu0 0
  %324 = vmatpush1.bf16.msra.mxu0 0
  %325 = vmatprep.subr.bf16.mxu0 0
  %326 = vmatpush1.bf16.msra.mxu0 0
  %327 = vmatprep.subr.bf16.mxu0 0
  %328 = vmatpush1.bf16.msra.mxu0 0
  %329 = vmatprep.subr.bf16.mxu0 0
  %330 = vmatpush1.bf16.msra.mxu0 0
  %331 = vmatprep.subr.bf16.mxu0 0
  %332 = vmatpush1.bf16.msra.mxu0 0
  %333 = vmatprep.subr.bf16.mxu0 0
  %334 = vmatpush1.bf16.msra.mxu0 0
  %335 = vmatprep.subr.bf16.mxu0 0
  %336 = vmatpush1.bf16.msra.mxu0 0
  %337 = vmatprep.mubr.bf16.mxu0 0
  %338 = vmatmul.mubr.bf16.gmra.mrb[0].mxu0 %v169
  %v339 = vpop.f32.mrb[0].mxu0
  %v340 = vadd.f32 0.0, %v339
  %v341 = vpop.f32.mrb[0].mxu0
  %v342 = vadd.f32 0.0, %v341
  %v343 = vpop.f32.mrb[0].mxu0
  %v344 = vadd.f32 0.0, %v343
  %v345 = vpop.f32.mrb[0].mxu0
  %v346 = vadd.f32 0.0, %v345
  %347 = vmatprep.mubr.bf16.mxu0 0
  %348 = vmatmul.mubr.bf16.gmra.mrb[0].mxu0 %v172
  %v349 = vpop.f32.mrb[0].mxu0
  %v350 = vadd.f32 0.0, %v349
  %v351 = vpop.f32.mrb[0].mxu0
  %v352 = vadd.f32 0.0, %v351
  %v353 = vpop.f32.mrb[0].mxu0
  %v354 = vadd.f32 0.0, %v353
  %v355 = vpop.f32.mrb[0].mxu0
  %v356 = vadd.f32 0.0, %v355
  %357 = vmatprep.mubr.bf16.mxu0 0
  %358 = vmatmul.mubr.bf16.gmra.mrb[0].mxu0 %v175
  %v359 = vpop.f32.mrb[0].mxu0
  %v360 = vadd.f32 0.0, %v359
  %v361 = vpop.f32.mrb[0].mxu0
  %v362 = vadd.f32 0.0, %v361
  %v363 = vpop.f32.mrb[0].mxu0
  %v364 = vadd.f32 0.0, %v363
  %v365 = vpop.f32.mrb[0].mxu0
  %v366 = vadd.f32 0.0, %v365
  %367 = vmatprep.mubr.bf16.mxu0 0
  %368 = vmatmul.mubr.bf16.gmra.mrb[0].mxu0 %v178
  %v369 = vpop.f32.mrb[0].mxu0
  %v370 = vadd.f32 0.0, %v369
  %v371 = vpop.f32.mrb[0].mxu0
  %v372 = vadd.f32 0.0, %v371
  %v373 = vpop.f32.mrb[0].mxu0
  %v374 = vadd.f32 0.0, %v373
  %v375 = vpop.f32.mrb[0].mxu0
  %v376 = vadd.f32 0.0, %v375
  %377 = vmatprep.mubr.bf16.mxu0 0
  %378 = vmatmul.mubr.bf16.gmra.mrb[0].mxu0 %v181
  %v379 = vpop.f32.mrb[0].mxu0
  %v380 = vadd.f32 0.0, %v379
  %v381 = vpop.f32.mrb[0].mxu0
  %v382 = vadd.f32 0.0, %v381
  %v383 = vpop.f32.mrb[0].mxu0
  %v384 = vadd.f32 0.0, %v383
  %v385 = vpop.f32.mrb[0].mxu0
  %v386 = vadd.f32 0.0, %v385
  %387 = vmatprep.mubr.bf16.mxu0 0
  %388 = vmatmul.mubr.bf16.gmra.mrb[0].mxu0 %v184
  %v389 = vpop.f32.mrb[0].mxu0
  %v390 = vadd.f32 0.0, %v389
  %v391 = vpop.f32.mrb[0].mxu0
  %v392 = vadd.f32 0.0, %v391
  %v393 = vpop.f32.mrb[0].mxu0
  %v394 = vadd.f32 0.0, %v393
  %v395 = vpop.f32.mrb[0].mxu0
  %v396 = vadd.f32 0.0, %v395
  %397 = vmatprep.mubr.bf16.mxu0 0
  %398 = vmatmul.mubr.bf16.gmra.mrb[0].mxu0 %v187
  %v399 = vpop.f32.mrb[0].mxu0
  %v400 = vadd.f32 0.0, %v399
  %v401 = vpop.f32.mrb[0].mxu0
  %v402 = vadd.f32 0.0, %v401
  %v403 = vpop.f32.mrb[0].mxu0
  %v404 = vadd.f32 0.0, %v403
  %v405 = vpop.f32.mrb[0].mxu0
  %v406 = vadd.f32 0.0, %v405
  %407 = vmatprep.mubr.bf16.mxu0 0
  %408 = vmatmul.mubr.bf16.gmra.mrb[0].mxu0 %v190
  %v409 = vpop.f32.mrb[0].mxu0
  %v410 = vadd.f32 0.0, %v409
  %v411 = vpop.f32.mrb[0].mxu0
  %v412 = vadd.f32 0.0, %v411
  %v413 = vpop.f32.mrb[0].mxu0
  %v414 = vadd.f32 0.0, %v413
  %v415 = vpop.f32.mrb[0].mxu0
  %v416 = vadd.f32 0.0, %v415
  %417 = vdwg.mxu0
  %v418 = vld [vmem:[%s2] sm:$0xf]
  %v420 = vlaneseq
  %v421 = vshrl.u32 %v420, 7
  %v422 = vsub.s32 0, %v421
  %v423 = vrot.slane %v418, %v422
  %v424 = vlaneseq
  %v425 = vshrl.u32 %v424, 7
  %v426 = vsub.s32 1, %v425
  %v427 = vrot.slane %v418, %v426
  %v428 = vlaneseq
  %v429 = vshrl.u32 %v428, 7
  %v430 = vsub.s32 2, %v429
  %v431 = vrot.slane %v418, %v430
  %v432 = vlaneseq
  %v433 = vshrl.u32 %v432, 7
  %v434 = vsub.s32 3, %v433
  %v435 = vrot.slane %v418, %v434
  %v440 = vmul.f32 %v227, %v423
  %v441 = vmul.f32 %v229, %v427
  %v442 = vmul.f32 %v340, %v431
  %v443 = vmul.f32 %v342, %v435
  %v444 = vmul.f32 %v231, %v423
  %v445 = vmul.f32 %v233, %v427
  %v446 = vmul.f32 %v344, %v431
  %v447 = vmul.f32 %v346, %v435
  %v448 = vmul.f32 %v237, %v423
  %v449 = vmul.f32 %v239, %v427
  %v450 = vmul.f32 %v350, %v431
  %v451 = vmul.f32 %v352, %v435
  %v452 = vmul.f32 %v241, %v423
  %v453 = vmul.f32 %v243, %v427
  %v454 = vmul.f32 %v354, %v431
  %v455 = vmul.f32 %v356, %v435
  %v456 = vmul.f32 %v247, %v423
  %v457 = vmul.f32 %v249, %v427
  %v458 = vmul.f32 %v360, %v431
  %v459 = vmul.f32 %v362, %v435
  %v460 = vmul.f32 %v251, %v423
  %v461 = vmul.f32 %v253, %v427
  %v462 = vmul.f32 %v364, %v431
  %v463 = vmul.f32 %v366, %v435
  %v464 = vmul.f32 %v257, %v423
  %v465 = vmul.f32 %v259, %v427
  %v466 = vmul.f32 %v370, %v431
  %v467 = vmul.f32 %v372, %v435
  %v468 = vmul.f32 %v261, %v423
  %v469 = vmul.f32 %v263, %v427
  %v470 = vmul.f32 %v374, %v431
  %v471 = vmul.f32 %v376, %v435
  %v472 = vmul.f32 %v267, %v423
  %v473 = vmul.f32 %v269, %v427
  %v474 = vmul.f32 %v380, %v431
  %v475 = vmul.f32 %v382, %v435
  %v476 = vmul.f32 %v271, %v423
  %v477 = vmul.f32 %v273, %v427
  %v478 = vmul.f32 %v384, %v431
  %v479 = vmul.f32 %v386, %v435
  %v480 = vmul.f32 %v277, %v423
  %v481 = vmul.f32 %v279, %v427
  %v482 = vmul.f32 %v390, %v431
  %v483 = vmul.f32 %v392, %v435
  %v484 = vmul.f32 %v281, %v423
  %v485 = vmul.f32 %v283, %v427
  %v486 = vmul.f32 %v394, %v431
  %v487 = vmul.f32 %v396, %v435
  %v488 = vmul.f32 %v287, %v423
  %v489 = vmul.f32 %v289, %v427
  %v490 = vmul.f32 %v400, %v431
  %v491 = vmul.f32 %v402, %v435
  %v492 = vmul.f32 %v291, %v423
  %v493 = vmul.f32 %v293, %v427
  %v494 = vmul.f32 %v404, %v431
  %v495 = vmul.f32 %v406, %v435
  %v496 = vmul.f32 %v297, %v423
  %v497 = vmul.f32 %v299, %v427
  %v498 = vmul.f32 %v410, %v431
  %v499 = vmul.f32 %v412, %v435
  %v500 = vmul.f32 %v301, %v423
  %v501 = vmul.f32 %v303, %v427
  %v502 = vmul.f32 %v414, %v431
  %v503 = vmul.f32 %v416, %v435
  %504 = vst [vmem:[%s3] sm:$0xff] %v440
  %505 = vst [vmem:[%s3 + $0x8] sm:$0xff] %v441
  %506 = vst [vmem:[%s3 + $0x10] sm:$0xff] %v442
  %507 = vst [vmem:[%s3 + $0x18] sm:$0xff] %v443
  %508 = vst [vmem:[%s3 + $0x20] sm:$0xff] %v444
  %509 = vst [vmem:[%s3 + $0x28] sm:$0xff] %v445
  %510 = vst [vmem:[%s3 + $0x30] sm:$0xff] %v446
  %511 = vst [vmem:[%s3 + $0x38] sm:$0xff] %v447
  %512 = vst [vmem:[%s3 + $0x40] sm:$0xff] %v448
  %513 = vst [vmem:[%s3 + $0x48] sm:$0xff] %v449
  %514 = vst [vmem:[%s3 + $0x50] sm:$0xff] %v450
  %515 = vst [vmem:[%s3 + $0x58] sm:$0xff] %v451
  %516 = vst [vmem:[%s3 + $0x60] sm:$0xff] %v452
  %517 = vst [vmem:[%s3 + $0x68] sm:$0xff] %v453
  %518 = vst [vmem:[%s3 + $0x70] sm:$0xff] %v454
  %519 = vst [vmem:[%s3 + $0x78] sm:$0xff] %v455
  %520 = vst [vmem:[%s3 + $0x80] sm:$0xff] %v456
  %521 = vst [vmem:[%s3 + $0x88] sm:$0xff] %v457
  %522 = vst [vmem:[%s3 + $0x90] sm:$0xff] %v458
  %523 = vst [vmem:[%s3 + $0x98] sm:$0xff] %v459
  %524 = vst [vmem:[%s3 + $0xa0] sm:$0xff] %v460
  %525 = vst [vmem:[%s3 + $0xa8] sm:$0xff] %v461
  %526 = vst [vmem:[%s3 + $0xb0] sm:$0xff] %v462
  %527 = vst [vmem:[%s3 + $0xb8] sm:$0xff] %v463
  %528 = vst [vmem:[%s3 + $0xc0] sm:$0xff] %v464
  %529 = vst [vmem:[%s3 + $0xc8] sm:$0xff] %v465
  %530 = vst [vmem:[%s3 + $0xd0] sm:$0xff] %v466
  %531 = vst [vmem:[%s3 + $0xd8] sm:$0xff] %v467
  %532 = vst [vmem:[%s3 + $0xe0] sm:$0xff] %v468
  %533 = vst [vmem:[%s3 + $0xe8] sm:$0xff] %v469
  %534 = vst [vmem:[%s3 + $0xf0] sm:$0xff] %v470
  %535 = vst [vmem:[%s3 + $0xf8] sm:$0xff] %v471
  %536 = vst [vmem:[%s3 + $0x100] sm:$0xff] %v472
  %537 = vst [vmem:[%s3 + $0x108] sm:$0xff] %v473
  %538 = vst [vmem:[%s3 + $0x110] sm:$0xff] %v474
  %539 = vst [vmem:[%s3 + $0x118] sm:$0xff] %v475
  %540 = vst [vmem:[%s3 + $0x120] sm:$0xff] %v476
  %541 = vst [vmem:[%s3 + $0x128] sm:$0xff] %v477
  %542 = vst [vmem:[%s3 + $0x130] sm:$0xff] %v478
  %543 = vst [vmem:[%s3 + $0x138] sm:$0xff] %v479
  %544 = vst [vmem:[%s3 + $0x140] sm:$0xff] %v480
  %545 = vst [vmem:[%s3 + $0x148] sm:$0xff] %v481
  %546 = vst [vmem:[%s3 + $0x150] sm:$0xff] %v482
  %547 = vst [vmem:[%s3 + $0x158] sm:$0xff] %v483
  %548 = vst [vmem:[%s3 + $0x160] sm:$0xff] %v484
  %549 = vst [vmem:[%s3 + $0x168] sm:$0xff] %v485
  %550 = vst [vmem:[%s3 + $0x170] sm:$0xff] %v486
  %551 = vst [vmem:[%s3 + $0x178] sm:$0xff] %v487
  %552 = vst [vmem:[%s3 + $0x180] sm:$0xff] %v488
  %553 = vst [vmem:[%s3 + $0x188] sm:$0xff] %v489
  %554 = vst [vmem:[%s3 + $0x190] sm:$0xff] %v490
  %555 = vst [vmem:[%s3 + $0x198] sm:$0xff] %v491
  %556 = vst [vmem:[%s3 + $0x1a0] sm:$0xff] %v492
  %557 = vst [vmem:[%s3 + $0x1a8] sm:$0xff] %v493
  %558 = vst [vmem:[%s3 + $0x1b0] sm:$0xff] %v494
  %559 = vst [vmem:[%s3 + $0x1b8] sm:$0xff] %v495
  %560 = vst [vmem:[%s3 + $0x1c0] sm:$0xff] %v496
  %561 = vst [vmem:[%s3 + $0x1c8] sm:$0xff] %v497
  %562 = vst [vmem:[%s3 + $0x1d0] sm:$0xff] %v498
  %563 = vst [vmem:[%s3 + $0x1d8] sm:$0xff] %v499
  %564 = vst [vmem:[%s3 + $0x1e0] sm:$0xff] %v500
  %565 = vst [vmem:[%s3 + $0x1e8] sm:$0xff] %v501
  %566 = vst [vmem:[%s3 + $0x1f0] sm:$0xff] %v502
  %567 = vst [vmem:[%s3 + $0x1f8] sm:$0xff] %v503
  // Predicated region
  $region14: #{conv_decoder_forward.7} parent=0 // pred_check
    _
  $region15: #{conv_decoder_forward.7} parent=0 // pred_check_branch
    %569 = sbr.rel (0) target = $region17
  $region16: #{conv_decoder_forward.7} parent=0 // pred_region
    _
  $region17: #{conv_decoder_forward.7} parent=0 // pred_fallthru
    _
  // Predicated region
  $region18: #{conv_decoder_forward.7} parent=0 // pred_check
    _
  $region19: #{conv_decoder_forward.7} parent=0 // pred_check_branch
    %571 = sbr.rel (0) target = $region21
  $region20: #{conv_decoder_forward.7} parent=0 // pred_region
    _
  $region21: #{conv_decoder_forward.7} parent=0 // pred_fallthru
    _

// kernel: conv_decoder_forward.8
$region0: #{conv_decoder_forward.8}
  #allocation0 [shape = 'u32[]', space=smem, size = 0x4, offset = 0x4, fixed_abs, tag = 'smem constant byte address 0x4 - core index']
  #allocation1 [shape = 'u32[144,128]{1,0:T(1,128)}', space=vmem, size = 0x12000, scoped, tag = 'internal scratch']
  %s0 = inlined_call_operand.vmem [shape: bf16[512,32], index: 0, kind: input, shape index: {}]
  %s1 = inlined_call_operand.vmem [shape: bf16[32,512], index: 1, kind: input, shape index: {}]
  %s2 = inlined_call_operand.vmem [shape: f32[1,512], index: 2, kind: input, shape index: {}]
  %s3 = inlined_call_operand.vmem [shape: f32[512,512], index: 3, kind: output, shape index: {}]
  %s4 = sld [smem:[#allocation0]]
  $region22: #{conv_decoder_forward.8} parent=0
    _
  %s6 = ssub.s32 1, %s4
  %s7 = scalar_select 0, %s6, %s4
  // Predicated region
  $region2: #{conv_decoder_forward.8} parent=0 // pred_check
    _
  $region3: #{conv_decoder_forward.8} parent=0 // pred_check_branch
    %9 = sbr.rel (0) target = $region5
  $region4: #{conv_decoder_forward.8} parent=0 // pred_region
    _
  $region5: #{conv_decoder_forward.8} parent=0 // pred_fallthru
    _
  // Predicated region
  $region6: #{conv_decoder_forward.8} parent=0 // pred_check
    _
  $region7: #{conv_decoder_forward.8} parent=0 // pred_check_branch
    %11 = sbr.rel (0) target = $region9
  $region8: #{conv_decoder_forward.8} parent=0 // pred_region
    _
  $region9: #{conv_decoder_forward.8} parent=0 // pred_fallthru
    _
  // Predicated region
  $region10: #{conv_decoder_forward.8} parent=0 // pred_check
    _
  $region11: #{conv_decoder_forward.8} parent=0 // pred_check_branch
    %13 = sbr.rel (0) target = $region13
  $region12: #{conv_decoder_forward.8} parent=0 // pred_region
    _
  $region13: #{conv_decoder_forward.8} parent=0 // pred_fallthru
    _
  %v15 = vld [vmem:[%s0] sm:$0xf]
  %v16 = vld [vmem:[%s0 + $0x4] sm:$0xf]
  %v17 = vld [vmem:[%s0 + $0x8] sm:$0xf]
  %v18 = vld [vmem:[%s0 + $0xc] sm:$0xf]
  %v19 = vld [vmem:[%s0 + $0x10] sm:$0xf]
  %v20 = vld [vmem:[%s0 + $0x14] sm:$0xf]
  %v21 = vld [vmem:[%s0 + $0x18] sm:$0xf]
  %v22 = vld [vmem:[%s0 + $0x1c] sm:$0xf]
  %v23 = vld [vmem:[%s0 + $0x20] sm:$0xf]
  %v24 = vld [vmem:[%s0 + $0x24] sm:$0xf]
  %v25 = vld [vmem:[%s0 + $0x28] sm:$0xf]
  %v26 = vld [vmem:[%s0 + $0x2c] sm:$0xf]
  %v27 = vld [vmem:[%s0 + $0x30] sm:$0xf]
  %v28 = vld [vmem:[%s0 + $0x34] sm:$0xf]
  %v29 = vld [vmem:[%s0 + $0x38] sm:$0xf]
  %v30 = vld [vmem:[%s0 + $0x3c] sm:$0xf]
  %v31 = vld [vmem:[%s0 + $0x40] sm:$0xf]
  %v32 = vld [vmem:[%s0 + $0x44] sm:$0xf]
  %v33 = vld [vmem:[%s0 + $0x48] sm:$0xf]
  %v34 = vld [vmem:[%s0 + $0x4c] sm:$0xf]
  %v35 = vld [vmem:[%s0 + $0x50] sm:$0xf]
  %v36 = vld [vmem:[%s0 + $0x54] sm:$0xf]
  %v37 = vld [vmem:[%s0 + $0x58] sm:$0xf]
  %v38 = vld [vmem:[%s0 + $0x5c] sm:$0xf]
  %v39 = vld [vmem:[%s0 + $0x60] sm:$0xf]
  %v40 = vld [vmem:[%s0 + $0x64] sm:$0xf]
  %v41 = vld [vmem:[%s0 + $0x68] sm:$0xf]
  %v42 = vld [vmem:[%s0 + $0x6c] sm:$0xf]
  %v43 = vld [vmem:[%s0 + $0x70] sm:$0xf]
  %v44 = vld [vmem:[%s0 + $0x74] sm:$0xf]
  %v45 = vld [vmem:[%s0 + $0x78] sm:$0xf]
  %v46 = vld [vmem:[%s0 + $0x7c] sm:$0xf]
  %v47 = vld [vmem:[%s0 + $0x80] sm:$0xf]
  %v48 = vld [vmem:[%s0 + $0x84] sm:$0xf]
  %v49 = vld [vmem:[%s0 + $0x88] sm:$0xf]
  %v50 = vld [vmem:[%s0 + $0x8c] sm:$0xf]
  %v51 = vld [vmem:[%s0 + $0x90] sm:$0xf]
  %v52 = vld [vmem:[%s0 + $0x94] sm:$0xf]
  %v53 = vld [vmem:[%s0 + $0x98] sm:$0xf]
  %v54 = vld [vmem:[%s0 + $0x9c] sm:$0xf]
  %v55 = vld [vmem:[%s0 + $0xa0] sm:$0xf]
  %v56 = vld [vmem:[%s0 + $0xa4] sm:$0xf]
  %v57 = vld [vmem:[%s0 + $0xa8] sm:$0xf]
  %v58 = vld [vmem:[%s0 + $0xac] sm:$0xf]
  %v59 = vld [vmem:[%s0 + $0xb0] sm:$0xf]
  %v60 = vld [vmem:[%s0 + $0xb4] sm:$0xf]
  %v61 = vld [vmem:[%s0 + $0xb8] sm:$0xf]
  %v62 = vld [vmem:[%s0 + $0xbc] sm:$0xf]
  %v63 = vld [vmem:[%s0 + $0xc0] sm:$0xf]
  %v64 = vld [vmem:[%s0 + $0xc4] sm:$0xf]
  %v65 = vld [vmem:[%s0 + $0xc8] sm:$0xf]
  %v66 = vld [vmem:[%s0 + $0xcc] sm:$0xf]
  %v67 = vld [vmem:[%s0 + $0xd0] sm:$0xf]
  %v68 = vld [vmem:[%s0 + $0xd4] sm:$0xf]
  %v69 = vld [vmem:[%s0 + $0xd8] sm:$0xf]
  %v70 = vld [vmem:[%s0 + $0xdc] sm:$0xf]
  %v71 = vld [vmem:[%s0 + $0xe0] sm:$0xf]
  %v72 = vld [vmem:[%s0 + $0xe4] sm:$0xf]
  %v73 = vld [vmem:[%s0 + $0xe8] sm:$0xf]
  %v74 = vld [vmem:[%s0 + $0xec] sm:$0xf]
  %v75 = vld [vmem:[%s0 + $0xf0] sm:$0xf]
  %v76 = vld [vmem:[%s0 + $0xf4] sm:$0xf]
  %v77 = vld [vmem:[%s0 + $0xf8] sm:$0xf]
  %v78 = vld [vmem:[%s0 + $0xfc] sm:$0xf]
  %v79 = vld [vmem:[%s1] sm:$0xff]
  %v80 = vld [vmem:[%s1 + $0x8] sm:$0xff]
  %v81 = vld [vmem:[%s1 + $0x10] sm:$0xff]
  %v82 = vld [vmem:[%s1 + $0x18] sm:$0xff]
  %v83 = vld [vmem:[%s1 + $0x20] sm:$0xff]
  %v84 = vld [vmem:[%s1 + $0x28] sm:$0xff]
  %v85 = vld [vmem:[%s1 + $0x30] sm:$0xff]
  %v86 = vld [vmem:[%s1 + $0x38] sm:$0xff]
  %v151 = vunpack.c.l.b16 %v15
  %v152 = vunpack.c.l.b16 %v16
  %v153 = vunpack.c.l.b16 %v17
  %v154 = vunpack.c.l.b16 %v18
  %v155 = vunpack.c.l.b16 %v19
  %v156 = vunpack.c.l.b16 %v20
  %v157 = vunpack.c.l.b16 %v21
  %v158 = vunpack.c.l.b16 %v22
  %v159 = vunpack.c.l.b16 %v23
  %v160 = vunpack.c.l.b16 %v24
  %v161 = vunpack.c.l.b16 %v25
  %v162 = vunpack.c.l.b16 %v26
  %v163 = vunpack.c.l.b16 %v27
  %v164 = vunpack.c.l.b16 %v28
  %v165 = vunpack.c.l.b16 %v29
  %v166 = vunpack.c.l.b16 %v30
  %v167 = vunpack.c.l.b16 %v31
  %v168 = vunpack.c.l.b16 %v32
  %v169 = vunpack.c.l.b16 %v33
  %v170 = vunpack.c.l.b16 %v34
  %v171 = vunpack.c.l.b16 %v35
  %v172 = vunpack.c.l.b16 %v36
  %v173 = vunpack.c.l.b16 %v37
  %v174 = vunpack.c.l.b16 %v38
  %v175 = vunpack.c.l.b16 %v39
  %v176 = vunpack.c.l.b16 %v40
  %v177 = vunpack.c.l.b16 %v41
  %v178 = vunpack.c.l.b16 %v42
  %v179 = vunpack.c.l.b16 %v43
  %v180 = vunpack.c.l.b16 %v44
  %v181 = vunpack.c.l.b16 %v45
  %v182 = vunpack.c.l.b16 %v46
  %v183 = vunpack.c.l.b16 %v47
  %v184 = vunpack.c.l.b16 %v48
  %v185 = vunpack.c.l.b16 %v49
  %v186 = vunpack.c.l.b16 %v50
  %v187 = vunpack.c.l.b16 %v51
  %v188 = vunpack.c.l.b16 %v52
  %v189 = vunpack.c.l.b16 %v53
  %v190 = vunpack.c.l.b16 %v54
  %v191 = vunpack.c.l.b16 %v55
  %v192 = vunpack.c.l.b16 %v56
  %v193 = vunpack.c.l.b16 %v57
  %v194 = vunpack.c.l.b16 %v58
  %v195 = vunpack.c.l.b16 %v59
  %v196 = vunpack.c.l.b16 %v60
  %v197 = vunpack.c.l.b16 %v61
  %v198 = vunpack.c.l.b16 %v62
  %v199 = vunpack.c.l.b16 %v63
  %v200 = vunpack.c.l.b16 %v64
  %v201 = vunpack.c.l.b16 %v65
  %v202 = vunpack.c.l.b16 %v66
  %v203 = vunpack.c.l.b16 %v67
  %v204 = vunpack.c.l.b16 %v68
  %v205 = vunpack.c.l.b16 %v69
  %v206 = vunpack.c.l.b16 %v70
  %v207 = vunpack.c.l.b16 %v71
  %v208 = vunpack.c.l.b16 %v72
  %v209 = vunpack.c.l.b16 %v73
  %v210 = vunpack.c.l.b16 %v74
  %v211 = vunpack.c.l.b16 %v75
  %v212 = vunpack.c.l.b16 %v76
  %v213 = vunpack.c.l.b16 %v77
  %v214 = vunpack.c.l.b16 %v78
  %v215 = vpack.c.b16 %v152, %v151
  %v216 = vpack.c.b16 %v154, %v153
  %v217 = vpack.c.b16 %v156, %v155
  %v218 = vpack.c.b16 %v158, %v157
  %v219 = vpack.c.b16 %v160, %v159
  %v220 = vpack.c.b16 %v162, %v161
  %v221 = vpack.c.b16 %v164, %v163
  %v222 = vpack.c.b16 %v166, %v165
  %v223 = vpack.c.b16 %v168, %v167
  %v224 = vpack.c.b16 %v170, %v169
  %v225 = vpack.c.b16 %v172, %v171
  %v226 = vpack.c.b16 %v174, %v173
  %v227 = vpack.c.b16 %v176, %v175
  %v228 = vpack.c.b16 %v178, %v177
  %v229 = vpack.c.b16 %v180, %v179
  %v230 = vpack.c.b16 %v182, %v181
  %v231 = vpack.c.b16 %v184, %v183
  %v232 = vpack.c.b16 %v186, %v185
  %v233 = vpack.c.b16 %v188, %v187
  %v234 = vpack.c.b16 %v190, %v189
  %v235 = vpack.c.b16 %v192, %v191
  %v236 = vpack.c.b16 %v194, %v193
  %v237 = vpack.c.b16 %v196, %v195
  %v238 = vpack.c.b16 %v198, %v197
  %v239 = vpack.c.b16 %v200, %v199
  %v240 = vpack.c.b16 %v202, %v201
  %v241 = vpack.c.b16 %v204, %v203
  %v242 = vpack.c.b16 %v206, %v205
  %v243 = vpack.c.b16 %v208, %v207
  %v244 = vpack.c.b16 %v210, %v209
  %v245 = vpack.c.b16 %v212, %v211
  %v246 = vpack.c.b16 %v214, %v213
  %v255 = vunpack.c.l.b16 %v79
  %v256 = vunpack.c.h.b16 %v79
  %v257 = vunpack.c.l.b16 %v80
  %v258 = vunpack.c.h.b16 %v80
  %v259 = vunpack.c.l.b16 %v81
  %v260 = vunpack.c.h.b16 %v81
  %v261 = vunpack.c.l.b16 %v82
  %v262 = vunpack.c.h.b16 %v82
  %v263 = vunpack.c.l.b16 %v83
  %v264 = vunpack.c.h.b16 %v83
  %v265 = vunpack.c.l.b16 %v84
  %v266 = vunpack.c.h.b16 %v84
  %v267 = vunpack.c.l.b16 %v85
  %v268 = vunpack.c.h.b16 %v85
  %v269 = vunpack.c.l.b16 %v86
  %v270 = vunpack.c.h.b16 %v86
  %v271 = vpack.c.b16 %v259, %v255
  %v272 = vpack.c.b16 %v260, %v256
  %v273 = vpack.c.b16 %v261, %v257
  %v274 = vpack.c.b16 %v262, %v258
  %v275 = vpack.c.b16 %v267, %v263
  %v276 = vpack.c.b16 %v268, %v264
  %v277 = vpack.c.b16 %v269, %v265
  %v278 = vpack.c.b16 %v270, %v266
  %vm287 = vcmask 261120
  %v289 = vsel %vm287, %v215, 0
  %v292 = vsel %vm287, %v216, 0
  %v295 = vsel %vm287, %v217, 0
  %v298 = vsel %vm287, %v218, 0
  %v301 = vsel %vm287, %v219, 0
  %v304 = vsel %vm287, %v220, 0
  %v307 = vsel %vm287, %v221, 0
  %v310 = vsel %vm287, %v222, 0
  %v313 = vsel %vm287, %v223, 0
  %v316 = vsel %vm287, %v224, 0
  %v319 = vsel %vm287, %v225, 0
  %v322 = vsel %vm287, %v226, 0
  %v325 = vsel %vm287, %v227, 0
  %v328 = vsel %vm287, %v228, 0
  %v331 = vsel %vm287, %v229, 0
  %v334 = vsel %vm287, %v230, 0
  %v337 = vsel %vm287, %v231, 0
  %v340 = vsel %vm287, %v232, 0
  %v343 = vsel %vm287, %v233, 0
  %v346 = vsel %vm287, %v234, 0
  %v349 = vsel %vm287, %v235, 0
  %v352 = vsel %vm287, %v236, 0
  %v355 = vsel %vm287, %v237, 0
  %v358 = vsel %vm287, %v238, 0
  %v361 = vsel %vm287, %v239, 0
  %v364 = vsel %vm287, %v240, 0
  %v367 = vsel %vm287, %v241, 0
  %v370 = vsel %vm287, %v242, 0
  %v373 = vsel %vm287, %v243, 0
  %v376 = vsel %vm287, %v244, 0
  %v379 = vsel %vm287, %v245, 0
  %v382 = vsel %vm287, %v246, 0
  %384 = vmatprep.subr.bf16.mxu0 %v272
  %385 = vmatpush1.bf16.msra.mxu0 %v271
  %386 = vmatprep.subr.bf16.mxu0 %v276
  %387 = vmatpush1.bf16.msra.mxu0 %v275
  %388 = vmatprep.subr.bf16.mxu0 0
  %389 = vmatpush1.bf16.msra.mxu0 0
  %390 = vmatprep.subr.bf16.mxu0 0
  %391 = vmatpush1.bf16.msra.mxu0 0
  %392 = vmatprep.subr.bf16.mxu0 0
  %393 = vmatpush1.bf16.msra.mxu0 0
  %394 = vmatprep.subr.bf16.mxu0 0
  %395 = vmatpush1.bf16.msra.mxu0 0
  %396 = vmatprep.subr.bf16.mxu0 0
  %397 = vmatpush1.bf16.msra.mxu0 0
  %398 = vmatprep.subr.bf16.mxu0 0
  %399 = vmatpush1.bf16.msra.mxu0 0
  %400 = vmatprep.subr.bf16.mxu0 0
  %401 = vmatpush1.bf16.msra.mxu0 0
  %402 = vmatprep.subr.bf16.mxu0 0
  %403 = vmatpush1.bf16.msra.mxu0 0
  %404 = vmatprep.subr.bf16.mxu0 0
  %405 = vmatpush1.bf16.msra.mxu0 0
  %406 = vmatprep.subr.bf16.mxu0 0
  %407 = vmatpush1.bf16.msra.mxu0 0
  %408 = vmatprep.subr.bf16.mxu0 0
  %409 = vmatpush1.bf16.msra.mxu0 0
  %410 = vmatprep.subr.bf16.mxu0 0
  %411 = vmatpush1.bf16.msra.mxu0 0
  %412 = vmatprep.subr.bf16.mxu0 0
  %413 = vmatpush1.bf16.msra.mxu0 0
  %414 = vmatprep.subr.bf16.mxu0 0
  %415 = vmatpush1.bf16.msra.mxu0 0
  %416 = vmatprep.mubr.bf16.mxu0 0
  %417 = vmatmul.mubr.bf16.gmra.mrb[0].mxu0 %v289
  %v418 = vpop.f32.mrb[0].mxu0
  %v419 = vadd.f32 0.0, %v418
  %v420 = vpop.f32.mrb[0].mxu0
  %v421 = vadd.f32 0.0, %v420
  %v422 = vpop.f32.mrb[0].mxu0
  %v423 = vadd.f32 0.0, %v422
  %v424 = vpop.f32.mrb[0].mxu0
  %v425 = vadd.f32 0.0, %v424
  %426 = vmatprep.mubr.bf16.mxu0 0
  %427 = vmatmul.mubr.bf16.gmra.mrb[0].mxu0 %v292
  %v428 = vpop.f32.mrb[0].mxu0
  %v429 = vadd.f32 0.0, %v428
  %v430 = vpop.f32.mrb[0].mxu0
  %v431 = vadd.f32 0.0, %v430
  %v432 = vpop.f32.mrb[0].mxu0
  %v433 = vadd.f32 0.0, %v432
  %v434 = vpop.f32.mrb[0].mxu0
  %v435 = vadd.f32 0.0, %v434
  %436 = vmatprep.mubr.bf16.mxu0 0
  %437 = vmatmul.mubr.bf16.gmra.mrb[0].mxu0 %v295
  %v438 = vpop.f32.mrb[0].mxu0
  %v439 = vadd.f32 0.0, %v438
  %v440 = vpop.f32.mrb[0].mxu0
  %v441 = vadd.f32 0.0, %v440
  %v442 = vpop.f32.mrb[0].mxu0
  %v443 = vadd.f32 0.0, %v442
  %v444 = vpop.f32.mrb[0].mxu0
  %v445 = vadd.f32 0.0, %v444
  %446 = vmatprep.mubr.bf16.mxu0 0
  %447 = vmatmul.mubr.bf16.gmra.mrb[0].mxu0 %v298
  %v448 = vpop.f32.mrb[0].mxu0
  %v449 = vadd.f32 0.0, %v448
  %v450 = vpop.f32.mrb[0].mxu0
  %v451 = vadd.f32 0.0, %v450
  %v452 = vpop.f32.mrb[0].mxu0
  %v453 = vadd.f32 0.0, %v452
  %v454 = vpop.f32.mrb[0].mxu0
  %v455 = vadd.f32 0.0, %v454
  %456 = vmatprep.mubr.bf16.mxu0 0
  %457 = vmatmul.mubr.bf16.gmra.mrb[0].mxu0 %v301
  %v458 = vpop.f32.mrb[0].mxu0
  %v459 = vadd.f32 0.0, %v458
  %v460 = vpop.f32.mrb[0].mxu0
  %v461 = vadd.f32 0.0, %v460
  %v462 = vpop.f32.mrb[0].mxu0
  %v463 = vadd.f32 0.0, %v462
  %v464 = vpop.f32.mrb[0].mxu0
  %v465 = vadd.f32 0.0, %v464
  %466 = vmatprep.mubr.bf16.mxu0 0
  %467 = vmatmul.mubr.bf16.gmra.mrb[0].mxu0 %v304
  %v468 = vpop.f32.mrb[0].mxu0
  %v469 = vadd.f32 0.0, %v468
  %v470 = vpop.f32.mrb[0].mxu0
  %v471 = vadd.f32 0.0, %v470
  %v472 = vpop.f32.mrb[0].mxu0
  %v473 = vadd.f32 0.0, %v472
  %v474 = vpop.f32.mrb[0].mxu0
  %v475 = vadd.f32 0.0, %v474
  %476 = vmatprep.mubr.bf16.mxu0 0
  %477 = vmatmul.mubr.bf16.gmra.mrb[0].mxu0 %v307
  %v478 = vpop.f32.mrb[0].mxu0
  %v479 = vadd.f32 0.0, %v478
  %v480 = vpop.f32.mrb[0].mxu0
  %v481 = vadd.f32 0.0, %v480
  %v482 = vpop.f32.mrb[0].mxu0
  %v483 = vadd.f32 0.0, %v482
  %v484 = vpop.f32.mrb[0].mxu0
  %v485 = vadd.f32 0.0, %v484
  %486 = vmatprep.mubr.bf16.mxu0 0
  %487 = vmatmul.mubr.bf16.gmra.mrb[0].mxu0 %v310
  %v488 = vpop.f32.mrb[0].mxu0
  %v489 = vadd.f32 0.0, %v488
  %v490 = vpop.f32.mrb[0].mxu0
  %v491 = vadd.f32 0.0, %v490
  %v492 = vpop.f32.mrb[0].mxu0
  %v493 = vadd.f32 0.0, %v492
  %v494 = vpop.f32.mrb[0].mxu0
  %v495 = vadd.f32 0.0, %v494
  %496 = vmatprep.mubr.bf16.mxu0 0
  %497 = vmatmul.mubr.bf16.gmra.mrb[0].mxu0 %v313
  %v498 = vpop.f32.mrb[0].mxu0
  %v499 = vadd.f32 0.0, %v498
  %v500 = vpop.f32.mrb[0].mxu0
  %v501 = vadd.f32 0.0, %v500
  %v502 = vpop.f32.mrb[0].mxu0
  %v503 = vadd.f32 0.0, %v502
  %v504 = vpop.f32.mrb[0].mxu0
  %v505 = vadd.f32 0.0, %v504
  %506 = vmatprep.mubr.bf16.mxu0 0
  %507 = vmatmul.mubr.bf16.gmra.mrb[0].mxu0 %v316
  %v508 = vpop.f32.mrb[0].mxu0
  %v509 = vadd.f32 0.0, %v508
  %v510 = vpop.f32.mrb[0].mxu0
  %v511 = vadd.f32 0.0, %v510
  %v512 = vpop.f32.mrb[0].mxu0
  %v513 = vadd.f32 0.0, %v512
  %v514 = vpop.f32.mrb[0].mxu0
  %v515 = vadd.f32 0.0, %v514
  %516 = vmatprep.mubr.bf16.mxu0 0
  %517 = vmatmul.mubr.bf16.gmra.mrb[0].mxu0 %v319
  %v518 = vpop.f32.mrb[0].mxu0
  %v519 = vadd.f32 0.0, %v518
  %v520 = vpop.f32.mrb[0].mxu0
  %v521 = vadd.f32 0.0, %v520
  %v522 = vpop.f32.mrb[0].mxu0
  %v523 = vadd.f32 0.0, %v522
  %v524 = vpop.f32.mrb[0].mxu0
  %v525 = vadd.f32 0.0, %v524
  %526 = vmatprep.mubr.bf16.mxu0 0
  %527 = vmatmul.mubr.bf16.gmra.mrb[0].mxu0 %v322
  %v528 = vpop.f32.mrb[0].mxu0
  %v529 = vadd.f32 0.0, %v528
  %v530 = vpop.f32.mrb[0].mxu0
  %v531 = vadd.f32 0.0, %v530
  %v532 = vpop.f32.mrb[0].mxu0
  %v533 = vadd.f32 0.0, %v532
  %v534 = vpop.f32.mrb[0].mxu0
  %v535 = vadd.f32 0.0, %v534
  %536 = vmatprep.mubr.bf16.mxu0 0
  %537 = vmatmul.mubr.bf16.gmra.mrb[0].mxu0 %v325
  %v538 = vpop.f32.mrb[0].mxu0
  %v539 = vadd.f32 0.0, %v538
  %v540 = vpop.f32.mrb[0].mxu0
  %v541 = vadd.f32 0.0, %v540
  %v542 = vpop.f32.mrb[0].mxu0
  %v543 = vadd.f32 0.0, %v542
  %v544 = vpop.f32.mrb[0].mxu0
  %v545 = vadd.f32 0.0, %v544
  %546 = vmatprep.mubr.bf16.mxu0 0
  %547 = vmatmul.mubr.bf16.gmra.mrb[0].mxu0 %v328
  %v548 = vpop.f32.mrb[0].mxu0
  %v549 = vadd.f32 0.0, %v548
  %v550 = vpop.f32.mrb[0].mxu0
  %v551 = vadd.f32 0.0, %v550
  %v552 = vpop.f32.mrb[0].mxu0
  %v553 = vadd.f32 0.0, %v552
  %v554 = vpop.f32.mrb[0].mxu0
  %v555 = vadd.f32 0.0, %v554
  %556 = vmatprep.mubr.bf16.mxu0 0
  %557 = vmatmul.mubr.bf16.gmra.mrb[0].mxu0 %v331
  %v558 = vpop.f32.mrb[0].mxu0
  %v559 = vadd.f32 0.0, %v558
  %v560 = vpop.f32.mrb[0].mxu0
  %v561 = vadd.f32 0.0, %v560
  %v562 = vpop.f32.mrb[0].mxu0
  %v563 = vadd.f32 0.0, %v562
  %v564 = vpop.f32.mrb[0].mxu0
  %v565 = vadd.f32 0.0, %v564
  %566 = vmatprep.mubr.bf16.mxu0 0
  %567 = vmatmul.mubr.bf16.gmra.mrb[0].mxu0 %v334
  %v568 = vpop.f32.mrb[0].mxu0
  %v569 = vadd.f32 0.0, %v568
  %v570 = vpop.f32.mrb[0].mxu0
  %v571 = vadd.f32 0.0, %v570
  %v572 = vpop.f32.mrb[0].mxu0
  %v573 = vadd.f32 0.0, %v572
  %v574 = vpop.f32.mrb[0].mxu0
  %v575 = vadd.f32 0.0, %v574
  %576 = vmatprep.mubr.bf16.mxu0 0
  %577 = vmatmul.mubr.bf16.gmra.mrb[0].mxu0 %v337
  %v578 = vpop.f32.mrb[0].mxu0
  %v579 = vadd.f32 0.0, %v578
  %v580 = vpop.f32.mrb[0].mxu0
  %v581 = vadd.f32 0.0, %v580
  %v582 = vpop.f32.mrb[0].mxu0
  %v583 = vadd.f32 0.0, %v582
  %v584 = vpop.f32.mrb[0].mxu0
  %v585 = vadd.f32 0.0, %v584
  %586 = vmatprep.mubr.bf16.mxu0 0
  %587 = vmatmul.mubr.bf16.gmra.mrb[0].mxu0 %v340
  %v588 = vpop.f32.mrb[0].mxu0
  %v589 = vadd.f32 0.0, %v588
  %v590 = vpop.f32.mrb[0].mxu0
  %v591 = vadd.f32 0.0, %v590
  %v592 = vpop.f32.mrb[0].mxu0
  %v593 = vadd.f32 0.0, %v592
  %v594 = vpop.f32.mrb[0].mxu0
  %v595 = vadd.f32 0.0, %v594
  %596 = vmatprep.mubr.bf16.mxu0 0
  %597 = vmatmul.mubr.bf16.gmra.mrb[0].mxu0 %v343
  %v598 = vpop.f32.mrb[0].mxu0
  %v599 = vadd.f32 0.0, %v598
  %v600 = vpop.f32.mrb[0].mxu0
  %v601 = vadd.f32 0.0, %v600
  %v602 = vpop.f32.mrb[0].mxu0
  %v603 = vadd.f32 0.0, %v602
  %v604 = vpop.f32.mrb[0].mxu0
  %v605 = vadd.f32 0.0, %v604
  %606 = vmatprep.mubr.bf16.mxu0 0
  %607 = vmatmul.mubr.bf16.gmra.mrb[0].mxu0 %v346
  %v608 = vpop.f32.mrb[0].mxu0
  %v609 = vadd.f32 0.0, %v608
  %v610 = vpop.f32.mrb[0].mxu0
  %v611 = vadd.f32 0.0, %v610
  %v612 = vpop.f32.mrb[0].mxu0
  %v613 = vadd.f32 0.0, %v612
  %v614 = vpop.f32.mrb[0].mxu0
  %v615 = vadd.f32 0.0, %v614
  %616 = vmatprep.mubr.bf16.mxu0 0
  %617 = vmatmul.mubr.bf16.gmra.mrb[0].mxu0 %v349
  %v618 = vpop.f32.mrb[0].mxu0
  %v619 = vadd.f32 0.0, %v618
  %v620 = vpop.f32.mrb[0].mxu0
  %v621 = vadd.f32 0.0, %v620
  %v622 = vpop.f32.mrb[0].mxu0
  %v623 = vadd.f32 0.0, %v622
  %v624 = vpop.f32.mrb[0].mxu0
  %v625 = vadd.f32 0.0, %v624
  %626 = vmatprep.mubr.bf16.mxu0 0
  %627 = vmatmul.mubr.bf16.gmra.mrb[0].mxu0 %v352
  %v628 = vpop.f32.mrb[0].mxu0
  %v629 = vadd.f32 0.0, %v628
  %v630 = vpop.f32.mrb[0].mxu0
  %v631 = vadd.f32 0.0, %v630
  %v632 = vpop.f32.mrb[0].mxu0
  %v633 = vadd.f32 0.0, %v632
  %v634 = vpop.f32.mrb[0].mxu0
  %v635 = vadd.f32 0.0, %v634
  %636 = vmatprep.mubr.bf16.mxu0 0
  %637 = vmatmul.mubr.bf16.gmra.mrb[0].mxu0 %v355
  %v638 = vpop.f32.mrb[0].mxu0
  %v639 = vadd.f32 0.0, %v638
  %v640 = vpop.f32.mrb[0].mxu0
  %v641 = vadd.f32 0.0, %v640
  %v642 = vpop.f32.mrb[0].mxu0
  %v643 = vadd.f32 0.0, %v642
  %v644 = vpop.f32.mrb[0].mxu0
  %v645 = vadd.f32 0.0, %v644
  %646 = vmatprep.mubr.bf16.mxu0 0
  %647 = vmatmul.mubr.bf16.gmra.mrb[0].mxu0 %v358
  %v648 = vpop.f32.mrb[0].mxu0
  %v649 = vadd.f32 0.0, %v648
  %v650 = vpop.f32.mrb[0].mxu0
  %v651 = vadd.f32 0.0, %v650
  %v652 = vpop.f32.mrb[0].mxu0
  %v653 = vadd.f32 0.0, %v652
  %v654 = vpop.f32.mrb[0].mxu0
  %v655 = vadd.f32 0.0, %v654
  %656 = vmatprep.mubr.bf16.mxu0 0
  %657 = vmatmul.mubr.bf16.gmra.mrb[0].mxu0 %v361
  %v658 = vpop.f32.mrb[0].mxu0
  %v659 = vadd.f32 0.0, %v658
  %v660 = vpop.f32.mrb[0].mxu0
  %v661 = vadd.f32 0.0, %v660
  %v662 = vpop.f32.mrb[0].mxu0
  %v663 = vadd.f32 0.0, %v662
  %v664 = vpop.f32.mrb[0].mxu0
  %v665 = vadd.f32 0.0, %v664
  %666 = vmatprep.mubr.bf16.mxu0 0
  %667 = vmatmul.mubr.bf16.gmra.mrb[0].mxu0 %v364
  %v668 = vpop.f32.mrb[0].mxu0
  %v669 = vadd.f32 0.0, %v668
  %v670 = vpop.f32.mrb[0].mxu0
  %v671 = vadd.f32 0.0, %v670
  %v672 = vpop.f32.mrb[0].mxu0
  %v673 = vadd.f32 0.0, %v672
  %v674 = vpop.f32.mrb[0].mxu0
  %v675 = vadd.f32 0.0, %v674
  %676 = vmatprep.mubr.bf16.mxu0 0
  %677 = vmatmul.mubr.bf16.gmra.mrb[0].mxu0 %v367
  %v678 = vpop.f32.mrb[0].mxu0
  %v679 = vadd.f32 0.0, %v678
  %v680 = vpop.f32.mrb[0].mxu0
  %v681 = vadd.f32 0.0, %v680
  %v682 = vpop.f32.mrb[0].mxu0
  %v683 = vadd.f32 0.0, %v682
  %v684 = vpop.f32.mrb[0].mxu0
  %v685 = vadd.f32 0.0, %v684
  %686 = vmatprep.mubr.bf16.mxu0 0
  %687 = vmatmul.mubr.bf16.gmra.mrb[0].mxu0 %v370
  %v688 = vpop.f32.mrb[0].mxu0
  %v689 = vadd.f32 0.0, %v688
  %v690 = vpop.f32.mrb[0].mxu0
  %v691 = vadd.f32 0.0, %v690
  %v692 = vpop.f32.mrb[0].mxu0
  %v693 = vadd.f32 0.0, %v692
  %v694 = vpop.f32.mrb[0].mxu0
  %v695 = vadd.f32 0.0, %v694
  %696 = vmatprep.mubr.bf16.mxu0 0
  %697 = vmatmul.mubr.bf16.gmra.mrb[0].mxu0 %v373
  %v698 = vpop.f32.mrb[0].mxu0
  %v699 = vadd.f32 0.0, %v698
  %v700 = vpop.f32.mrb[0].mxu0
  %v701 = vadd.f32 0.0, %v700
  %v702 = vpop.f32.mrb[0].mxu0
  %v703 = vadd.f32 0.0, %v702
  %v704 = vpop.f32.mrb[0].mxu0
  %v705 = vadd.f32 0.0, %v704
  %706 = vmatprep.mubr.bf16.mxu0 0
  %707 = vmatmul.mubr.bf16.gmra.mrb[0].mxu0 %v376
  %v708 = vpop.f32.mrb[0].mxu0
  %v709 = vadd.f32 0.0, %v708
  %v710 = vpop.f32.mrb[0].mxu0
  %v711 = vadd.f32 0.0, %v710
  %v712 = vpop.f32.mrb[0].mxu0
  %v713 = vadd.f32 0.0, %v712
  %v714 = vpop.f32.mrb[0].mxu0
  %v715 = vadd.f32 0.0, %v714
  %716 = vmatprep.mubr.bf16.mxu0 0
  %717 = vmatmul.mubr.bf16.gmra.mrb[0].mxu0 %v379
  %v718 = vpop.f32.mrb[0].mxu0
  %v719 = vadd.f32 0.0, %v718
  %v720 = vpop.f32.mrb[0].mxu0
  %v721 = vadd.f32 0.0, %v720
  %v722 = vpop.f32.mrb[0].mxu0
  %v723 = vadd.f32 0.0, %v722
  %v724 = vpop.f32.mrb[0].mxu0
  %v725 = vadd.f32 0.0, %v724
  %726 = vmatprep.mubr.bf16.mxu0 0
  %727 = vmatmul.mubr.bf16.gmra.mrb[0].mxu0 %v382
  %v728 = vpop.f32.mrb[0].mxu0
  %v729 = vadd.f32 0.0, %v728
  %v730 = vpop.f32.mrb[0].mxu0
  %v731 = vadd.f32 0.0, %v730
  %v732 = vpop.f32.mrb[0].mxu0
  %v733 = vadd.f32 0.0, %v732
  %v734 = vpop.f32.mrb[0].mxu0
  %v735 = vadd.f32 0.0, %v734
  %736 = vdwg.mxu0
  %737 = vmatprep.subr.bf16.mxu0 %v274
  %738 = vmatpush1.bf16.msra.mxu0 %v273
  %739 = vmatprep.subr.bf16.mxu0 %v278
  %740 = vmatpush1.bf16.msra.mxu0 %v277
  %741 = vmatprep.subr.bf16.mxu0 0
  %742 = vmatpush1.bf16.msra.mxu0 0
  %743 = vmatprep.subr.bf16.mxu0 0
  %744 = vmatpush1.bf16.msra.mxu0 0
  %745 = vmatprep.subr.bf16.mxu0 0
  %746 = vmatpush1.bf16.msra.mxu0 0
  %747 = vmatprep.subr.bf16.mxu0 0
  %748 = vmatpush1.bf16.msra.mxu0 0
  %749 = vmatprep.subr.bf16.mxu0 0
  %750 = vmatpush1.bf16.msra.mxu0 0
  %751 = vmatprep.subr.bf16.mxu0 0
  %752 = vmatpush1.bf16.msra.mxu0 0
  %753 = vmatprep.subr.bf16.mxu0 0
  %754 = vmatpush1.bf16.msra.mxu0 0
  %755 = vmatprep.subr.bf16.mxu0 0
  %756 = vmatpush1.bf16.msra.mxu0 0
  %757 = vmatprep.subr.bf16.mxu0 0
  %758 = vmatpush1.bf16.msra.mxu0 0
  %759 = vmatprep.subr.bf16.mxu0 0
  %760 = vmatpush1.bf16.msra.mxu0 0
  %761 = vmatprep.subr.bf16.mxu0 0
  %762 = vmatpush1.bf16.msra.mxu0 0
  %763 = vmatprep.subr.bf16.mxu0 0
  %764 = vmatpush1.bf16.msra.mxu0 0
  %765 = vmatprep.subr.bf16.mxu0 0
  %766 = vmatpush1.bf16.msra.mxu0 0
  %767 = vmatprep.subr.bf16.mxu0 0
  %768 = vmatpush1.bf16.msra.mxu0 0
  %769 = vmatprep.mubr.bf16.mxu0 0
  %770 = vmatmul.mubr.bf16.gmra.mrb[0].mxu0 %v289
  %v771 = vpop.f32.mrb[0].mxu0
  %v772 = vadd.f32 0.0, %v771
  %v773 = vpop.f32.mrb[0].mxu0
  %v774 = vadd.f32 0.0, %v773
  %v775 = vpop.f32.mrb[0].mxu0
  %v776 = vadd.f32 0.0, %v775
  %v777 = vpop.f32.mrb[0].mxu0
  %v778 = vadd.f32 0.0, %v777
  %779 = vmatprep.mubr.bf16.mxu0 0
  %780 = vmatmul.mubr.bf16.gmra.mrb[0].mxu0 %v292
  %v781 = vpop.f32.mrb[0].mxu0
  %v782 = vadd.f32 0.0, %v781
  %v783 = vpop.f32.mrb[0].mxu0
  %v784 = vadd.f32 0.0, %v783
  %v785 = vpop.f32.mrb[0].mxu0
  %v786 = vadd.f32 0.0, %v785
  %v787 = vpop.f32.mrb[0].mxu0
  %v788 = vadd.f32 0.0, %v787
  %789 = vmatprep.mubr.bf16.mxu0 0
  %790 = vmatmul.mubr.bf16.gmra.mrb[0].mxu0 %v295
  %v791 = vpop.f32.mrb[0].mxu0
  %v792 = vadd.f32 0.0, %v791
  %v793 = vpop.f32.mrb[0].mxu0
  %v794 = vadd.f32 0.0, %v793
  %v795 = vpop.f32.mrb[0].mxu0
  %v796 = vadd.f32 0.0, %v795
  %v797 = vpop.f32.mrb[0].mxu0
  %v798 = vadd.f32 0.0, %v797
  %799 = vmatprep.mubr.bf16.mxu0 0
  %800 = vmatmul.mubr.bf16.gmra.mrb[0].mxu0 %v298
  %v801 = vpop.f32.mrb[0].mxu0
  %v802 = vadd.f32 0.0, %v801
  %v803 = vpop.f32.mrb[0].mxu0
  %v804 = vadd.f32 0.0, %v803
  %v805 = vpop.f32.mrb[0].mxu0
  %v806 = vadd.f32 0.0, %v805
  %v807 = vpop.f32.mrb[0].mxu0
  %v808 = vadd.f32 0.0, %v807
  %809 = vmatprep.mubr.bf16.mxu0 0
  %810 = vmatmul.mubr.bf16.gmra.mrb[0].mxu0 %v301
  %v811 = vpop.f32.mrb[0].mxu0
  %v812 = vadd.f32 0.0, %v811
  %v813 = vpop.f32.mrb[0].mxu0
  %v814 = vadd.f32 0.0, %v813
  %v815 = vpop.f32.mrb[0].mxu0
  %v816 = vadd.f32 0.0, %v815
  %v817 = vpop.f32.mrb[0].mxu0
  %v818 = vadd.f32 0.0, %v817
  %819 = vmatprep.mubr.bf16.mxu0 0
  %820 = vmatmul.mubr.bf16.gmra.mrb[0].mxu0 %v304
  %v821 = vpop.f32.mrb[0].mxu0
  %v822 = vadd.f32 0.0, %v821
  %v823 = vpop.f32.mrb[0].mxu0
  %v824 = vadd.f32 0.0, %v823
  %v825 = vpop.f32.mrb[0].mxu0
  %v826 = vadd.f32 0.0, %v825
  %v827 = vpop.f32.mrb[0].mxu0
  %v828 = vadd.f32 0.0, %v827
  %829 = vmatprep.mubr.bf16.mxu0 0
  %830 = vmatmul.mubr.bf16.gmra.mrb[0].mxu0 %v307
  %v831 = vpop.f32.mrb[0].mxu0
  %v832 = vadd.f32 0.0, %v831
  %v833 = vpop.f32.mrb[0].mxu0
  %v834 = vadd.f32 0.0, %v833
  %v835 = vpop.f32.mrb[0].mxu0
  %v836 = vadd.f32 0.0, %v835
  %v837 = vpop.f32.mrb[0].mxu0
  %v838 = vadd.f32 0.0, %v837
  %839 = vmatprep.mubr.bf16.mxu0 0
  %840 = vmatmul.mubr.bf16.gmra.mrb[0].mxu0 %v310
  %v841 = vpop.f32.mrb[0].mxu0
  %v842 = vadd.f32 0.0, %v841
  %v843 = vpop.f32.mrb[0].mxu0
  %v844 = vadd.f32 0.0, %v843
  %v845 = vpop.f32.mrb[0].mxu0
  %v846 = vadd.f32 0.0, %v845
  %v847 = vpop.f32.mrb[0].mxu0
  %v848 = vadd.f32 0.0, %v847
  %849 = vmatprep.mubr.bf16.mxu0 0
  %850 = vmatmul.mubr.bf16.gmra.mrb[0].mxu0 %v313
  %v851 = vpop.f32.mrb[0].mxu0
  %v852 = vadd.f32 0.0, %v851
  %v853 = vpop.f32.mrb[0].mxu0
  %v854 = vadd.f32 0.0, %v853
  %v855 = vpop.f32.mrb[0].mxu0
  %v856 = vadd.f32 0.0, %v855
  %v857 = vpop.f32.mrb[0].mxu0
  %v858 = vadd.f32 0.0, %v857
  %859 = vmatprep.mubr.bf16.mxu0 0
  %860 = vmatmul.mubr.bf16.gmra.mrb[0].mxu0 %v316
  %v861 = vpop.f32.mrb[0].mxu0
  %v862 = vadd.f32 0.0, %v861
  %v863 = vpop.f32.mrb[0].mxu0
  %v864 = vadd.f32 0.0, %v863
  %v865 = vpop.f32.mrb[0].mxu0
  %v866 = vadd.f32 0.0, %v865
  %v867 = vpop.f32.mrb[0].mxu0
  %v868 = vadd.f32 0.0, %v867
  %869 = vmatprep.mubr.bf16.mxu0 0
  %870 = vmatmul.mubr.bf16.gmra.mrb[0].mxu0 %v319
  %v871 = vpop.f32.mrb[0].mxu0
  %v872 = vadd.f32 0.0, %v871
  %v873 = vpop.f32.mrb[0].mxu0
  %v874 = vadd.f32 0.0, %v873
  %v875 = vpop.f32.mrb[0].mxu0
  %v876 = vadd.f32 0.0, %v875
  %v877 = vpop.f32.mrb[0].mxu0
  %v878 = vadd.f32 0.0, %v877
  %879 = vmatprep.mubr.bf16.mxu0 0
  %880 = vmatmul.mubr.bf16.gmra.mrb[0].mxu0 %v322
  %v881 = vpop.f32.mrb[0].mxu0
  %v882 = vadd.f32 0.0, %v881
  %v883 = vpop.f32.mrb[0].mxu0
  %v884 = vadd.f32 0.0, %v883
  %v885 = vpop.f32.mrb[0].mxu0
  %v886 = vadd.f32 0.0, %v885
  %v887 = vpop.f32.mrb[0].mxu0
  %v888 = vadd.f32 0.0, %v887
  %889 = vmatprep.mubr.bf16.mxu0 0
  %890 = vmatmul.mubr.bf16.gmra.mrb[0].mxu0 %v325
  %v891 = vpop.f32.mrb[0].mxu0
  %v892 = vadd.f32 0.0, %v891
  %v893 = vpop.f32.mrb[0].mxu0
  %v894 = vadd.f32 0.0, %v893
  %v895 = vpop.f32.mrb[0].mxu0
  %v896 = vadd.f32 0.0, %v895
  %v897 = vpop.f32.mrb[0].mxu0
  %v898 = vadd.f32 0.0, %v897
  %899 = vmatprep.mubr.bf16.mxu0 0
  %900 = vmatmul.mubr.bf16.gmra.mrb[0].mxu0 %v328
  %v901 = vpop.f32.mrb[0].mxu0
  %v902 = vadd.f32 0.0, %v901
  %v903 = vpop.f32.mrb[0].mxu0
  %v904 = vadd.f32 0.0, %v903
  %v905 = vpop.f32.mrb[0].mxu0
  %v906 = vadd.f32 0.0, %v905
  %v907 = vpop.f32.mrb[0].mxu0
  %v908 = vadd.f32 0.0, %v907
  %909 = vmatprep.mubr.bf16.mxu0 0
  %910 = vmatmul.mubr.bf16.gmra.mrb[0].mxu0 %v331
  %v911 = vpop.f32.mrb[0].mxu0
  %v912 = vadd.f32 0.0, %v911
  %v913 = vpop.f32.mrb[0].mxu0
  %v914 = vadd.f32 0.0, %v913
  %v915 = vpop.f32.mrb[0].mxu0
  %v916 = vadd.f32 0.0, %v915
  %v917 = vpop.f32.mrb[0].mxu0
  %v918 = vadd.f32 0.0, %v917
  %919 = vmatprep.mubr.bf16.mxu0 0
  %920 = vmatmul.mubr.bf16.gmra.mrb[0].mxu0 %v334
  %v921 = vpop.f32.mrb[0].mxu0
  %v922 = vadd.f32 0.0, %v921
  %v923 = vpop.f32.mrb[0].mxu0
  %v924 = vadd.f32 0.0, %v923
  %v925 = vpop.f32.mrb[0].mxu0
  %v926 = vadd.f32 0.0, %v925
  %v927 = vpop.f32.mrb[0].mxu0
  %v928 = vadd.f32 0.0, %v927
  %929 = vmatprep.mubr.bf16.mxu0 0
  %930 = vmatmul.mubr.bf16.gmra.mrb[0].mxu0 %v337
  %v931 = vpop.f32.mrb[0].mxu0
  %v932 = vadd.f32 0.0, %v931
  %v933 = vpop.f32.mrb[0].mxu0
  %v934 = vadd.f32 0.0, %v933
  %v935 = vpop.f32.mrb[0].mxu0
  %v936 = vadd.f32 0.0, %v935
  %v937 = vpop.f32.mrb[0].mxu0
  %v938 = vadd.f32 0.0, %v937
  %939 = vmatprep.mubr.bf16.mxu0 0
  %940 = vmatmul.mubr.bf16.gmra.mrb[0].mxu0 %v340
  %v941 = vpop.f32.mrb[0].mxu0
  %v942 = vadd.f32 0.0, %v941
  %v943 = vpop.f32.mrb[0].mxu0
  %v944 = vadd.f32 0.0, %v943
  %v945 = vpop.f32.mrb[0].mxu0
  %v946 = vadd.f32 0.0, %v945
  %v947 = vpop.f32.mrb[0].mxu0
  %v948 = vadd.f32 0.0, %v947
  %949 = vmatprep.mubr.bf16.mxu0 0
  %950 = vmatmul.mubr.bf16.gmra.mrb[0].mxu0 %v343
  %v951 = vpop.f32.mrb[0].mxu0
  %v952 = vadd.f32 0.0, %v951
  %v953 = vpop.f32.mrb[0].mxu0
  %v954 = vadd.f32 0.0, %v953
  %v955 = vpop.f32.mrb[0].mxu0
  %v956 = vadd.f32 0.0, %v955
  %v957 = vpop.f32.mrb[0].mxu0
  %v958 = vadd.f32 0.0, %v957
  %959 = vmatprep.mubr.bf16.mxu0 0
  %960 = vmatmul.mubr.bf16.gmra.mrb[0].mxu0 %v346
  %v961 = vpop.f32.mrb[0].mxu0
  %v962 = vadd.f32 0.0, %v961
  %v963 = vpop.f32.mrb[0].mxu0
  %v964 = vadd.f32 0.0, %v963
  %v965 = vpop.f32.mrb[0].mxu0
  %v966 = vadd.f32 0.0, %v965
  %v967 = vpop.f32.mrb[0].mxu0
  %v968 = vadd.f32 0.0, %v967
  %969 = vmatprep.mubr.bf16.mxu0 0
  %970 = vmatmul.mubr.bf16.gmra.mrb[0].mxu0 %v349
  %v971 = vpop.f32.mrb[0].mxu0
  %v972 = vadd.f32 0.0, %v971
  %v973 = vpop.f32.mrb[0].mxu0
  %v974 = vadd.f32 0.0, %v973
  %v975 = vpop.f32.mrb[0].mxu0
  %v976 = vadd.f32 0.0, %v975
  %v977 = vpop.f32.mrb[0].mxu0
  %v978 = vadd.f32 0.0, %v977
  %979 = vmatprep.mubr.bf16.mxu0 0
  %980 = vmatmul.mubr.bf16.gmra.mrb[0].mxu0 %v352
  %v981 = vpop.f32.mrb[0].mxu0
  %v982 = vadd.f32 0.0, %v981
  %v983 = vpop.f32.mrb[0].mxu0
  %v984 = vadd.f32 0.0, %v983
  %v985 = vpop.f32.mrb[0].mxu0
  %v986 = vadd.f32 0.0, %v985
  %v987 = vpop.f32.mrb[0].mxu0
  %v988 = vadd.f32 0.0, %v987
  %989 = vmatprep.mubr.bf16.mxu0 0
  %990 = vmatmul.mubr.bf16.gmra.mrb[0].mxu0 %v355
  %v991 = vpop.f32.mrb[0].mxu0
  %v992 = vadd.f32 0.0, %v991
  %v993 = vpop.f32.mrb[0].mxu0
  %v994 = vadd.f32 0.0, %v993
  %v995 = vpop.f32.mrb[0].mxu0
  %v996 = vadd.f32 0.0, %v995
  %v997 = vpop.f32.mrb[0].mxu0
  %v998 = vadd.f32 0.0, %v997
  %999 = vmatprep.mubr.bf16.mxu0 0
  %1000 = vmatmul.mubr.bf16.gmra.mrb[0].mxu0 %v358
  %v1001 = vpop.f32.mrb[0].mxu0
  %v1002 = vadd.f32 0.0, %v1001
  %v1003 = vpop.f32.mrb[0].mxu0
  %v1004 = vadd.f32 0.0, %v1003
  %v1005 = vpop.f32.mrb[0].mxu0
  %v1006 = vadd.f32 0.0, %v1005
  %v1007 = vpop.f32.mrb[0].mxu0
  %v1008 = vadd.f32 0.0, %v1007
  %1009 = vmatprep.mubr.bf16.mxu0 0
  %1010 = vmatmul.mubr.bf16.gmra.mrb[0].mxu0 %v361
  %v1011 = vpop.f32.mrb[0].mxu0
  %v1012 = vadd.f32 0.0, %v1011
  %v1013 = vpop.f32.mrb[0].mxu0
  %v1014 = vadd.f32 0.0, %v1013
  %v1015 = vpop.f32.mrb[0].mxu0
  %v1016 = vadd.f32 0.0, %v1015
  %v1017 = vpop.f32.mrb[0].mxu0
  %v1018 = vadd.f32 0.0, %v1017
  %1019 = vmatprep.mubr.bf16.mxu0 0
  %1020 = vmatmul.mubr.bf16.gmra.mrb[0].mxu0 %v364
  %v1021 = vpop.f32.mrb[0].mxu0
  %v1022 = vadd.f32 0.0, %v1021
  %v1023 = vpop.f32.mrb[0].mxu0
  %v1024 = vadd.f32 0.0, %v1023
  %v1025 = vpop.f32.mrb[0].mxu0
  %v1026 = vadd.f32 0.0, %v1025
  %v1027 = vpop.f32.mrb[0].mxu0
  %v1028 = vadd.f32 0.0, %v1027
  %1029 = vmatprep.mubr.bf16.mxu0 0
  %1030 = vmatmul.mubr.bf16.gmra.mrb[0].mxu0 %v367
  %v1031 = vpop.f32.mrb[0].mxu0
  %v1032 = vadd.f32 0.0, %v1031
  %v1033 = vpop.f32.mrb[0].mxu0
  %v1034 = vadd.f32 0.0, %v1033
  %v1035 = vpop.f32.mrb[0].mxu0
  %v1036 = vadd.f32 0.0, %v1035
  %v1037 = vpop.f32.mrb[0].mxu0
  %v1038 = vadd.f32 0.0, %v1037
  %1039 = vmatprep.mubr.bf16.mxu0 0
  %1040 = vmatmul.mubr.bf16.gmra.mrb[0].mxu0 %v370
  %v1041 = vpop.f32.mrb[0].mxu0
  %v1042 = vadd.f32 0.0, %v1041
  %v1043 = vpop.f32.mrb[0].mxu0
  %v1044 = vadd.f32 0.0, %v1043
  %v1045 = vpop.f32.mrb[0].mxu0
  %v1046 = vadd.f32 0.0, %v1045
  %v1047 = vpop.f32.mrb[0].mxu0
  %v1048 = vadd.f32 0.0, %v1047
  %1049 = vmatprep.mubr.bf16.mxu0 0
  %1050 = vmatmul.mubr.bf16.gmra.mrb[0].mxu0 %v373
  %v1051 = vpop.f32.mrb[0].mxu0
  %v1052 = vadd.f32 0.0, %v1051
  %v1053 = vpop.f32.mrb[0].mxu0
  %v1054 = vadd.f32 0.0, %v1053
  %v1055 = vpop.f32.mrb[0].mxu0
  %v1056 = vadd.f32 0.0, %v1055
  %v1057 = vpop.f32.mrb[0].mxu0
  %v1058 = vadd.f32 0.0, %v1057
  %1059 = vmatprep.mubr.bf16.mxu0 0
  %1060 = vmatmul.mubr.bf16.gmra.mrb[0].mxu0 %v376
  %v1061 = vpop.f32.mrb[0].mxu0
  %v1062 = vadd.f32 0.0, %v1061
  %v1063 = vpop.f32.mrb[0].mxu0
  %v1064 = vadd.f32 0.0, %v1063
  %v1065 = vpop.f32.mrb[0].mxu0
  %v1066 = vadd.f32 0.0, %v1065
  %v1067 = vpop.f32.mrb[0].mxu0
  %v1068 = vadd.f32 0.0, %v1067
  %1069 = vmatprep.mubr.bf16.mxu0 0
  %1070 = vmatmul.mubr.bf16.gmra.mrb[0].mxu0 %v379
  %v1071 = vpop.f32.mrb[0].mxu0
  %v1072 = vadd.f32 0.0, %v1071
  %v1073 = vpop.f32.mrb[0].mxu0
  %v1074 = vadd.f32 0.0, %v1073
  %v1075 = vpop.f32.mrb[0].mxu0
  %v1076 = vadd.f32 0.0, %v1075
  %v1077 = vpop.f32.mrb[0].mxu0
  %v1078 = vadd.f32 0.0, %v1077
  %1079 = vmatprep.mubr.bf16.mxu0 0
  %1080 = vmatmul.mubr.bf16.gmra.mrb[0].mxu0 %v382
  %v1081 = vpop.f32.mrb[0].mxu0
  %v1082 = vadd.f32 0.0, %v1081
  %v1083 = vpop.f32.mrb[0].mxu0
  %v1084 = vadd.f32 0.0, %v1083
  %v1085 = vpop.f32.mrb[0].mxu0
  %v1086 = vadd.f32 0.0, %v1085
  %v1087 = vpop.f32.mrb[0].mxu0
  %v1088 = vadd.f32 0.0, %v1087
  %1089 = vdwg.mxu0
  %v1090 = vld [vmem:[%s2] sm:$0xf]
  %v1092 = vlaneseq
  %v1093 = vshrl.u32 %v1092, 7
  %v1094 = vsub.s32 0, %v1093
  %v1095 = vrot.slane %v1090, %v1094
  %v1096 = vlaneseq
  %v1097 = vshrl.u32 %v1096, 7
  %v1098 = vsub.s32 1, %v1097
  %v1099 = vrot.slane %v1090, %v1098
  %v1100 = vlaneseq
  %v1101 = vshrl.u32 %v1100, 7
  %v1102 = vsub.s32 2, %v1101
  %v1103 = vrot.slane %v1090, %v1102
  %v1104 = vlaneseq
  %v1105 = vshrl.u32 %v1104, 7
  %v1106 = vsub.s32 3, %v1105
  %v1107 = vrot.slane %v1090, %v1106
  %v1112 = vmul.f32 %v419, %v1095
  %v1113 = vmul.f32 %v421, %v1099
  %v1114 = vmul.f32 %v772, %v1103
  %v1115 = vmul.f32 %v774, %v1107
  %v1116 = vmul.f32 %v423, %v1095
  %v1117 = vmul.f32 %v425, %v1099
  %v1118 = vmul.f32 %v776, %v1103
  %v1119 = vmul.f32 %v778, %v1107
  %v1120 = vmul.f32 %v429, %v1095
  %v1121 = vmul.f32 %v431, %v1099
  %v1122 = vmul.f32 %v782, %v1103
  %v1123 = vmul.f32 %v784, %v1107
  %v1124 = vmul.f32 %v433, %v1095
  %v1125 = vmul.f32 %v435, %v1099
  %v1126 = vmul.f32 %v786, %v1103
  %v1127 = vmul.f32 %v788, %v1107
  %v1128 = vmul.f32 %v439, %v1095
  %v1129 = vmul.f32 %v441, %v1099
  %v1130 = vmul.f32 %v792, %v1103
  %v1131 = vmul.f32 %v794, %v1107
  %v1132 = vmul.f32 %v443, %v1095
  %v1133 = vmul.f32 %v445, %v1099
  %v1134 = vmul.f32 %v796, %v1103
  %v1135 = vmul.f32 %v798, %v1107
  %v1136 = vmul.f32 %v449, %v1095
  %v1137 = vmul.f32 %v451, %v1099
  %v1138 = vmul.f32 %v802, %v1103
  %v1139 = vmul.f32 %v804, %v1107
  %v1140 = vmul.f32 %v453, %v1095
  %v1141 = vmul.f32 %v455, %v1099
  %v1142 = vmul.f32 %v806, %v1103
  %v1143 = vmul.f32 %v808, %v1107
  %v1144 = vmul.f32 %v459, %v1095
  %v1145 = vmul.f32 %v461, %v1099
  %v1146 = vmul.f32 %v812, %v1103
  %v1147 = vmul.f32 %v814, %v1107
  %v1148 = vmul.f32 %v463, %v1095
  %v1149 = vmul.f32 %v465, %v1099
  %v1150 = vmul.f32 %v816, %v1103
  %v1151 = vmul.f32 %v818, %v1107
  %v1152 = vmul.f32 %v469, %v1095
  %v1153 = vmul.f32 %v471, %v1099
  %v1154 = vmul.f32 %v822, %v1103
  %v1155 = vmul.f32 %v824, %v1107
  %v1156 = vmul.f32 %v473, %v1095
  %v1157 = vmul.f32 %v475, %v1099
  %v1158 = vmul.f32 %v826, %v1103
  %v1159 = vmul.f32 %v828, %v1107
  %v1160 = vmul.f32 %v479, %v1095
  %v1161 = vmul.f32 %v481, %v1099
  %v1162 = vmul.f32 %v832, %v1103
  %v1163 = vmul.f32 %v834, %v1107
  %v1164 = vmul.f32 %v483, %v1095
  %v1165 = vmul.f32 %v485, %v1099
  %v1166 = vmul.f32 %v836, %v1103
  %v1167 = vmul.f32 %v838, %v1107
  %v1168 = vmul.f32 %v489, %v1095
  %v1169 = vmul.f32 %v491, %v1099
  %v1170 = vmul.f32 %v842, %v1103
  %v1171 = vmul.f32 %v844, %v1107
  %v1172 = vmul.f32 %v493, %v1095
  %v1173 = vmul.f32 %v495, %v1099
  %v1174 = vmul.f32 %v846, %v1103
  %v1175 = vmul.f32 %v848, %v1107
  %v1176 = vmul.f32 %v499, %v1095
  %v1177 = vmul.f32 %v501, %v1099
  %v1178 = vmul.f32 %v852, %v1103
  %v1179 = vmul.f32 %v854, %v1107
  %v1180 = vmul.f32 %v503, %v1095
  %v1181 = vmul.f32 %v505, %v1099
  %v1182 = vmul.f32 %v856, %v1103
  %v1183 = vmul.f32 %v858, %v1107
  %v1184 = vmul.f32 %v509, %v1095
  %v1185 = vmul.f32 %v511, %v1099
  %v1186 = vmul.f32 %v862, %v1103
  %v1187 = vmul.f32 %v864, %v1107
  %v1188 = vmul.f32 %v513, %v1095
  %v1189 = vmul.f32 %v515, %v1099
  %v1190 = vmul.f32 %v866, %v1103
  %v1191 = vmul.f32 %v868, %v1107
  %v1192 = vmul.f32 %v519, %v1095
  %v1193 = vmul.f32 %v521, %v1099
  %v1194 = vmul.f32 %v872, %v1103
  %v1195 = vmul.f32 %v874, %v1107
  %v1196 = vmul.f32 %v523, %v1095
  %v1197 = vmul.f32 %v525, %v1099
  %v1198 = vmul.f32 %v876, %v1103
  %v1199 = vmul.f32 %v878, %v1107
  %v1200 = vmul.f32 %v529, %v1095
  %v1201 = vmul.f32 %v531, %v1099
  %v1202 = vmul.f32 %v882, %v1103
  %v1203 = vmul.f32 %v884, %v1107
  %v1204 = vmul.f32 %v533, %v1095
  %v1205 = vmul.f32 %v535, %v1099
  %v1206 = vmul.f32 %v886, %v1103
  %v1207 = vmul.f32 %v888, %v1107
  %v1208 = vmul.f32 %v539, %v1095
  %v1209 = vmul.f32 %v541, %v1099
  %v1210 = vmul.f32 %v892, %v1103
  %v1211 = vmul.f32 %v894, %v1107
  %v1212 = vmul.f32 %v543, %v1095
  %v1213 = vmul.f32 %v545, %v1099
  %v1214 = vmul.f32 %v896, %v1103
  %v1215 = vmul.f32 %v898, %v1107
  %v1216 = vmul.f32 %v549, %v1095
  %v1217 = vmul.f32 %v551, %v1099
  %v1218 = vmul.f32 %v902, %v1103
  %v1219 = vmul.f32 %v904, %v1107
  %v1220 = vmul.f32 %v553, %v1095
  %v1221 = vmul.f32 %v555, %v1099
  %v1222 = vmul.f32 %v906, %v1103
  %v1223 = vmul.f32 %v908, %v1107
  %v1224 = vmul.f32 %v559, %v1095
  %v1225 = vmul.f32 %v561, %v1099
  %v1226 = vmul.f32 %v912, %v1103
  %v1227 = vmul.f32 %v914, %v1107
  %v1228 = vmul.f32 %v563, %v1095
  %v1229 = vmul.f32 %v565, %v1099
  %v1230 = vmul.f32 %v916, %v1103
  %v1231 = vmul.f32 %v918, %v1107
  %v1232 = vmul.f32 %v569, %v1095
  %v1233 = vmul.f32 %v571, %v1099
  %v1234 = vmul.f32 %v922, %v1103
  %v1235 = vmul.f32 %v924, %v1107
  %v1236 = vmul.f32 %v573, %v1095
  %v1237 = vmul.f32 %v575, %v1099
  %v1238 = vmul.f32 %v926, %v1103
  %v1239 = vmul.f32 %v928, %v1107
  %v1240 = vmul.f32 %v579, %v1095
  %v1241 = vmul.f32 %v581, %v1099
  %v1242 = vmul.f32 %v932, %v1103
  %v1243 = vmul.f32 %v934, %v1107
  %v1244 = vmul.f32 %v583, %v1095
  %v1245 = vmul.f32 %v585, %v1099
  %v1246 = vmul.f32 %v936, %v1103
  %v1247 = vmul.f32 %v938, %v1107
  %v1248 = vmul.f32 %v589, %v1095
  %v1249 = vmul.f32 %v591, %v1099
  %v1250 = vmul.f32 %v942, %v1103
  %v1251 = vmul.f32 %v944, %v1107
  %v1252 = vmul.f32 %v593, %v1095
  %v1253 = vmul.f32 %v595, %v1099
  %v1254 = vmul.f32 %v946, %v1103
  %v1255 = vmul.f32 %v948, %v1107
  %v1256 = vmul.f32 %v599, %v1095
  %v1257 = vmul.f32 %v601, %v1099
  %v1258 = vmul.f32 %v952, %v1103
  %v1259 = vmul.f32 %v954, %v1107
  %v1260 = vmul.f32 %v603, %v1095
  %v1261 = vmul.f32 %v605, %v1099
  %v1262 = vmul.f32 %v956, %v1103
  %v1263 = vmul.f32 %v958, %v1107
  %v1264 = vmul.f32 %v609, %v1095
  %v1265 = vmul.f32 %v611, %v1099
  %v1266 = vmul.f32 %v962, %v1103
  %v1267 = vmul.f32 %v964, %v1107
  %v1268 = vmul.f32 %v613, %v1095
  %v1269 = vmul.f32 %v615, %v1099
  %v1270 = vmul.f32 %v966, %v1103
  %v1271 = vmul.f32 %v968, %v1107
  %v1272 = vmul.f32 %v619, %v1095
  %v1273 = vmul.f32 %v621, %v1099
  %v1274 = vmul.f32 %v972, %v1103
  %v1275 = vmul.f32 %v974, %v1107
  %v1276 = vmul.f32 %v623, %v1095
  %v1277 = vmul.f32 %v625, %v1099
  %v1278 = vmul.f32 %v976, %v1103
  %v1279 = vmul.f32 %v978, %v1107
  %v1280 = vmul.f32 %v629, %v1095
  %v1281 = vmul.f32 %v631, %v1099
  %v1282 = vmul.f32 %v982, %v1103
  %v1283 = vmul.f32 %v984, %v1107
  %v1284 = vmul.f32 %v633, %v1095
  %v1285 = vmul.f32 %v635, %v1099
  %v1286 = vmul.f32 %v986, %v1103
  %v1287 = vmul.f32 %v988, %v1107
  %v1288 = vmul.f32 %v639, %v1095
  %v1289 = vmul.f32 %v641, %v1099
  %v1290 = vmul.f32 %v992, %v1103
  %v1291 = vmul.f32 %v994, %v1107
  %v1292 = vmul.f32 %v643, %v1095
  %v1293 = vmul.f32 %v645, %v1099
  %v1294 = vmul.f32 %v996, %v1103
  %v1295 = vmul.f32 %v998, %v1107
  %v1296 = vmul.f32 %v649, %v1095
  %v1297 = vmul.f32 %v651, %v1099
  %v1298 = vmul.f32 %v1002, %v1103
  %v1299 = vmul.f32 %v1004, %v1107
  %v1300 = vmul.f32 %v653, %v1095
  %v1301 = vmul.f32 %v655, %v1099
  %v1302 = vmul.f32 %v1006, %v1103
  %v1303 = vmul.f32 %v1008, %v1107
  %v1304 = vmul.f32 %v659, %v1095
  %v1305 = vmul.f32 %v661, %v1099
  %v1306 = vmul.f32 %v1012, %v1103
  %v1307 = vmul.f32 %v1014, %v1107
  %v1308 = vmul.f32 %v663, %v1095
  %v1309 = vmul.f32 %v665, %v1099
  %v1310 = vmul.f32 %v1016, %v1103
  %v1311 = vmul.f32 %v1018, %v1107
  %v1312 = vmul.f32 %v669, %v1095
  %v1313 = vmul.f32 %v671, %v1099
  %v1314 = vmul.f32 %v1022, %v1103
  %v1315 = vmul.f32 %v1024, %v1107
  %v1316 = vmul.f32 %v673, %v1095
  %v1317 = vmul.f32 %v675, %v1099
  %v1318 = vmul.f32 %v1026, %v1103
  %v1319 = vmul.f32 %v1028, %v1107
  %v1320 = vmul.f32 %v679, %v1095
  %v1321 = vmul.f32 %v681, %v1099
  %v1322 = vmul.f32 %v1032, %v1103
  %v1323 = vmul.f32 %v1034, %v1107
  %v1324 = vmul.f32 %v683, %v1095
  %v1325 = vmul.f32 %v685, %v1099
  %v1326 = vmul.f32 %v1036, %v1103
  %v1327 = vmul.f32 %v1038, %v1107
  %v1328 = vmul.f32 %v689, %v1095
  %v1329 = vmul.f32 %v691, %v1099
  %v1330 = vmul.f32 %v1042, %v1103
  %v1331 = vmul.f32 %v1044, %v1107
  %v1332 = vmul.f32 %v693, %v1095
  %v1333 = vmul.f32 %v695, %v1099
  %v1334 = vmul.f32 %v1046, %v1103
  %v1335 = vmul.f32 %v1048, %v1107
  %v1336 = vmul.f32 %v699, %v1095
  %v1337 = vmul.f32 %v701, %v1099
  %v1338 = vmul.f32 %v1052, %v1103
  %v1339 = vmul.f32 %v1054, %v1107
  %v1340 = vmul.f32 %v703, %v1095
  %v1341 = vmul.f32 %v705, %v1099
  %v1342 = vmul.f32 %v1056, %v1103
  %v1343 = vmul.f32 %v1058, %v1107
  %v1344 = vmul.f32 %v709, %v1095
  %v1345 = vmul.f32 %v711, %v1099
  %v1346 = vmul.f32 %v1062, %v1103
  %v1347 = vmul.f32 %v1064, %v1107
  %v1348 = vmul.f32 %v713, %v1095
  %v1349 = vmul.f32 %v715, %v1099
  %v1350 = vmul.f32 %v1066, %v1103
  %v1351 = vmul.f32 %v1068, %v1107
  %v1352 = vmul.f32 %v719, %v1095
  %v1353 = vmul.f32 %v721, %v1099
  %v1354 = vmul.f32 %v1072, %v1103
  %v1355 = vmul.f32 %v1074, %v1107
  %v1356 = vmul.f32 %v723, %v1095
  %v1357 = vmul.f32 %v725, %v1099
  %v1358 = vmul.f32 %v1076, %v1103
  %v1359 = vmul.f32 %v1078, %v1107
  %v1360 = vmul.f32 %v729, %v1095
  %v1361 = vmul.f32 %v731, %v1099
  %v1362 = vmul.f32 %v1082, %v1103
  %v1363 = vmul.f32 %v1084, %v1107
  %v1364 = vmul.f32 %v733, %v1095
  %v1365 = vmul.f32 %v735, %v1099
  %v1366 = vmul.f32 %v1086, %v1103
  %v1367 = vmul.f32 %v1088, %v1107
  %1368 = vst [vmem:[%s3] sm:$0xff] %v1112
  %1369 = vst [vmem:[%s3 + $0x8] sm:$0xff] %v1113
  %1370 = vst [vmem:[%s3 + $0x10] sm:$0xff] %v1114
  %1371 = vst [vmem:[%s3 + $0x18] sm:$0xff] %v1115
  %1372 = vst [vmem:[%s3 + $0x20] sm:$0xff] %v1116
  %1373 = vst [vmem:[%s3 + $0x28] sm:$0xff] %v1117
  %1374 = vst [vmem:[%s3 + $0x30] sm:$0xff] %v1118
  %1375 = vst [vmem:[%s3 + $0x38] sm:$0xff] %v1119
  %1376 = vst [vmem:[%s3 + $0x40] sm:$0xff] %v1120
  %1377 = vst [vmem:[%s3 + $0x48] sm:$0xff] %v1121
  %1378 = vst [vmem:[%s3 + $0x50] sm:$0xff] %v1122
  %1379 = vst [vmem:[%s3 + $0x58] sm:$0xff] %v1123
  %1380 = vst [vmem:[%s3 + $0x60] sm:$0xff] %v1124
  %1381 = vst [vmem:[%s3 + $0x68] sm:$0xff] %v1125
  %1382 = vst [vmem:[%s3 + $0x70] sm:$0xff] %v1126
  %1383 = vst [vmem:[%s3 + $0x78] sm:$0xff] %v1127
  %1384 = vst [vmem:[%s3 + $0x80] sm:$0xff] %v1128
  %1385 = vst [vmem:[%s3 + $0x88] sm:$0xff] %v1129
  %1386 = vst [vmem:[%s3 + $0x90] sm:$0xff] %v1130
  %1387 = vst [vmem:[%s3 + $0x98] sm:$0xff] %v1131
  %1388 = vst [vmem:[%s3 + $0xa0] sm:$0xff] %v1132
  %1389 = vst [vmem:[%s3 + $0xa8] sm:$0xff] %v1133
  %1390 = vst [vmem:[%s3 + $0xb0] sm:$0xff] %v1134
  %1391 = vst [vmem:[%s3 + $0xb8] sm:$0xff] %v1135
  %1392 = vst [vmem:[%s3 + $0xc0] sm:$0xff] %v1136
  %1393 = vst [vmem:[%s3 + $0xc8] sm:$0xff] %v1137
  %1394 = vst [vmem:[%s3 + $0xd0] sm:$0xff] %v1138
  %1395 = vst [vmem:[%s3 + $0xd8] sm:$0xff] %v1139
  %1396 = vst [vmem:[%s3 + $0xe0] sm:$0xff] %v1140
  %1397 = vst [vmem:[%s3 + $0xe8] sm:$0xff] %v1141
  %1398 = vst [vmem:[%s3 + $0xf0] sm:$0xff] %v1142
  %1399 = vst [vmem:[%s3 + $0xf8] sm:$0xff] %v1143
  %1400 = vst [vmem:[%s3 + $0x100] sm:$0xff] %v1144
  %1401 = vst [vmem:[%s3 + $0x108] sm:$0xff] %v1145
  %1402 = vst [vmem:[%s3 + $0x110] sm:$0xff] %v1146
  %1403 = vst [vmem:[%s3 + $0x118] sm:$0xff] %v1147
  %1404 = vst [vmem:[%s3 + $0x120] sm:$0xff] %v1148
  %1405 = vst [vmem:[%s3 + $0x128] sm:$0xff] %v1149
  %1406 = vst [vmem:[%s3 + $0x130] sm:$0xff] %v1150
  %1407 = vst [vmem:[%s3 + $0x138] sm:$0xff] %v1151
  %1408 = vst [vmem:[%s3 + $0x140] sm:$0xff] %v1152
  %1409 = vst [vmem:[%s3 + $0x148] sm:$0xff] %v1153
  %1410 = vst [vmem:[%s3 + $0x150] sm:$0xff] %v1154
  %1411 = vst [vmem:[%s3 + $0x158] sm:$0xff] %v1155
  %1412 = vst [vmem:[%s3 + $0x160] sm:$0xff] %v1156
  %1413 = vst [vmem:[%s3 + $0x168] sm:$0xff] %v1157
  %1414 = vst [vmem:[%s3 + $0x170] sm:$0xff] %v1158
  %1415 = vst [vmem:[%s3 + $0x178] sm:$0xff] %v1159
  %1416 = vst [vmem:[%s3 + $0x180] sm:$0xff] %v1160
  %1417 = vst [vmem:[%s3 + $0x188] sm:$0xff] %v1161
  %1418 = vst [vmem:[%s3 + $0x190] sm:$0xff] %v1162
  %1419 = vst [vmem:[%s3 + $0x198] sm:$0xff] %v1163
  %1420 = vst [vmem:[%s3 + $0x1a0] sm:$0xff] %v1164
  %1421 = vst [vmem:[%s3 + $0x1a8] sm:$0xff] %v1165
  %1422 = vst [vmem:[%s3 + $0x1b0] sm:$0xff] %v1166
  %1423 = vst [vmem:[%s3 + $0x1b8] sm:$0xff] %v1167
  %1424 = vst [vmem:[%s3 + $0x1c0] sm:$0xff] %v1168
  %1425 = vst [vmem:[%s3 + $0x1c8] sm:$0xff] %v1169
  %1426 = vst [vmem:[%s3 + $0x1d0] sm:$0xff] %v1170
  %1427 = vst [vmem:[%s3 + $0x1d8] sm:$0xff] %v1171
  %1428 = vst [vmem:[%s3 + $0x1e0] sm:$0xff] %v1172
  %1429 = vst [vmem:[%s3 + $0x1e8] sm:$0xff] %v1173
  %1430 = vst [vmem:[%s3 + $0x1f0] sm:$0xff] %v1174
  %1431 = vst [vmem:[%s3 + $0x1f8] sm:$0xff] %v1175
  %1432 = vst [vmem:[%s3 + $0x200] sm:$0xff] %v1176
  %1433 = vst [vmem:[%s3 + $0x208] sm:$0xff] %v1177
  %1434 = vst [vmem:[%s3 + $0x210] sm:$0xff] %v1178
  %1435 = vst [vmem:[%s3 + $0x218] sm:$0xff] %v1179
  %1436 = vst [vmem:[%s3 + $0x220] sm:$0xff] %v1180
  %1437 = vst [vmem:[%s3 + $0x228] sm:$0xff] %v1181
  %1438 = vst [vmem:[%s3 + $0x230] sm:$0xff] %v1182
  %1439 = vst [vmem:[%s3 + $0x238] sm:$0xff] %v1183
  %1440 = vst [vmem:[%s3 + $0x240] sm:$0xff] %v1184
  %1441 = vst [vmem:[%s3 + $0x248] sm:$0xff] %v1185
  %1442 = vst [vmem:[%s3 + $0x250] sm:$0xff] %v1186
  %1443 = vst [vmem:[%s3 + $0x258] sm:$0xff] %v1187
  %1444 = vst [vmem:[%s3 + $0x260] sm:$0xff] %v1188
  %1445 = vst [vmem:[%s3 + $0x268] sm:$0xff] %v1189
  %1446 = vst [vmem:[%s3 + $0x270] sm:$0xff] %v1190
  %1447 = vst [vmem:[%s3 + $0x278] sm:$0xff] %v1191
  %1448 = vst [vmem:[%s3 + $0x280] sm:$0xff] %v1192
  %1449 = vst [vmem:[%s3 + $0x288] sm:$0xff] %v1193
  %1450 = vst [vmem:[%s3 + $0x290] sm:$0xff] %v1194
  %1451 = vst [vmem:[%s3 + $0x298] sm:$0xff] %v1195
  %1452 = vst [vmem:[%s3 + $0x2a0] sm:$0xff] %v1196
  %1453 = vst [vmem:[%s3 + $0x2a8] sm:$0xff] %v1197
  %1454 = vst [vmem:[%s3 + $0x2b0] sm:$0xff] %v1198
  %1455 = vst [vmem:[%s3 + $0x2b8] sm:$0xff] %v1199
  %1456 = vst [vmem:[%s3 + $0x2c0] sm:$0xff] %v1200
  %1457 = vst [vmem:[%s3 + $0x2c8] sm:$0xff] %v1201
  %1458 = vst [vmem:[%s3 + $0x2d0] sm:$0xff] %v1202
  %1459 = vst [vmem:[%s3 + $0x2d8] sm:$0xff] %v1203
  %1460 = vst [vmem:[%s3 + $0x2e0] sm:$0xff] %v1204
  %1461 = vst [vmem:[%s3 + $0x2e8] sm:$0xff] %v1205
  %1462 = vst [vmem:[%s3 + $0x2f0] sm:$0xff] %v1206
  %1463 = vst [vmem:[%s3 + $0x2f8] sm:$0xff] %v1207
  %1464 = vst [vmem:[%s3 + $0x300] sm:$0xff] %v1208
  %1465 = vst [vmem:[%s3 + $0x308] sm:$0xff] %v1209
  %1466 = vst [vmem:[%s3 + $0x310] sm:$0xff] %v1210
  %1467 = vst [vmem:[%s3 + $0x318] sm:$0xff] %v1211
  %1468 = vst [vmem:[%s3 + $0x320] sm:$0xff] %v1212
  %1469 = vst [vmem:[%s3 + $0x328] sm:$0xff] %v1213
  %1470 = vst [vmem:[%s3 + $0x330] sm:$0xff] %v1214
  %1471 = vst [vmem:[%s3 + $0x338] sm:$0xff] %v1215
  %1472 = vst [vmem:[%s3 + $0x340] sm:$0xff] %v1216
  %1473 = vst [vmem:[%s3 + $0x348] sm:$0xff] %v1217
  %1474 = vst [vmem:[%s3 + $0x350] sm:$0xff] %v1218
  %1475 = vst [vmem:[%s3 + $0x358] sm:$0xff] %v1219
  %1476 = vst [vmem:[%s3 + $0x360] sm:$0xff] %v1220
  %1477 = vst [vmem:[%s3 + $0x368] sm:$0xff] %v1221
  %1478 = vst [vmem:[%s3 + $0x370] sm:$0xff] %v1222
  %1479 = vst [vmem:[%s3 + $0x378] sm:$0xff] %v1223
  %1480 = vst [vmem:[%s3 + $0x380] sm:$0xff] %v1224
  %1481 = vst [vmem:[%s3 + $0x388] sm:$0xff] %v1225
  %1482 = vst [vmem:[%s3 + $0x390] sm:$0xff] %v1226
  %1483 = vst [vmem:[%s3 + $0x398] sm:$0xff] %v1227
  %1484 = vst [vmem:[%s3 + $0x3a0] sm:$0xff] %v1228
  %1485 = vst [vmem:[%s3 + $0x3a8] sm:$0xff] %v1229
  %1486 = vst [vmem:[%s3 + $0x3b0] sm:$0xff] %v1230
  %1487 = vst [vmem:[%s3 + $0x3b8] sm:$0xff] %v1231
  %1488 = vst [vmem:[%s3 + $0x3c0] sm:$0xff] %v1232
  %1489 = vst [vmem:[%s3 + $0x3c8] sm:$0xff] %v1233
  %1490 = vst [vmem:[%s3 + $0x3d0] sm:$0xff] %v1234
  %1491 = vst [vmem:[%s3 + $0x3d8] sm:$0xff] %v1235
  %1492 = vst [vmem:[%s3 + $0x3e0] sm:$0xff] %v1236
  %1493 = vst [vmem:[%s3 + $0x3e8] sm:$0xff] %v1237
  %1494 = vst [vmem:[%s3 + $0x3f0] sm:$0xff] %v1238
  %1495 = vst [vmem:[%s3 + $0x3f8] sm:$0xff] %v1239
  %1496 = vst [vmem:[%s3 + $0x400] sm:$0xff] %v1240
  %1497 = vst [vmem:[%s3 + $0x408] sm:$0xff] %v1241
  %1498 = vst [vmem:[%s3 + $0x410] sm:$0xff] %v1242
  %1499 = vst [vmem:[%s3 + $0x418] sm:$0xff] %v1243
  %1500 = vst [vmem:[%s3 + $0x420] sm:$0xff] %v1244
  %1501 = vst [vmem:[%s3 + $0x428] sm:$0xff] %v1245
  %1502 = vst [vmem:[%s3 + $0x430] sm:$0xff] %v1246
  %1503 = vst [vmem:[%s3 + $0x438] sm:$0xff] %v1247
  %1504 = vst [vmem:[%s3 + $0x440] sm:$0xff] %v1248
  %1505 = vst [vmem:[%s3 + $0x448] sm:$0xff] %v1249
  %1506 = vst [vmem:[%s3 + $0x450] sm:$0xff] %v1250
  %1507 = vst [vmem:[%s3 + $0x458] sm:$0xff] %v1251
  %1508 = vst [vmem:[%s3 + $0x460] sm:$0xff] %v1252
  %1509 = vst [vmem:[%s3 + $0x468] sm:$0xff] %v1253
  %1510 = vst [vmem:[%s3 + $0x470] sm:$0xff] %v1254
  %1511 = vst [vmem:[%s3 + $0x478] sm:$0xff] %v1255
  %1512 = vst [vmem:[%s3 + $0x480] sm:$0xff] %v1256
  %1513 = vst [vmem:[%s3 + $0x488] sm:$0xff] %v1257
  %1514 = vst [vmem:[%s3 + $0x490] sm:$0xff] %v1258
  %1515 = vst [vmem:[%s3 + $0x498] sm:$0xff] %v1259
  %1516 = vst [vmem:[%s3 + $0x4a0] sm:$0xff] %v1260
  %1517 = vst [vmem:[%s3 + $0x4a8] sm:$0xff] %v1261
  %1518 = vst [vmem:[%s3 + $0x4b0] sm:$0xff] %v1262
  %1519 = vst [vmem:[%s3 + $0x4b8] sm:$0xff] %v1263
  %1520 = vst [vmem:[%s3 + $0x4c0] sm:$0xff] %v1264
  %1521 = vst [vmem:[%s3 + $0x4c8] sm:$0xff] %v1265
  %1522 = vst [vmem:[%s3 + $0x4d0] sm:$0xff] %v1266
  %1523 = vst [vmem:[%s3 + $0x4d8] sm:$0xff] %v1267
  %1524 = vst [vmem:[%s3 + $0x4e0] sm:$0xff] %v1268
  %1525 = vst [vmem:[%s3 + $0x4e8] sm:$0xff] %v1269
  %1526 = vst [vmem:[%s3 + $0x4f0] sm:$0xff] %v1270
  %1527 = vst [vmem:[%s3 + $0x4f8] sm:$0xff] %v1271
  %1528 = vst [vmem:[%s3 + $0x500] sm:$0xff] %v1272
  %1529 = vst [vmem:[%s3 + $0x508] sm:$0xff] %v1273
  %1530 = vst [vmem:[%s3 + $0x510] sm:$0xff] %v1274
  %1531 = vst [vmem:[%s3 + $0x518] sm:$0xff] %v1275
  %1532 = vst [vmem:[%s3 + $0x520] sm:$0xff] %v1276
  %1533 = vst [vmem:[%s3 + $0x528] sm:$0xff] %v1277
  %1534 = vst [vmem:[%s3 + $0x530] sm:$0xff] %v1278
  %1535 = vst [vmem:[%s3 + $0x538] sm:$0xff] %v1279
  %1536 = vst [vmem:[%s3 + $0x540] sm:$0xff] %v1280
  %1537 = vst [vmem:[%s3 + $0x548] sm:$0xff] %v1281
  %1538 = vst [vmem:[%s3 + $0x550] sm:$0xff] %v1282
  %1539 = vst [vmem:[%s3 + $0x558] sm:$0xff] %v1283
  %1540 = vst [vmem:[%s3 + $0x560] sm:$0xff] %v1284
  %1541 = vst [vmem:[%s3 + $0x568] sm:$0xff] %v1285
  %1542 = vst [vmem:[%s3 + $0x570] sm:$0xff] %v1286
  %1543 = vst [vmem:[%s3 + $0x578] sm:$0xff] %v1287
  %1544 = vst [vmem:[%s3 + $0x580] sm:$0xff] %v1288
  %1545 = vst [vmem:[%s3 + $0x588] sm:$0xff] %v1289
  %1546 = vst [vmem:[%s3 + $0x590] sm:$0xff] %v1290
  %1547 = vst [vmem:[%s3 + $0x598] sm:$0xff] %v1291
  %1548 = vst [vmem:[%s3 + $0x5a0] sm:$0xff] %v1292
  %1549 = vst [vmem:[%s3 + $0x5a8] sm:$0xff] %v1293
  %1550 = vst [vmem:[%s3 + $0x5b0] sm:$0xff] %v1294
  %1551 = vst [vmem:[%s3 + $0x5b8] sm:$0xff] %v1295
  %1552 = vst [vmem:[%s3 + $0x5c0] sm:$0xff] %v1296
  %1553 = vst [vmem:[%s3 + $0x5c8] sm:$0xff] %v1297
  %1554 = vst [vmem:[%s3 + $0x5d0] sm:$0xff] %v1298
  %1555 = vst [vmem:[%s3 + $0x5d8] sm:$0xff] %v1299
  %1556 = vst [vmem:[%s3 + $0x5e0] sm:$0xff] %v1300
  %1557 = vst [vmem:[%s3 + $0x5e8] sm:$0xff] %v1301
  %1558 = vst [vmem:[%s3 + $0x5f0] sm:$0xff] %v1302
  %1559 = vst [vmem:[%s3 + $0x5f8] sm:$0xff] %v1303
  %1560 = vst [vmem:[%s3 + $0x600] sm:$0xff] %v1304
  %1561 = vst [vmem:[%s3 + $0x608] sm:$0xff] %v1305
  %1562 = vst [vmem:[%s3 + $0x610] sm:$0xff] %v1306
  %1563 = vst [vmem:[%s3 + $0x618] sm:$0xff] %v1307
  %1564 = vst [vmem:[%s3 + $0x620] sm:$0xff] %v1308
  %1565 = vst [vmem:[%s3 + $0x628] sm:$0xff] %v1309
  %1566 = vst [vmem:[%s3 + $0x630] sm:$0xff] %v1310
  %1567 = vst [vmem:[%s3 + $0x638] sm:$0xff] %v1311
  %1568 = vst [vmem:[%s3 + $0x640] sm:$0xff] %v1312
  %1569 = vst [vmem:[%s3 + $0x648] sm:$0xff] %v1313
  %1570 = vst [vmem:[%s3 + $0x650] sm:$0xff] %v1314
  %1571 = vst [vmem:[%s3 + $0x658] sm:$0xff] %v1315
  %1572 = vst [vmem:[%s3 + $0x660] sm:$0xff] %v1316
  %1573 = vst [vmem:[%s3 + $0x668] sm:$0xff] %v1317
  %1574 = vst [vmem:[%s3 + $0x670] sm:$0xff] %v1318
  %1575 = vst [vmem:[%s3 + $0x678] sm:$0xff] %v1319
  %1576 = vst [vmem:[%s3 + $0x680] sm:$0xff] %v1320
  %1577 = vst [vmem:[%s3 + $0x688] sm:$0xff] %v1321
  %1578 = vst [vmem:[%s3 + $0x690] sm:$0xff] %v1322
  %1579 = vst [vmem:[%s3 + $0x698] sm:$0xff] %v1323
  %1580 = vst [vmem:[%s3 + $0x6a0] sm:$0xff] %v1324
  %1581 = vst [vmem:[%s3 + $0x6a8] sm:$0xff] %v1325
  %1582 = vst [vmem:[%s3 + $0x6b0] sm:$0xff] %v1326
  %1583 = vst [vmem:[%s3 + $0x6b8] sm:$0xff] %v1327
  %1584 = vst [vmem:[%s3 + $0x6c0] sm:$0xff] %v1328
  %1585 = vst [vmem:[%s3 + $0x6c8] sm:$0xff] %v1329
  %1586 = vst [vmem:[%s3 + $0x6d0] sm:$0xff] %v1330
  %1587 = vst [vmem:[%s3 + $0x6d8] sm:$0xff] %v1331
  %1588 = vst [vmem:[%s3 + $0x6e0] sm:$0xff] %v1332
  %1589 = vst [vmem:[%s3 + $0x6e8] sm:$0xff] %v1333
  %1590 = vst [vmem:[%s3 + $0x6f0] sm:$0xff] %v1334
  %1591 = vst [vmem:[%s3 + $0x6f8] sm:$0xff] %v1335
  %1592 = vst [vmem:[%s3 + $0x700] sm:$0xff] %v1336
  %1593 = vst [vmem:[%s3 + $0x708] sm:$0xff] %v1337
  %1594 = vst [vmem:[%s3 + $0x710] sm:$0xff] %v1338
  %1595 = vst [vmem:[%s3 + $0x718] sm:$0xff] %v1339
  %1596 = vst [vmem:[%s3 + $0x720] sm:$0xff] %v1340
  %1597 = vst [vmem:[%s3 + $0x728] sm:$0xff] %v1341
  %1598 = vst [vmem:[%s3 + $0x730] sm:$0xff] %v1342
  %1599 = vst [vmem:[%s3 + $0x738] sm:$0xff] %v1343
  %1600 = vst [vmem:[%s3 + $0x740] sm:$0xff] %v1344
  %1601 = vst [vmem:[%s3 + $0x748] sm:$0xff] %v1345
  %1602 = vst [vmem:[%s3 + $0x750] sm:$0xff] %v1346
  %1603 = vst [vmem:[%s3 + $0x758] sm:$0xff] %v1347
  %1604 = vst [vmem:[%s3 + $0x760] sm:$0xff] %v1348
  %1605 = vst [vmem:[%s3 + $0x768] sm:$0xff] %v1349
  %1606 = vst [vmem:[%s3 + $0x770] sm:$0xff] %v1350
  %1607 = vst [vmem:[%s3 + $0x778] sm:$0xff] %v1351
  %1608 = vst [vmem:[%s3 + $0x780] sm:$0xff] %v1352
  %1609 = vst [vmem:[%s3 + $0x788] sm:$0xff] %v1353
  %1610 = vst [vmem:[%s3 + $0x790] sm:$0xff] %v1354
  %1611 = vst [vmem:[%s3 + $0x798] sm:$0xff] %v1355
  %1612 = vst [vmem:[%s3 + $0x7a0] sm:$0xff] %v1356
  %1613 = vst [vmem:[%s3 + $0x7a8] sm:$0xff] %v1357
  %1614 = vst [vmem:[%s3 + $0x7b0] sm:$0xff] %v1358
  %1615 = vst [vmem:[%s3 + $0x7b8] sm:$0xff] %v1359
  %1616 = vst [vmem:[%s3 + $0x7c0] sm:$0xff] %v1360
  %1617 = vst [vmem:[%s3 + $0x7c8] sm:$0xff] %v1361
  %1618 = vst [vmem:[%s3 + $0x7d0] sm:$0xff] %v1362
  %1619 = vst [vmem:[%s3 + $0x7d8] sm:$0xff] %v1363
  %1620 = vst [vmem:[%s3 + $0x7e0] sm:$0xff] %v1364
  %1621 = vst [vmem:[%s3 + $0x7e8] sm:$0xff] %v1365
  %1622 = vst [vmem:[%s3 + $0x7f0] sm:$0xff] %v1366
  %1623 = vst [vmem:[%s3 + $0x7f8] sm:$0xff] %v1367
  // Predicated region
  $region14: #{conv_decoder_forward.8} parent=0 // pred_check
    _
  $region15: #{conv_decoder_forward.8} parent=0 // pred_check_branch
    %1625 = sbr.rel (0) target = $region17
  $region16: #{conv_decoder_forward.8} parent=0 // pred_region
    _
  $region17: #{conv_decoder_forward.8} parent=0 // pred_fallthru
    _
  // Predicated region
  $region18: #{conv_decoder_forward.8} parent=0 // pred_check
    _
  $region19: #{conv_decoder_forward.8} parent=0 // pred_check_branch
    %1627 = sbr.rel (0) target = $region21
  $region20: #{conv_decoder_forward.8} parent=0 // pred_region
    _
  $region21: #{conv_decoder_forward.8} parent=0 // pred_fallthru
    _

// kernel: conv_decoder_forward.9
$region0: #{conv_decoder_forward.9}
  #allocation0 [shape = 'u32[]', space=smem, size = 0x4, offset = 0x4, fixed_abs, tag = 'smem constant byte address 0x4 - core index']
  #allocation1 [shape = 'u32[144,128]{1,0:T(1,128)}', space=vmem, size = 0x12000, scoped, tag = 'internal scratch']
  %s0 = inlined_call_operand.vmem [shape: bf16[2048,32], index: 0, kind: input, shape index: {}]
  %s1 = inlined_call_operand.vmem [shape: bf16[32,128], index: 1, kind: input, shape index: {}]
  %s2 = inlined_call_operand.vmem [shape: f32[1,128], index: 2, kind: input, shape index: {}]
  %s3 = inlined_call_operand.vmem [shape: f32[2048,128], index: 3, kind: output, shape index: {}]
  %s4 = sld [smem:[#allocation0]]
  $region45: #{conv_decoder_forward.9} parent=0
    _
  %s6 = ssub.s32 1, %s4
  %s7 = scalar_select 0, %s6, %s4
  loop: start=0, step=1, limit=4
  $region2: #{conv_decoder_forward.9} parent=0 // loop_pre_header
    _
  $region3: #{conv_decoder_forward.9} parent=0 // loop_header
    %s9 = sphi 0, %s13
    %p10 = scmp.ge.s32.totalorder %s9, 4
    %s19 = sphi 0, %s21
    %s22 = sphi 0, %s19
    %s23 = sphi 0, %s22
    %s39 = sphi 0, %s23
    %s43 = sphi 0, %s43
    %s45 = sphi 0, %s43
    %s46 = sphi 0, %s45
    %s60 = sphi 0, %s46
    %s64 = sphi 0, %s64
    %s66 = sphi 0, %s64
    %s67 = sphi 0, %s66
    %s81 = sphi 0, %s67
    %s87 = sphi 0, %s89
    %s90 = sphi 0, %s87
    %s91 = sphi 0, %s90
    %s107 = sphi 0, %s91
  $region4: #{conv_decoder_forward.9} parent=0 // loop_header_branch
    %12 = sbr.rel (%p10) target = $region8
  $region5: #{conv_decoder_forward.9} parent=0 // loop_body
    %s14 = ssub.s32 %s9, 1
    %s15 = ssub.s32 %s9, 2
    %s16 = sadd.s32 %s9, 1
    %s17 = ssub.s32 %s9, %s16
    %p18 = scmp.eq.s32.totalorder %s17, 0
    %s20 = sadd.s32 %s19, 1
    %s21 = scalar_select %p18, %s19, %s20
    %p24 = pneg %p18
    %p25 = scmp.eq.s32.totalorder %s9, 1
    %p26 = por %p24, %p25
    %p27 = scmp.ne.s32.totalorder %s19, %s22
    %p28 = scmp.eq.s32.totalorder %s9, 0
    %p29 = por %p27, %p28
    %p30 = scmp.ne.s32.totalorder %s19, %s22
    %p31 = scmp.eq.s32.totalorder %s14, 1
    %p32 = por %p30, %p31
    %p33 = scmp.ne.s32.totalorder %s22, %s23
    %p34 = scmp.eq.s32.totalorder %s14, 0
    %p35 = por %p33, %p34
    %p36 = scmp.ne.s32.totalorder %s22, %s23
    %p37 = scmp.eq.s32.totalorder %s15, 1
    %p38 = por %p36, %p37
    %p40 = scmp.ne.s32.totalorder %s23, %s39
    %p41 = scmp.eq.s32.totalorder %s15, 0
    %p42 = por %p40, %p41
    %s44 = sadd.s32 %s43, 1
    %p47 = scmp.eq.s32.totalorder %s9, 1
    %p48 = scmp.ne.s32.totalorder %s43, %s45
    %p49 = scmp.eq.s32.totalorder %s9, 0
    %p50 = por %p48, %p49
    %p51 = scmp.ne.s32.totalorder %s43, %s45
    %p52 = scmp.eq.s32.totalorder %s14, 1
    %p53 = por %p51, %p52
    %p54 = scmp.ne.s32.totalorder %s45, %s46
    %p55 = scmp.eq.s32.totalorder %s14, 0
    %p56 = por %p54, %p55
    %p57 = scmp.ne.s32.totalorder %s45, %s46
    %p58 = scmp.eq.s32.totalorder %s15, 1
    %p59 = por %p57, %p58
    %p61 = scmp.ne.s32.totalorder %s46, %s60
    %p62 = scmp.eq.s32.totalorder %s15, 0
    %p63 = por %p61, %p62
    %s65 = sadd.s32 %s64, 1
    %p68 = scmp.eq.s32.totalorder %s9, 1
    %p69 = scmp.ne.s32.totalorder %s64, %s66
    %p70 = scmp.eq.s32.totalorder %s9, 0
    %p71 = por %p69, %p70
    %p72 = scmp.ne.s32.totalorder %s64, %s66
    %p73 = scmp.eq.s32.totalorder %s14, 1
    %p74 = por %p72, %p73
    %p75 = scmp.ne.s32.totalorder %s66, %s67
    %p76 = scmp.eq.s32.totalorder %s14, 0
    %p77 = por %p75, %p76
    %p78 = scmp.ne.s32.totalorder %s66, %s67
    %p79 = scmp.eq.s32.totalorder %s15, 1
    %p80 = por %p78, %p79
    %p82 = scmp.ne.s32.totalorder %s67, %s81
    %p83 = scmp.eq.s32.totalorder %s15, 0
    %p84 = por %p82, %p83
    %s85 = ssub.s32 %s9, %s16
    %p86 = scmp.eq.s32.totalorder %s85, 0
    %s88 = sadd.s32 %s87, 1
    %s89 = scalar_select %p86, %s87, %s88
    %p92 = pneg %p86
    %p93 = scmp.eq.s32.totalorder %s9, 1
    %p94 = por %p92, %p93
    %p95 = scmp.ne.s32.totalorder %s87, %s90
    %p96 = scmp.eq.s32.totalorder %s9, 0
    %p97 = por %p95, %p96
    %p98 = scmp.ne.s32.totalorder %s87, %s90
    %p99 = scmp.eq.s32.totalorder %s14, 1
    %p100 = por %p98, %p99
    %p101 = scmp.ne.s32.totalorder %s90, %s91
    %p102 = scmp.eq.s32.totalorder %s14, 0
    %p103 = por %p101, %p102
    %p104 = scmp.ne.s32.totalorder %s90, %s91
    %p105 = scmp.eq.s32.totalorder %s15, 1
    %p106 = por %p104, %p105
    %p108 = scmp.ne.s32.totalorder %s91, %s107
    %p109 = scmp.eq.s32.totalorder %s15, 0
    %p110 = por %p108, %p109
    %p111 = scmp.le.s32.totalorder 1, %s9
    %p112 = scmp.lt.s32.totalorder %s9, 3
    %p113 = pnand %p111, %p112
    %p114 = pneg %p113
    // Predicated region
    $region9: #{conv_decoder_forward.9} parent=5 // pred_check
      _
    $region10: #{conv_decoder_forward.9} parent=5 // pred_check_branch
      %116 = sbr.rel (%p113) target = $region12
    $region11: #{conv_decoder_forward.9} parent=5 // pred_region
      %s117 = ssub.s32 %s9, 1
      // Predicated region
      $region13: #{conv_decoder_forward.9} parent=11 // pred_check
        %p118 = pneg %p56
      $region14: #{conv_decoder_forward.9} parent=11 // pred_check_branch
        %120 = sbr.rel (%p118) target = $region16
      $region15: #{conv_decoder_forward.9} parent=11 // pred_region
        _
      $region16: #{conv_decoder_forward.9} parent=11 // pred_fallthru
        _
      // Predicated region
      $region17: #{conv_decoder_forward.9} parent=11 // pred_check
        %p121 = pneg %p77
      $region18: #{conv_decoder_forward.9} parent=11 // pred_check_branch
        %123 = sbr.rel (%p121) target = $region20
      $region19: #{conv_decoder_forward.9} parent=11 // pred_region
        _
      $region20: #{conv_decoder_forward.9} parent=11 // pred_fallthru
        _
    $region12: #{conv_decoder_forward.9} parent=5 // pred_fallthru
      _
    %p124 = scmp.lt.s32.totalorder %s9, 2
    // Predicated region
    $region21: #{conv_decoder_forward.9} parent=5 // pred_check
      %p125 = pneg %p124
    $region22: #{conv_decoder_forward.9} parent=5 // pred_check_branch
      %127 = sbr.rel (%p125) target = $region24
    $region23: #{conv_decoder_forward.9} parent=5 // pred_region
      // Predicated region
      $region25: #{conv_decoder_forward.9} parent=23 // pred_check
        %p128 = pneg %p29
      $region26: #{conv_decoder_forward.9} parent=23 // pred_check_branch
        %130 = sbr.rel (%p128) target = $region28
      $region27: #{conv_decoder_forward.9} parent=23 // pred_region
        %s131 = smul.u32 128, %s9
        %p132 = scmp.lt.s32.totalorder %s131, 255
        %s133 = scalar_select %p132, %s131, 255
        %s134 = smul.addr %s133, 4
        %s135 = scalar_lea.vmem %s0, %s134
        %s136 = smul.u32 128, %s9
      $region28: #{conv_decoder_forward.9} parent=23 // pred_fallthru
        _
    $region24: #{conv_decoder_forward.9} parent=5 // pred_fallthru
      _
    %p137 = scmp.le.s32.totalorder 1, %s9
    %p138 = scmp.lt.s32.totalorder %s9, 3
    %p139 = pnand %p137, %p138
    %p140 = pneg %p139
    // Predicated region
    $region29: #{conv_decoder_forward.9} parent=5 // pred_check
      _
    $region30: #{conv_decoder_forward.9} parent=5 // pred_check_branch
      %142 = sbr.rel (%p139) target = $region32
    $region31: #{conv_decoder_forward.9} parent=5 // pred_region
      %s143 = ssub.s32 %s9, 1
      %s144 = smul.u32 128, %s14
      %p145 = scmp.lt.s32.totalorder %s144, 255
      %s146 = scalar_select %p145, %s144, 255
      %s147 = smul.addr %s146, 4
      %s148 = scalar_lea.vmem %s0, %s147
      %p149 = pneg %p35
      %p150 = pneg %p32
      %p151 = pneg %p56
      %p152 = pneg %p53
      %p153 = pneg %p77
      %p154 = pneg %p74
      %p155 = pneg %p103
      %p156 = pneg %p100
      %s157 = smul.u32 128, %s14
      %p158 = scmp.lt.s32.totalorder %s157, 255
      %s159 = scalar_select %p158, %s157, 255
      %s160 = smul.addr %s159, 8
      %s161 = scalar_lea.vmem %s3, %s160
      %s162 = smul.u32 128, %s14
      %p163 = scmp.lt.s32.totalorder %s162, 255
      %s164 = scalar_select %p163, %s162, 255
      %s165 = smul.addr %s164, 4
      %s166 = scalar_lea.vmem %s0, %s165
      %s167 = smul.u32 128, %s14
      %s168 = smul.u32 128, %s14
      %p169 = scmp.lt.s32.totalorder %s168, 255
      %s170 = scalar_select %p169, %s168, 255
      %s171 = smul.addr %s170, 8
      %s172 = scalar_lea.vmem %s3, %s171
      %s173 = smul.u32 128, %s14
      %v175 = vld [vmem:[%s166] sm:$0xf]
      %v176 = vld [vmem:[%s166 + $0x4] sm:$0xf]
      %v177 = vld [vmem:[%s166 + $0x8] sm:$0xf]
      %v178 = vld [vmem:[%s166 + $0xc] sm:$0xf]
      %v179 = vld [vmem:[%s166 + $0x10] sm:$0xf]
      %v180 = vld [vmem:[%s166 + $0x14] sm:$0xf]
      %v181 = vld [vmem:[%s166 + $0x18] sm:$0xf]
      %v182 = vld [vmem:[%s166 + $0x1c] sm:$0xf]
      %v183 = vld [vmem:[%s166 + $0x20] sm:$0xf]
      %v184 = vld [vmem:[%s166 + $0x24] sm:$0xf]
      %v185 = vld [vmem:[%s166 + $0x28] sm:$0xf]
      %v186 = vld [vmem:[%s166 + $0x2c] sm:$0xf]
      %v187 = vld [vmem:[%s166 + $0x30] sm:$0xf]
      %v188 = vld [vmem:[%s166 + $0x34] sm:$0xf]
      %v189 = vld [vmem:[%s166 + $0x38] sm:$0xf]
      %v190 = vld [vmem:[%s166 + $0x3c] sm:$0xf]
      %v191 = vld [vmem:[%s166 + $0x40] sm:$0xf]
      %v192 = vld [vmem:[%s166 + $0x44] sm:$0xf]
      %v193 = vld [vmem:[%s166 + $0x48] sm:$0xf]
      %v194 = vld [vmem:[%s166 + $0x4c] sm:$0xf]
      %v195 = vld [vmem:[%s166 + $0x50] sm:$0xf]
      %v196 = vld [vmem:[%s166 + $0x54] sm:$0xf]
      %v197 = vld [vmem:[%s166 + $0x58] sm:$0xf]
      %v198 = vld [vmem:[%s166 + $0x5c] sm:$0xf]
      %v199 = vld [vmem:[%s166 + $0x60] sm:$0xf]
      %v200 = vld [vmem:[%s166 + $0x64] sm:$0xf]
      %v201 = vld [vmem:[%s166 + $0x68] sm:$0xf]
      %v202 = vld [vmem:[%s166 + $0x6c] sm:$0xf]
      %v203 = vld [vmem:[%s166 + $0x70] sm:$0xf]
      %v204 = vld [vmem:[%s166 + $0x74] sm:$0xf]
      %v205 = vld [vmem:[%s166 + $0x78] sm:$0xf]
      %v206 = vld [vmem:[%s166 + $0x7c] sm:$0xf]
      %v207 = vld [vmem:[%s166 + $0x80] sm:$0xf]
      %v208 = vld [vmem:[%s166 + $0x84] sm:$0xf]
      %v209 = vld [vmem:[%s166 + $0x88] sm:$0xf]
      %v210 = vld [vmem:[%s166 + $0x8c] sm:$0xf]
      %v211 = vld [vmem:[%s166 + $0x90] sm:$0xf]
      %v212 = vld [vmem:[%s166 + $0x94] sm:$0xf]
      %v213 = vld [vmem:[%s166 + $0x98] sm:$0xf]
      %v214 = vld [vmem:[%s166 + $0x9c] sm:$0xf]
      %v215 = vld [vmem:[%s166 + $0xa0] sm:$0xf]
      %v216 = vld [vmem:[%s166 + $0xa4] sm:$0xf]
      %v217 = vld [vmem:[%s166 + $0xa8] sm:$0xf]
      %v218 = vld [vmem:[%s166 + $0xac] sm:$0xf]
      %v219 = vld [vmem:[%s166 + $0xb0] sm:$0xf]
      %v220 = vld [vmem:[%s166 + $0xb4] sm:$0xf]
      %v221 = vld [vmem:[%s166 + $0xb8] sm:$0xf]
      %v222 = vld [vmem:[%s166 + $0xbc] sm:$0xf]
      %v223 = vld [vmem:[%s166 + $0xc0] sm:$0xf]
      %v224 = vld [vmem:[%s166 + $0xc4] sm:$0xf]
      %v225 = vld [vmem:[%s166 + $0xc8] sm:$0xf]
      %v226 = vld [vmem:[%s166 + $0xcc] sm:$0xf]
      %v227 = vld [vmem:[%s166 + $0xd0] sm:$0xf]
      %v228 = vld [vmem:[%s166 + $0xd4] sm:$0xf]
      %v229 = vld [vmem:[%s166 + $0xd8] sm:$0xf]
      %v230 = vld [vmem:[%s166 + $0xdc] sm:$0xf]
      %v231 = vld [vmem:[%s166 + $0xe0] sm:$0xf]
      %v232 = vld [vmem:[%s166 + $0xe4] sm:$0xf]
      %v233 = vld [vmem:[%s166 + $0xe8] sm:$0xf]
      %v234 = vld [vmem:[%s166 + $0xec] sm:$0xf]
      %v235 = vld [vmem:[%s166 + $0xf0] sm:$0xf]
      %v236 = vld [vmem:[%s166 + $0xf4] sm:$0xf]
      %v237 = vld [vmem:[%s166 + $0xf8] sm:$0xf]
      %v238 = vld [vmem:[%s166 + $0xfc] sm:$0xf]
      %v239 = vld [vmem:[%s166 + $0x100] sm:$0xf]
      %v240 = vld [vmem:[%s166 + $0x104] sm:$0xf]
      %v241 = vld [vmem:[%s166 + $0x108] sm:$0xf]
      %v242 = vld [vmem:[%s166 + $0x10c] sm:$0xf]
      %v243 = vld [vmem:[%s166 + $0x110] sm:$0xf]
      %v244 = vld [vmem:[%s166 + $0x114] sm:$0xf]
      %v245 = vld [vmem:[%s166 + $0x118] sm:$0xf]
      %v246 = vld [vmem:[%s166 + $0x11c] sm:$0xf]
      %v247 = vld [vmem:[%s166 + $0x120] sm:$0xf]
      %v248 = vld [vmem:[%s166 + $0x124] sm:$0xf]
      %v249 = vld [vmem:[%s166 + $0x128] sm:$0xf]
      %v250 = vld [vmem:[%s166 + $0x12c] sm:$0xf]
      %v251 = vld [vmem:[%s166 + $0x130] sm:$0xf]
      %v252 = vld [vmem:[%s166 + $0x134] sm:$0xf]
      %v253 = vld [vmem:[%s166 + $0x138] sm:$0xf]
      %v254 = vld [vmem:[%s166 + $0x13c] sm:$0xf]
      %v255 = vld [vmem:[%s166 + $0x140] sm:$0xf]
      %v256 = vld [vmem:[%s166 + $0x144] sm:$0xf]
      %v257 = vld [vmem:[%s166 + $0x148] sm:$0xf]
      %v258 = vld [vmem:[%s166 + $0x14c] sm:$0xf]
      %v259 = vld [vmem:[%s166 + $0x150] sm:$0xf]
      %v260 = vld [vmem:[%s166 + $0x154] sm:$0xf]
      %v261 = vld [vmem:[%s166 + $0x158] sm:$0xf]
      %v262 = vld [vmem:[%s166 + $0x15c] sm:$0xf]
      %v263 = vld [vmem:[%s166 + $0x160] sm:$0xf]
      %v264 = vld [vmem:[%s166 + $0x164] sm:$0xf]
      %v265 = vld [vmem:[%s166 + $0x168] sm:$0xf]
      %v266 = vld [vmem:[%s166 + $0x16c] sm:$0xf]
      %v267 = vld [vmem:[%s166 + $0x170] sm:$0xf]
      %v268 = vld [vmem:[%s166 + $0x174] sm:$0xf]
      %v269 = vld [vmem:[%s166 + $0x178] sm:$0xf]
      %v270 = vld [vmem:[%s166 + $0x17c] sm:$0xf]
      %v271 = vld [vmem:[%s166 + $0x180] sm:$0xf]
      %v272 = vld [vmem:[%s166 + $0x184] sm:$0xf]
      %v273 = vld [vmem:[%s166 + $0x188] sm:$0xf]
      %v274 = vld [vmem:[%s166 + $0x18c] sm:$0xf]
      %v275 = vld [vmem:[%s166 + $0x190] sm:$0xf]
      %v276 = vld [vmem:[%s166 + $0x194] sm:$0xf]
      %v277 = vld [vmem:[%s166 + $0x198] sm:$0xf]
      %v278 = vld [vmem:[%s166 + $0x19c] sm:$0xf]
      %v279 = vld [vmem:[%s166 + $0x1a0] sm:$0xf]
      %v280 = vld [vmem:[%s166 + $0x1a4] sm:$0xf]
      %v281 = vld [vmem:[%s166 + $0x1a8] sm:$0xf]
      %v282 = vld [vmem:[%s166 + $0x1ac] sm:$0xf]
      %v283 = vld [vmem:[%s166 + $0x1b0] sm:$0xf]
      %v284 = vld [vmem:[%s166 + $0x1b4] sm:$0xf]
      %v285 = vld [vmem:[%s166 + $0x1b8] sm:$0xf]
      %v286 = vld [vmem:[%s166 + $0x1bc] sm:$0xf]
      %v287 = vld [vmem:[%s166 + $0x1c0] sm:$0xf]
      %v288 = vld [vmem:[%s166 + $0x1c4] sm:$0xf]
      %v289 = vld [vmem:[%s166 + $0x1c8] sm:$0xf]
      %v290 = vld [vmem:[%s166 + $0x1cc] sm:$0xf]
      %v291 = vld [vmem:[%s166 + $0x1d0] sm:$0xf]
      %v292 = vld [vmem:[%s166 + $0x1d4] sm:$0xf]
      %v293 = vld [vmem:[%s166 + $0x1d8] sm:$0xf]
      %v294 = vld [vmem:[%s166 + $0x1dc] sm:$0xf]
      %v295 = vld [vmem:[%s166 + $0x1e0] sm:$0xf]
      %v296 = vld [vmem:[%s166 + $0x1e4] sm:$0xf]
      %v297 = vld [vmem:[%s166 + $0x1e8] sm:$0xf]
      %v298 = vld [vmem:[%s166 + $0x1ec] sm:$0xf]
      %v299 = vld [vmem:[%s166 + $0x1f0] sm:$0xf]
      %v300 = vld [vmem:[%s166 + $0x1f4] sm:$0xf]
      %v301 = vld [vmem:[%s166 + $0x1f8] sm:$0xf]
      %v302 = vld [vmem:[%s166 + $0x1fc] sm:$0xf]
      %v303 = vld [vmem:[%s1] sm:$0xf]
      %v304 = vld [vmem:[%s1 + $0x4] sm:$0xf]
      %v305 = vld [vmem:[%s1 + $0x8] sm:$0xf]
      %v306 = vld [vmem:[%s1 + $0xc] sm:$0xf]
      %v435 = vunpack.c.l.b16 %v175
      %v436 = vunpack.c.l.b16 %v176
      %v437 = vunpack.c.l.b16 %v177
      %v438 = vunpack.c.l.b16 %v178
      %v439 = vunpack.c.l.b16 %v179
      %v440 = vunpack.c.l.b16 %v180
      %v441 = vunpack.c.l.b16 %v181
      %v442 = vunpack.c.l.b16 %v182
      %v443 = vunpack.c.l.b16 %v183
      %v444 = vunpack.c.l.b16 %v184
      %v445 = vunpack.c.l.b16 %v185
      %v446 = vunpack.c.l.b16 %v186
      %v447 = vunpack.c.l.b16 %v187
      %v448 = vunpack.c.l.b16 %v188
      %v449 = vunpack.c.l.b16 %v189
      %v450 = vunpack.c.l.b16 %v190
      %v451 = vunpack.c.l.b16 %v191
      %v452 = vunpack.c.l.b16 %v192
      %v453 = vunpack.c.l.b16 %v193
      %v454 = vunpack.c.l.b16 %v194
      %v455 = vunpack.c.l.b16 %v195
      %v456 = vunpack.c.l.b16 %v196
      %v457 = vunpack.c.l.b16 %v197
      %v458 = vunpack.c.l.b16 %v198
      %v459 = vunpack.c.l.b16 %v199
      %v460 = vunpack.c.l.b16 %v200
      %v461 = vunpack.c.l.b16 %v201
      %v462 = vunpack.c.l.b16 %v202
      %v463 = vunpack.c.l.b16 %v203
      %v464 = vunpack.c.l.b16 %v204
      %v465 = vunpack.c.l.b16 %v205
      %v466 = vunpack.c.l.b16 %v206
      %v467 = vunpack.c.l.b16 %v207
      %v468 = vunpack.c.l.b16 %v208
      %v469 = vunpack.c.l.b16 %v209
      %v470 = vunpack.c.l.b16 %v210
      %v471 = vunpack.c.l.b16 %v211
      %v472 = vunpack.c.l.b16 %v212
      %v473 = vunpack.c.l.b16 %v213
      %v474 = vunpack.c.l.b16 %v214
      %v475 = vunpack.c.l.b16 %v215
      %v476 = vunpack.c.l.b16 %v216
      %v477 = vunpack.c.l.b16 %v217
      %v478 = vunpack.c.l.b16 %v218
      %v479 = vunpack.c.l.b16 %v219
      %v480 = vunpack.c.l.b16 %v220
      %v481 = vunpack.c.l.b16 %v221
      %v482 = vunpack.c.l.b16 %v222
      %v483 = vunpack.c.l.b16 %v223
      %v484 = vunpack.c.l.b16 %v224
      %v485 = vunpack.c.l.b16 %v225
      %v486 = vunpack.c.l.b16 %v226
      %v487 = vunpack.c.l.b16 %v227
      %v488 = vunpack.c.l.b16 %v228
      %v489 = vunpack.c.l.b16 %v229
      %v490 = vunpack.c.l.b16 %v230
      %v491 = vunpack.c.l.b16 %v231
      %v492 = vunpack.c.l.b16 %v232
      %v493 = vunpack.c.l.b16 %v233
      %v494 = vunpack.c.l.b16 %v234
      %v495 = vunpack.c.l.b16 %v235
      %v496 = vunpack.c.l.b16 %v236
      %v497 = vunpack.c.l.b16 %v237
      %v498 = vunpack.c.l.b16 %v238
      %v499 = vunpack.c.l.b16 %v239
      %v500 = vunpack.c.l.b16 %v240
      %v501 = vunpack.c.l.b16 %v241
      %v502 = vunpack.c.l.b16 %v242
      %v503 = vunpack.c.l.b16 %v243
      %v504 = vunpack.c.l.b16 %v244
      %v505 = vunpack.c.l.b16 %v245
      %v506 = vunpack.c.l.b16 %v246
      %v507 = vunpack.c.l.b16 %v247
      %v508 = vunpack.c.l.b16 %v248
      %v509 = vunpack.c.l.b16 %v249
      %v510 = vunpack.c.l.b16 %v250
      %v511 = vunpack.c.l.b16 %v251
      %v512 = vunpack.c.l.b16 %v252
      %v513 = vunpack.c.l.b16 %v253
      %v514 = vunpack.c.l.b16 %v254
      %v515 = vunpack.c.l.b16 %v255
      %v516 = vunpack.c.l.b16 %v256
      %v517 = vunpack.c.l.b16 %v257
      %v518 = vunpack.c.l.b16 %v258
      %v519 = vunpack.c.l.b16 %v259
      %v520 = vunpack.c.l.b16 %v260
      %v521 = vunpack.c.l.b16 %v261
      %v522 = vunpack.c.l.b16 %v262
      %v523 = vunpack.c.l.b16 %v263
      %v524 = vunpack.c.l.b16 %v264
      %v525 = vunpack.c.l.b16 %v265
      %v526 = vunpack.c.l.b16 %v266
      %v527 = vunpack.c.l.b16 %v267
      %v528 = vunpack.c.l.b16 %v268
      %v529 = vunpack.c.l.b16 %v269
      %v530 = vunpack.c.l.b16 %v270
      %v531 = vunpack.c.l.b16 %v271
      %v532 = vunpack.c.l.b16 %v272
      %v533 = vunpack.c.l.b16 %v273
      %v534 = vunpack.c.l.b16 %v274
      %v535 = vunpack.c.l.b16 %v275
      %v536 = vunpack.c.l.b16 %v276
      %v537 = vunpack.c.l.b16 %v277
      %v538 = vunpack.c.l.b16 %v278
      %v539 = vunpack.c.l.b16 %v279
      %v540 = vunpack.c.l.b16 %v280
      %v541 = vunpack.c.l.b16 %v281
      %v542 = vunpack.c.l.b16 %v282
      %v543 = vunpack.c.l.b16 %v283
      %v544 = vunpack.c.l.b16 %v284
      %v545 = vunpack.c.l.b16 %v285
      %v546 = vunpack.c.l.b16 %v286
      %v547 = vunpack.c.l.b16 %v287
      %v548 = vunpack.c.l.b16 %v288
      %v549 = vunpack.c.l.b16 %v289
      %v550 = vunpack.c.l.b16 %v290
      %v551 = vunpack.c.l.b16 %v291
      %v552 = vunpack.c.l.b16 %v292
      %v553 = vunpack.c.l.b16 %v293
      %v554 = vunpack.c.l.b16 %v294
      %v555 = vunpack.c.l.b16 %v295
      %v556 = vunpack.c.l.b16 %v296
      %v557 = vunpack.c.l.b16 %v297
      %v558 = vunpack.c.l.b16 %v298
      %v559 = vunpack.c.l.b16 %v299
      %v560 = vunpack.c.l.b16 %v300
      %v561 = vunpack.c.l.b16 %v301
      %v562 = vunpack.c.l.b16 %v302
      %v563 = vpack.c.b16 %v436, %v435
      %v564 = vpack.c.b16 %v438, %v437
      %v565 = vpack.c.b16 %v440, %v439
      %v566 = vpack.c.b16 %v442, %v441
      %v567 = vpack.c.b16 %v444, %v443
      %v568 = vpack.c.b16 %v446, %v445
      %v569 = vpack.c.b16 %v448, %v447
      %v570 = vpack.c.b16 %v450, %v449
      %v571 = vpack.c.b16 %v452, %v451
      %v572 = vpack.c.b16 %v454, %v453
      %v573 = vpack.c.b16 %v456, %v455
      %v574 = vpack.c.b16 %v458, %v457
      %v575 = vpack.c.b16 %v460, %v459
      %v576 = vpack.c.b16 %v462, %v461
      %v577 = vpack.c.b16 %v464, %v463
      %v578 = vpack.c.b16 %v466, %v465
      %v579 = vpack.c.b16 %v468, %v467
      %v580 = vpack.c.b16 %v470, %v469
      %v581 = vpack.c.b16 %v472, %v471
      %v582 = vpack.c.b16 %v474, %v473
      %v583 = vpack.c.b16 %v476, %v475
      %v584 = vpack.c.b16 %v478, %v477
      %v585 = vpack.c.b16 %v480, %v479
      %v586 = vpack.c.b16 %v482, %v481
      %v587 = vpack.c.b16 %v484, %v483
      %v588 = vpack.c.b16 %v486, %v485
      %v589 = vpack.c.b16 %v488, %v487
      %v590 = vpack.c.b16 %v490, %v489
      %v591 = vpack.c.b16 %v492, %v491
      %v592 = vpack.c.b16 %v494, %v493
      %v593 = vpack.c.b16 %v496, %v495
      %v594 = vpack.c.b16 %v498, %v497
      %v595 = vpack.c.b16 %v500, %v499
      %v596 = vpack.c.b16 %v502, %v501
      %v597 = vpack.c.b16 %v504, %v503
      %v598 = vpack.c.b16 %v506, %v505
      %v599 = vpack.c.b16 %v508, %v507
      %v600 = vpack.c.b16 %v510, %v509
      %v601 = vpack.c.b16 %v512, %v511
      %v602 = vpack.c.b16 %v514, %v513
      %v603 = vpack.c.b16 %v516, %v515
      %v604 = vpack.c.b16 %v518, %v517
      %v605 = vpack.c.b16 %v520, %v519
      %v606 = vpack.c.b16 %v522, %v521
      %v607 = vpack.c.b16 %v524, %v523
      %v608 = vpack.c.b16 %v526, %v525
      %v609 = vpack.c.b16 %v528, %v527
      %v610 = vpack.c.b16 %v530, %v529
      %v611 = vpack.c.b16 %v532, %v531
      %v612 = vpack.c.b16 %v534, %v533
      %v613 = vpack.c.b16 %v536, %v535
      %v614 = vpack.c.b16 %v538, %v537
      %v615 = vpack.c.b16 %v540, %v539
      %v616 = vpack.c.b16 %v542, %v541
      %v617 = vpack.c.b16 %v544, %v543
      %v618 = vpack.c.b16 %v546, %v545
      %v619 = vpack.c.b16 %v548, %v547
      %v620 = vpack.c.b16 %v550, %v549
      %v621 = vpack.c.b16 %v552, %v551
      %v622 = vpack.c.b16 %v554, %v553
      %v623 = vpack.c.b16 %v556, %v555
      %v624 = vpack.c.b16 %v558, %v557
      %v625 = vpack.c.b16 %v560, %v559
      %v626 = vpack.c.b16 %v562, %v561
      %v631 = vunpack.c.l.b16 %v303
      %v632 = vunpack.c.l.b16 %v304
      %v633 = vunpack.c.l.b16 %v305
      %v634 = vunpack.c.l.b16 %v306
      %v635 = vpack.c.b16 %v632, %v631
      %v636 = vpack.c.b16 %v634, %v633
      %vm639 = vcmask 261120
      %v641 = vsel %vm639, %v563, 0
      %v644 = vsel %vm639, %v564, 0
      %v647 = vsel %vm639, %v565, 0
      %v650 = vsel %vm639, %v566, 0
      %v653 = vsel %vm639, %v567, 0
      %v656 = vsel %vm639, %v568, 0
      %v659 = vsel %vm639, %v569, 0
      %v662 = vsel %vm639, %v570, 0
      %v665 = vsel %vm639, %v571, 0
      %v668 = vsel %vm639, %v572, 0
      %v671 = vsel %vm639, %v573, 0
      %v674 = vsel %vm639, %v574, 0
      %v677 = vsel %vm639, %v575, 0
      %v680 = vsel %vm639, %v576, 0
      %v683 = vsel %vm639, %v577, 0
      %v686 = vsel %vm639, %v578, 0
      %v689 = vsel %vm639, %v579, 0
      %v692 = vsel %vm639, %v580, 0
      %v695 = vsel %vm639, %v581, 0
      %v698 = vsel %vm639, %v582, 0
      %v701 = vsel %vm639, %v583, 0
      %v704 = vsel %vm639, %v584, 0
      %v707 = vsel %vm639, %v585, 0
      %v710 = vsel %vm639, %v586, 0
      %v713 = vsel %vm639, %v587, 0
      %v716 = vsel %vm639, %v588, 0
      %v719 = vsel %vm639, %v589, 0
      %v722 = vsel %vm639, %v590, 0
      %v725 = vsel %vm639, %v591, 0
      %v728 = vsel %vm639, %v592, 0
      %v731 = vsel %vm639, %v593, 0
      %v734 = vsel %vm639, %v594, 0
      %v737 = vsel %vm639, %v595, 0
      %v740 = vsel %vm639, %v596, 0
      %v743 = vsel %vm639, %v597, 0
      %v746 = vsel %vm639, %v598, 0
      %v749 = vsel %vm639, %v599, 0
      %v752 = vsel %vm639, %v600, 0
      %v755 = vsel %vm639, %v601, 0
      %v758 = vsel %vm639, %v602, 0
      %v761 = vsel %vm639, %v603, 0
      %v764 = vsel %vm639, %v604, 0
      %v767 = vsel %vm639, %v605, 0
      %v770 = vsel %vm639, %v606, 0
      %v773 = vsel %vm639, %v607, 0
      %v776 = vsel %vm639, %v608, 0
      %v779 = vsel %vm639, %v609, 0
      %v782 = vsel %vm639, %v610, 0
      %v785 = vsel %vm639, %v611, 0
      %v788 = vsel %vm639, %v612, 0
      %v791 = vsel %vm639, %v613, 0
      %v794 = vsel %vm639, %v614, 0
      %v797 = vsel %vm639, %v615, 0
      %v800 = vsel %vm639, %v616, 0
      %v803 = vsel %vm639, %v617, 0
      %v806 = vsel %vm639, %v618, 0
      %v809 = vsel %vm639, %v619, 0
      %v812 = vsel %vm639, %v620, 0
      %v815 = vsel %vm639, %v621, 0
      %v818 = vsel %vm639, %v622, 0
      %v821 = vsel %vm639, %v623, 0
      %v824 = vsel %vm639, %v624, 0
      %v827 = vsel %vm639, %v625, 0
      %v830 = vsel %vm639, %v626, 0
      %832 = vmatprep.subr.bf16.mxu0 0
      %833 = vmatpush1.bf16.msra.mxu0 %v635
      %834 = vmatprep.subr.bf16.mxu0 0
      %835 = vmatpush1.bf16.msra.mxu0 %v636
      %836 = vmatprep.subr.bf16.mxu0 0
      %837 = vmatpush1.bf16.msra.mxu0 0
      %838 = vmatprep.subr.bf16.mxu0 0
      %839 = vmatpush1.bf16.msra.mxu0 0
      %840 = vmatprep.subr.bf16.mxu0 0
      %841 = vmatpush1.bf16.msra.mxu0 0
      %842 = vmatprep.subr.bf16.mxu0 0
      %843 = vmatpush1.bf16.msra.mxu0 0
      %844 = vmatprep.subr.bf16.mxu0 0
      %845 = vmatpush1.bf16.msra.mxu0 0
      %846 = vmatprep.subr.bf16.mxu0 0
      %847 = vmatpush1.bf16.msra.mxu0 0
      %848 = vmatprep.subr.bf16.mxu0 0
      %849 = vmatpush1.bf16.msra.mxu0 0
      %850 = vmatprep.subr.bf16.mxu0 0
      %851 = vmatpush1.bf16.msra.mxu0 0
      %852 = vmatprep.subr.bf16.mxu0 0
      %853 = vmatpush1.bf16.msra.mxu0 0
      %854 = vmatprep.subr.bf16.mxu0 0
      %855 = vmatpush1.bf16.msra.mxu0 0
      %856 = vmatprep.subr.bf16.mxu0 0
      %857 = vmatpush1.bf16.msra.mxu0 0
      %858 = vmatprep.subr.bf16.mxu0 0
      %859 = vmatpush1.bf16.msra.mxu0 0
      %860 = vmatprep.subr.bf16.mxu0 0
      %861 = vmatpush1.bf16.msra.mxu0 0
      %862 = vmatprep.subr.bf16.mxu0 0
      %863 = vmatpush1.bf16.msra.mxu0 0
      %864 = vmatprep.mubr.bf16.mxu0 0
      %865 = vmatmul.mubr.bf16.gmra.mrb[0].mxu0 %v641
      %v866 = vpop.f32.mrb[0].mxu0
      %v867 = vadd.f32 0.0, %v866
      %v868 = vpop.f32.mrb[0].mxu0
      %v869 = vpop.f32.mrb[0].mxu0
      %v870 = vadd.f32 0.0, %v869
      %v871 = vpop.f32.mrb[0].mxu0
      %872 = vmatprep.mubr.bf16.mxu0 0
      %873 = vmatmul.mubr.bf16.gmra.mrb[0].mxu0 %v644
      %v874 = vpop.f32.mrb[0].mxu0
      %v875 = vadd.f32 0.0, %v874
      %v876 = vpop.f32.mrb[0].mxu0
      %v877 = vpop.f32.mrb[0].mxu0
      %v878 = vadd.f32 0.0, %v877
      %v879 = vpop.f32.mrb[0].mxu0
      %880 = vmatprep.mubr.bf16.mxu0 0
      %881 = vmatmul.mubr.bf16.gmra.mrb[0].mxu0 %v647
      %v882 = vpop.f32.mrb[0].mxu0
      %v883 = vadd.f32 0.0, %v882
      %v884 = vpop.f32.mrb[0].mxu0
      %v885 = vpop.f32.mrb[0].mxu0
      %v886 = vadd.f32 0.0, %v885
      %v887 = vpop.f32.mrb[0].mxu0
      %888 = vmatprep.mubr.bf16.mxu0 0
      %889 = vmatmul.mubr.bf16.gmra.mrb[0].mxu0 %v650
      %v890 = vpop.f32.mrb[0].mxu0
      %v891 = vadd.f32 0.0, %v890
      %v892 = vpop.f32.mrb[0].mxu0
      %v893 = vpop.f32.mrb[0].mxu0
      %v894 = vadd.f32 0.0, %v893
      %v895 = vpop.f32.mrb[0].mxu0
      %896 = vmatprep.mubr.bf16.mxu0 0
      %897 = vmatmul.mubr.bf16.gmra.mrb[0].mxu0 %v653
      %v898 = vpop.f32.mrb[0].mxu0
      %v899 = vadd.f32 0.0, %v898
      %v900 = vpop.f32.mrb[0].mxu0
      %v901 = vpop.f32.mrb[0].mxu0
      %v902 = vadd.f32 0.0, %v901
      %v903 = vpop.f32.mrb[0].mxu0
      %904 = vmatprep.mubr.bf16.mxu0 0
      %905 = vmatmul.mubr.bf16.gmra.mrb[0].mxu0 %v656
      %v906 = vpop.f32.mrb[0].mxu0
      %v907 = vadd.f32 0.0, %v906
      %v908 = vpop.f32.mrb[0].mxu0
      %v909 = vpop.f32.mrb[0].mxu0
      %v910 = vadd.f32 0.0, %v909
      %v911 = vpop.f32.mrb[0].mxu0
      %912 = vmatprep.mubr.bf16.mxu0 0
      %913 = vmatmul.mubr.bf16.gmra.mrb[0].mxu0 %v659
      %v914 = vpop.f32.mrb[0].mxu0
      %v915 = vadd.f32 0.0, %v914
      %v916 = vpop.f32.mrb[0].mxu0
      %v917 = vpop.f32.mrb[0].mxu0
      %v918 = vadd.f32 0.0, %v917
      %v919 = vpop.f32.mrb[0].mxu0
      %920 = vmatprep.mubr.bf16.mxu0 0
      %921 = vmatmul.mubr.bf16.gmra.mrb[0].mxu0 %v662
      %v922 = vpop.f32.mrb[0].mxu0
      %v923 = vadd.f32 0.0, %v922
      %v924 = vpop.f32.mrb[0].mxu0
      %v925 = vpop.f32.mrb[0].mxu0
      %v926 = vadd.f32 0.0, %v925
      %v927 = vpop.f32.mrb[0].mxu0
      %928 = vmatprep.mubr.bf16.mxu0 0
      %929 = vmatmul.mubr.bf16.gmra.mrb[0].mxu0 %v665
      %v930 = vpop.f32.mrb[0].mxu0
      %v931 = vadd.f32 0.0, %v930
      %v932 = vpop.f32.mrb[0].mxu0
      %v933 = vpop.f32.mrb[0].mxu0
      %v934 = vadd.f32 0.0, %v933
      %v935 = vpop.f32.mrb[0].mxu0
      %936 = vmatprep.mubr.bf16.mxu0 0
      %937 = vmatmul.mubr.bf16.gmra.mrb[0].mxu0 %v668
      %v938 = vpop.f32.mrb[0].mxu0
      %v939 = vadd.f32 0.0, %v938
      %v940 = vpop.f32.mrb[0].mxu0
      %v941 = vpop.f32.mrb[0].mxu0
      %v942 = vadd.f32 0.0, %v941
      %v943 = vpop.f32.mrb[0].mxu0
      %944 = vmatprep.mubr.bf16.mxu0 0
      %945 = vmatmul.mubr.bf16.gmra.mrb[0].mxu0 %v671
      %v946 = vpop.f32.mrb[0].mxu0
      %v947 = vadd.f32 0.0, %v946
      %v948 = vpop.f32.mrb[0].mxu0
      %v949 = vpop.f32.mrb[0].mxu0
      %v950 = vadd.f32 0.0, %v949
      %v951 = vpop.f32.mrb[0].mxu0
      %952 = vmatprep.mubr.bf16.mxu0 0
      %953 = vmatmul.mubr.bf16.gmra.mrb[0].mxu0 %v674
      %v954 = vpop.f32.mrb[0].mxu0
      %v955 = vadd.f32 0.0, %v954
      %v956 = vpop.f32.mrb[0].mxu0
      %v957 = vpop.f32.mrb[0].mxu0
      %v958 = vadd.f32 0.0, %v957
      %v959 = vpop.f32.mrb[0].mxu0
      %960 = vmatprep.mubr.bf16.mxu0 0
      %961 = vmatmul.mubr.bf16.gmra.mrb[0].mxu0 %v677
      %v962 = vpop.f32.mrb[0].mxu0
      %v963 = vadd.f32 0.0, %v962
      %v964 = vpop.f32.mrb[0].mxu0
      %v965 = vpop.f32.mrb[0].mxu0
      %v966 = vadd.f32 0.0, %v965
      %v967 = vpop.f32.mrb[0].mxu0
      %968 = vmatprep.mubr.bf16.mxu0 0
      %969 = vmatmul.mubr.bf16.gmra.mrb[0].mxu0 %v680
      %v970 = vpop.f32.mrb[0].mxu0
      %v971 = vadd.f32 0.0, %v970
      %v972 = vpop.f32.mrb[0].mxu0
      %v973 = vpop.f32.mrb[0].mxu0
      %v974 = vadd.f32 0.0, %v973
      %v975 = vpop.f32.mrb[0].mxu0
      %976 = vmatprep.mubr.bf16.mxu0 0
      %977 = vmatmul.mubr.bf16.gmra.mrb[0].mxu0 %v683
      %v978 = vpop.f32.mrb[0].mxu0
      %v979 = vadd.f32 0.0, %v978
      %v980 = vpop.f32.mrb[0].mxu0
      %v981 = vpop.f32.mrb[0].mxu0
      %v982 = vadd.f32 0.0, %v981
      %v983 = vpop.f32.mrb[0].mxu0
      %984 = vmatprep.mubr.bf16.mxu0 0
      %985 = vmatmul.mubr.bf16.gmra.mrb[0].mxu0 %v686
      %v986 = vpop.f32.mrb[0].mxu0
      %v987 = vadd.f32 0.0, %v986
      %v988 = vpop.f32.mrb[0].mxu0
      %v989 = vpop.f32.mrb[0].mxu0
      %v990 = vadd.f32 0.0, %v989
      %v991 = vpop.f32.mrb[0].mxu0
      %992 = vmatprep.mubr.bf16.mxu0 0
      %993 = vmatmul.mubr.bf16.gmra.mrb[0].mxu0 %v689
      %v994 = vpop.f32.mrb[0].mxu0
      %v995 = vadd.f32 0.0, %v994
      %v996 = vpop.f32.mrb[0].mxu0
      %v997 = vpop.f32.mrb[0].mxu0
      %v998 = vadd.f32 0.0, %v997
      %v999 = vpop.f32.mrb[0].mxu0
      %1000 = vmatprep.mubr.bf16.mxu0 0
      %1001 = vmatmul.mubr.bf16.gmra.mrb[0].mxu0 %v692
      %v1002 = vpop.f32.mrb[0].mxu0
      %v1003 = vadd.f32 0.0, %v1002
      %v1004 = vpop.f32.mrb[0].mxu0
      %v1005 = vpop.f32.mrb[0].mxu0
      %v1006 = vadd.f32 0.0, %v1005
      %v1007 = vpop.f32.mrb[0].mxu0
      %1008 = vmatprep.mubr.bf16.mxu0 0
      %1009 = vmatmul.mubr.bf16.gmra.mrb[0].mxu0 %v695
      %v1010 = vpop.f32.mrb[0].mxu0
      %v1011 = vadd.f32 0.0, %v1010
      %v1012 = vpop.f32.mrb[0].mxu0
      %v1013 = vpop.f32.mrb[0].mxu0
      %v1014 = vadd.f32 0.0, %v1013
      %v1015 = vpop.f32.mrb[0].mxu0
      %1016 = vmatprep.mubr.bf16.mxu0 0
      %1017 = vmatmul.mubr.bf16.gmra.mrb[0].mxu0 %v698
      %v1018 = vpop.f32.mrb[0].mxu0
      %v1019 = vadd.f32 0.0, %v1018
      %v1020 = vpop.f32.mrb[0].mxu0
      %v1021 = vpop.f32.mrb[0].mxu0
      %v1022 = vadd.f32 0.0, %v1021
      %v1023 = vpop.f32.mrb[0].mxu0
      %1024 = vmatprep.mubr.bf16.mxu0 0
      %1025 = vmatmul.mubr.bf16.gmra.mrb[0].mxu0 %v701
      %v1026 = vpop.f32.mrb[0].mxu0
      %v1027 = vadd.f32 0.0, %v1026
      %v1028 = vpop.f32.mrb[0].mxu0
      %v1029 = vpop.f32.mrb[0].mxu0
      %v1030 = vadd.f32 0.0, %v1029
      %v1031 = vpop.f32.mrb[0].mxu0
      %1032 = vmatprep.mubr.bf16.mxu0 0
      %1033 = vmatmul.mubr.bf16.gmra.mrb[0].mxu0 %v704
      %v1034 = vpop.f32.mrb[0].mxu0
      %v1035 = vadd.f32 0.0, %v1034
      %v1036 = vpop.f32.mrb[0].mxu0
      %v1037 = vpop.f32.mrb[0].mxu0
      %v1038 = vadd.f32 0.0, %v1037
      %v1039 = vpop.f32.mrb[0].mxu0
      %1040 = vmatprep.mubr.bf16.mxu0 0
      %1041 = vmatmul.mubr.bf16.gmra.mrb[0].mxu0 %v707
      %v1042 = vpop.f32.mrb[0].mxu0
      %v1043 = vadd.f32 0.0, %v1042
      %v1044 = vpop.f32.mrb[0].mxu0
      %v1045 = vpop.f32.mrb[0].mxu0
      %v1046 = vadd.f32 0.0, %v1045
      %v1047 = vpop.f32.mrb[0].mxu0
      %1048 = vmatprep.mubr.bf16.mxu0 0
      %1049 = vmatmul.mubr.bf16.gmra.mrb[0].mxu0 %v710
      %v1050 = vpop.f32.mrb[0].mxu0
      %v1051 = vadd.f32 0.0, %v1050
      %v1052 = vpop.f32.mrb[0].mxu0
      %v1053 = vpop.f32.mrb[0].mxu0
      %v1054 = vadd.f32 0.0, %v1053
      %v1055 = vpop.f32.mrb[0].mxu0
      %1056 = vmatprep.mubr.bf16.mxu0 0
      %1057 = vmatmul.mubr.bf16.gmra.mrb[0].mxu0 %v713
      %v1058 = vpop.f32.mrb[0].mxu0
      %v1059 = vadd.f32 0.0, %v1058
      %v1060 = vpop.f32.mrb[0].mxu0
      %v1061 = vpop.f32.mrb[0].mxu0
      %v1062 = vadd.f32 0.0, %v1061
      %v1063 = vpop.f32.mrb[0].mxu0
      %1064 = vmatprep.mubr.bf16.mxu0 0
      %1065 = vmatmul.mubr.bf16.gmra.mrb[0].mxu0 %v716
      %v1066 = vpop.f32.mrb[0].mxu0
      %v1067 = vadd.f32 0.0, %v1066
      %v1068 = vpop.f32.mrb[0].mxu0
      %v1069 = vpop.f32.mrb[0].mxu0
      %v1070 = vadd.f32 0.0, %v1069
      %v1071 = vpop.f32.mrb[0].mxu0
      %1072 = vmatprep.mubr.bf16.mxu0 0
      %1073 = vmatmul.mubr.bf16.gmra.mrb[0].mxu0 %v719
      %v1074 = vpop.f32.mrb[0].mxu0
      %v1075 = vadd.f32 0.0, %v1074
      %v1076 = vpop.f32.mrb[0].mxu0
      %v1077 = vpop.f32.mrb[0].mxu0
      %v1078 = vadd.f32 0.0, %v1077
      %v1079 = vpop.f32.mrb[0].mxu0
      %1080 = vmatprep.mubr.bf16.mxu0 0
      %1081 = vmatmul.mubr.bf16.gmra.mrb[0].mxu0 %v722
      %v1082 = vpop.f32.mrb[0].mxu0
      %v1083 = vadd.f32 0.0, %v1082
      %v1084 = vpop.f32.mrb[0].mxu0
      %v1085 = vpop.f32.mrb[0].mxu0
      %v1086 = vadd.f32 0.0, %v1085
      %v1087 = vpop.f32.mrb[0].mxu0
      %1088 = vmatprep.mubr.bf16.mxu0 0
      %1089 = vmatmul.mubr.bf16.gmra.mrb[0].mxu0 %v725
      %v1090 = vpop.f32.mrb[0].mxu0
      %v1091 = vadd.f32 0.0, %v1090
      %v1092 = vpop.f32.mrb[0].mxu0
      %v1093 = vpop.f32.mrb[0].mxu0
      %v1094 = vadd.f32 0.0, %v1093
      %v1095 = vpop.f32.mrb[0].mxu0
      %1096 = vmatprep.mubr.bf16.mxu0 0
      %1097 = vmatmul.mubr.bf16.gmra.mrb[0].mxu0 %v728
      %v1098 = vpop.f32.mrb[0].mxu0
      %v1099 = vadd.f32 0.0, %v1098
      %v1100 = vpop.f32.mrb[0].mxu0
      %v1101 = vpop.f32.mrb[0].mxu0
      %v1102 = vadd.f32 0.0, %v1101
      %v1103 = vpop.f32.mrb[0].mxu0
      %1104 = vmatprep.mubr.bf16.mxu0 0
      %1105 = vmatmul.mubr.bf16.gmra.mrb[0].mxu0 %v731
      %v1106 = vpop.f32.mrb[0].mxu0
      %v1107 = vadd.f32 0.0, %v1106
      %v1108 = vpop.f32.mrb[0].mxu0
      %v1109 = vpop.f32.mrb[0].mxu0
      %v1110 = vadd.f32 0.0, %v1109
      %v1111 = vpop.f32.mrb[0].mxu0
      %1112 = vmatprep.mubr.bf16.mxu0 0
      %1113 = vmatmul.mubr.bf16.gmra.mrb[0].mxu0 %v734
      %v1114 = vpop.f32.mrb[0].mxu0
      %v1115 = vadd.f32 0.0, %v1114
      %v1116 = vpop.f32.mrb[0].mxu0
      %v1117 = vpop.f32.mrb[0].mxu0
      %v1118 = vadd.f32 0.0, %v1117
      %v1119 = vpop.f32.mrb[0].mxu0
      %1120 = vmatprep.mubr.bf16.mxu0 0
      %1121 = vmatmul.mubr.bf16.gmra.mrb[0].mxu0 %v737
      %v1122 = vpop.f32.mrb[0].mxu0
      %v1123 = vadd.f32 0.0, %v1122
      %v1124 = vpop.f32.mrb[0].mxu0
      %v1125 = vpop.f32.mrb[0].mxu0
      %v1126 = vadd.f32 0.0, %v1125
      %v1127 = vpop.f32.mrb[0].mxu0
      %1128 = vmatprep.mubr.bf16.mxu0 0
      %1129 = vmatmul.mubr.bf16.gmra.mrb[0].mxu0 %v740
      %v1130 = vpop.f32.mrb[0].mxu0
      %v1131 = vadd.f32 0.0, %v1130
      %v1132 = vpop.f32.mrb[0].mxu0
      %v1133 = vpop.f32.mrb[0].mxu0
      %v1134 = vadd.f32 0.0, %v1133
      %v1135 = vpop.f32.mrb[0].mxu0
      %1136 = vmatprep.mubr.bf16.mxu0 0
      %1137 = vmatmul.mubr.bf16.gmra.mrb[0].mxu0 %v743
      %v1138 = vpop.f32.mrb[0].mxu0
      %v1139 = vadd.f32 0.0, %v1138
      %v1140 = vpop.f32.mrb[0].mxu0
      %v1141 = vpop.f32.mrb[0].mxu0
      %v1142 = vadd.f32 0.0, %v1141
      %v1143 = vpop.f32.mrb[0].mxu0
      %1144 = vmatprep.mubr.bf16.mxu0 0
      %1145 = vmatmul.mubr.bf16.gmra.mrb[0].mxu0 %v746
      %v1146 = vpop.f32.mrb[0].mxu0
      %v1147 = vadd.f32 0.0, %v1146
      %v1148 = vpop.f32.mrb[0].mxu0
      %v1149 = vpop.f32.mrb[0].mxu0
      %v1150 = vadd.f32 0.0, %v1149
      %v1151 = vpop.f32.mrb[0].mxu0
      %1152 = vmatprep.mubr.bf16.mxu0 0
      %1153 = vmatmul.mubr.bf16.gmra.mrb[0].mxu0 %v749
      %v1154 = vpop.f32.mrb[0].mxu0
      %v1155 = vadd.f32 0.0, %v1154
      %v1156 = vpop.f32.mrb[0].mxu0
      %v1157 = vpop.f32.mrb[0].mxu0
      %v1158 = vadd.f32 0.0, %v1157
      %v1159 = vpop.f32.mrb[0].mxu0
      %1160 = vmatprep.mubr.bf16.mxu0 0
      %1161 = vmatmul.mubr.bf16.gmra.mrb[0].mxu0 %v752
      %v1162 = vpop.f32.mrb[0].mxu0
      %v1163 = vadd.f32 0.0, %v1162
      %v1164 = vpop.f32.mrb[0].mxu0
      %v1165 = vpop.f32.mrb[0].mxu0
      %v1166 = vadd.f32 0.0, %v1165
      %v1167 = vpop.f32.mrb[0].mxu0
      %1168 = vmatprep.mubr.bf16.mxu0 0
      %1169 = vmatmul.mubr.bf16.gmra.mrb[0].mxu0 %v755
      %v1170 = vpop.f32.mrb[0].mxu0
      %v1171 = vadd.f32 0.0, %v1170
      %v1172 = vpop.f32.mrb[0].mxu0
      %v1173 = vpop.f32.mrb[0].mxu0
      %v1174 = vadd.f32 0.0, %v1173
      %v1175 = vpop.f32.mrb[0].mxu0
      %1176 = vmatprep.mubr.bf16.mxu0 0
      %1177 = vmatmul.mubr.bf16.gmra.mrb[0].mxu0 %v758
      %v1178 = vpop.f32.mrb[0].mxu0
      %v1179 = vadd.f32 0.0, %v1178
      %v1180 = vpop.f32.mrb[0].mxu0
      %v1181 = vpop.f32.mrb[0].mxu0
      %v1182 = vadd.f32 0.0, %v1181
      %v1183 = vpop.f32.mrb[0].mxu0
      %1184 = vmatprep.mubr.bf16.mxu0 0
      %1185 = vmatmul.mubr.bf16.gmra.mrb[0].mxu0 %v761
      %v1186 = vpop.f32.mrb[0].mxu0
      %v1187 = vadd.f32 0.0, %v1186
      %v1188 = vpop.f32.mrb[0].mxu0
      %v1189 = vpop.f32.mrb[0].mxu0
      %v1190 = vadd.f32 0.0, %v1189
      %v1191 = vpop.f32.mrb[0].mxu0
      %1192 = vmatprep.mubr.bf16.mxu0 0
      %1193 = vmatmul.mubr.bf16.gmra.mrb[0].mxu0 %v764
      %v1194 = vpop.f32.mrb[0].mxu0
      %v1195 = vadd.f32 0.0, %v1194
      %v1196 = vpop.f32.mrb[0].mxu0
      %v1197 = vpop.f32.mrb[0].mxu0
      %v1198 = vadd.f32 0.0, %v1197
      %v1199 = vpop.f32.mrb[0].mxu0
      %1200 = vmatprep.mubr.bf16.mxu0 0
      %1201 = vmatmul.mubr.bf16.gmra.mrb[0].mxu0 %v767
      %v1202 = vpop.f32.mrb[0].mxu0
      %v1203 = vadd.f32 0.0, %v1202
      %v1204 = vpop.f32.mrb[0].mxu0
      %v1205 = vpop.f32.mrb[0].mxu0
      %v1206 = vadd.f32 0.0, %v1205
      %v1207 = vpop.f32.mrb[0].mxu0
      %1208 = vmatprep.mubr.bf16.mxu0 0
      %1209 = vmatmul.mubr.bf16.gmra.mrb[0].mxu0 %v770
      %v1210 = vpop.f32.mrb[0].mxu0
      %v1211 = vadd.f32 0.0, %v1210
      %v1212 = vpop.f32.mrb[0].mxu0
      %v1213 = vpop.f32.mrb[0].mxu0
      %v1214 = vadd.f32 0.0, %v1213
      %v1215 = vpop.f32.mrb[0].mxu0
      %1216 = vmatprep.mubr.bf16.mxu0 0
      %1217 = vmatmul.mubr.bf16.gmra.mrb[0].mxu0 %v773
      %v1218 = vpop.f32.mrb[0].mxu0
      %v1219 = vadd.f32 0.0, %v1218
      %v1220 = vpop.f32.mrb[0].mxu0
      %v1221 = vpop.f32.mrb[0].mxu0
      %v1222 = vadd.f32 0.0, %v1221
      %v1223 = vpop.f32.mrb[0].mxu0
      %1224 = vmatprep.mubr.bf16.mxu0 0
      %1225 = vmatmul.mubr.bf16.gmra.mrb[0].mxu0 %v776
      %v1226 = vpop.f32.mrb[0].mxu0
      %v1227 = vadd.f32 0.0, %v1226
      %v1228 = vpop.f32.mrb[0].mxu0
      %v1229 = vpop.f32.mrb[0].mxu0
      %v1230 = vadd.f32 0.0, %v1229
      %v1231 = vpop.f32.mrb[0].mxu0
      %1232 = vmatprep.mubr.bf16.mxu0 0
      %1233 = vmatmul.mubr.bf16.gmra.mrb[0].mxu0 %v779
      %v1234 = vpop.f32.mrb[0].mxu0
      %v1235 = vadd.f32 0.0, %v1234
      %v1236 = vpop.f32.mrb[0].mxu0
      %v1237 = vpop.f32.mrb[0].mxu0
      %v1238 = vadd.f32 0.0, %v1237
      %v1239 = vpop.f32.mrb[0].mxu0
      %1240 = vmatprep.mubr.bf16.mxu0 0
      %1241 = vmatmul.mubr.bf16.gmra.mrb[0].mxu0 %v782
      %v1242 = vpop.f32.mrb[0].mxu0
      %v1243 = vadd.f32 0.0, %v1242
      %v1244 = vpop.f32.mrb[0].mxu0
      %v1245 = vpop.f32.mrb[0].mxu0
      %v1246 = vadd.f32 0.0, %v1245
      %v1247 = vpop.f32.mrb[0].mxu0
      %1248 = vmatprep.mubr.bf16.mxu0 0
      %1249 = vmatmul.mubr.bf16.gmra.mrb[0].mxu0 %v785
      %v1250 = vpop.f32.mrb[0].mxu0
      %v1251 = vadd.f32 0.0, %v1250
      %v1252 = vpop.f32.mrb[0].mxu0
      %v1253 = vpop.f32.mrb[0].mxu0
      %v1254 = vadd.f32 0.0, %v1253
      %v1255 = vpop.f32.mrb[0].mxu0
      %1256 = vmatprep.mubr.bf16.mxu0 0
      %1257 = vmatmul.mubr.bf16.gmra.mrb[0].mxu0 %v788
      %v1258 = vpop.f32.mrb[0].mxu0
      %v1259 = vadd.f32 0.0, %v1258
      %v1260 = vpop.f32.mrb[0].mxu0
      %v1261 = vpop.f32.mrb[0].mxu0
      %v1262 = vadd.f32 0.0, %v1261
      %v1263 = vpop.f32.mrb[0].mxu0
      %1264 = vmatprep.mubr.bf16.mxu0 0
      %1265 = vmatmul.mubr.bf16.gmra.mrb[0].mxu0 %v791
      %v1266 = vpop.f32.mrb[0].mxu0
      %v1267 = vadd.f32 0.0, %v1266
      %v1268 = vpop.f32.mrb[0].mxu0
      %v1269 = vpop.f32.mrb[0].mxu0
      %v1270 = vadd.f32 0.0, %v1269
      %v1271 = vpop.f32.mrb[0].mxu0
      %1272 = vmatprep.mubr.bf16.mxu0 0
      %1273 = vmatmul.mubr.bf16.gmra.mrb[0].mxu0 %v794
      %v1274 = vpop.f32.mrb[0].mxu0
      %v1275 = vadd.f32 0.0, %v1274
      %v1276 = vpop.f32.mrb[0].mxu0
      %v1277 = vpop.f32.mrb[0].mxu0
      %v1278 = vadd.f32 0.0, %v1277
      %v1279 = vpop.f32.mrb[0].mxu0
      %1280 = vmatprep.mubr.bf16.mxu0 0
      %1281 = vmatmul.mubr.bf16.gmra.mrb[0].mxu0 %v797
      %v1282 = vpop.f32.mrb[0].mxu0
      %v1283 = vadd.f32 0.0, %v1282
      %v1284 = vpop.f32.mrb[0].mxu0
      %v1285 = vpop.f32.mrb[0].mxu0
      %v1286 = vadd.f32 0.0, %v1285
      %v1287 = vpop.f32.mrb[0].mxu0
      %1288 = vmatprep.mubr.bf16.mxu0 0
      %1289 = vmatmul.mubr.bf16.gmra.mrb[0].mxu0 %v800
      %v1290 = vpop.f32.mrb[0].mxu0
      %v1291 = vadd.f32 0.0, %v1290
      %v1292 = vpop.f32.mrb[0].mxu0
      %v1293 = vpop.f32.mrb[0].mxu0
      %v1294 = vadd.f32 0.0, %v1293
      %v1295 = vpop.f32.mrb[0].mxu0
      %1296 = vmatprep.mubr.bf16.mxu0 0
      %1297 = vmatmul.mubr.bf16.gmra.mrb[0].mxu0 %v803
      %v1298 = vpop.f32.mrb[0].mxu0
      %v1299 = vadd.f32 0.0, %v1298
      %v1300 = vpop.f32.mrb[0].mxu0
      %v1301 = vpop.f32.mrb[0].mxu0
      %v1302 = vadd.f32 0.0, %v1301
      %v1303 = vpop.f32.mrb[0].mxu0
      %1304 = vmatprep.mubr.bf16.mxu0 0
      %1305 = vmatmul.mubr.bf16.gmra.mrb[0].mxu0 %v806
      %v1306 = vpop.f32.mrb[0].mxu0
      %v1307 = vadd.f32 0.0, %v1306
      %v1308 = vpop.f32.mrb[0].mxu0
      %v1309 = vpop.f32.mrb[0].mxu0
      %v1310 = vadd.f32 0.0, %v1309
      %v1311 = vpop.f32.mrb[0].mxu0
      %1312 = vmatprep.mubr.bf16.mxu0 0
      %1313 = vmatmul.mubr.bf16.gmra.mrb[0].mxu0 %v809
      %v1314 = vpop.f32.mrb[0].mxu0
      %v1315 = vadd.f32 0.0, %v1314
      %v1316 = vpop.f32.mrb[0].mxu0
      %v1317 = vpop.f32.mrb[0].mxu0
      %v1318 = vadd.f32 0.0, %v1317
      %v1319 = vpop.f32.mrb[0].mxu0
      %1320 = vmatprep.mubr.bf16.mxu0 0
      %1321 = vmatmul.mubr.bf16.gmra.mrb[0].mxu0 %v812
      %v1322 = vpop.f32.mrb[0].mxu0
      %v1323 = vadd.f32 0.0, %v1322
      %v1324 = vpop.f32.mrb[0].mxu0
      %v1325 = vpop.f32.mrb[0].mxu0
      %v1326 = vadd.f32 0.0, %v1325
      %v1327 = vpop.f32.mrb[0].mxu0
      %1328 = vmatprep.mubr.bf16.mxu0 0
      %1329 = vmatmul.mubr.bf16.gmra.mrb[0].mxu0 %v815
      %v1330 = vpop.f32.mrb[0].mxu0
      %v1331 = vadd.f32 0.0, %v1330
      %v1332 = vpop.f32.mrb[0].mxu0
      %v1333 = vpop.f32.mrb[0].mxu0
      %v1334 = vadd.f32 0.0, %v1333
      %v1335 = vpop.f32.mrb[0].mxu0
      %1336 = vmatprep.mubr.bf16.mxu0 0
      %1337 = vmatmul.mubr.bf16.gmra.mrb[0].mxu0 %v818
      %v1338 = vpop.f32.mrb[0].mxu0
      %v1339 = vadd.f32 0.0, %v1338
      %v1340 = vpop.f32.mrb[0].mxu0
      %v1341 = vpop.f32.mrb[0].mxu0
      %v1342 = vadd.f32 0.0, %v1341
      %v1343 = vpop.f32.mrb[0].mxu0
      %1344 = vmatprep.mubr.bf16.mxu0 0
      %1345 = vmatmul.mubr.bf16.gmra.mrb[0].mxu0 %v821
      %v1346 = vpop.f32.mrb[0].mxu0
      %v1347 = vadd.f32 0.0, %v1346
      %v1348 = vpop.f32.mrb[0].mxu0
      %v1349 = vpop.f32.mrb[0].mxu0
      %v1350 = vadd.f32 0.0, %v1349
      %v1351 = vpop.f32.mrb[0].mxu0
      %1352 = vmatprep.mubr.bf16.mxu0 0
      %1353 = vmatmul.mubr.bf16.gmra.mrb[0].mxu0 %v824
      %v1354 = vpop.f32.mrb[0].mxu0
      %v1355 = vadd.f32 0.0, %v1354
      %v1356 = vpop.f32.mrb[0].mxu0
      %v1357 = vpop.f32.mrb[0].mxu0
      %v1358 = vadd.f32 0.0, %v1357
      %v1359 = vpop.f32.mrb[0].mxu0
      %1360 = vmatprep.mubr.bf16.mxu0 0
      %1361 = vmatmul.mubr.bf16.gmra.mrb[0].mxu0 %v827
      %v1362 = vpop.f32.mrb[0].mxu0
      %v1363 = vadd.f32 0.0, %v1362
      %v1364 = vpop.f32.mrb[0].mxu0
      %v1365 = vpop.f32.mrb[0].mxu0
      %v1366 = vadd.f32 0.0, %v1365
      %v1367 = vpop.f32.mrb[0].mxu0
      %1368 = vmatprep.mubr.bf16.mxu0 0
      %1369 = vmatmul.mubr.bf16.gmra.mrb[0].mxu0 %v830
      %v1370 = vpop.f32.mrb[0].mxu0
      %v1371 = vadd.f32 0.0, %v1370
      %v1372 = vpop.f32.mrb[0].mxu0
      %v1373 = vpop.f32.mrb[0].mxu0
      %v1374 = vadd.f32 0.0, %v1373
      %v1375 = vpop.f32.mrb[0].mxu0
      %1376 = vdwg.mxu0
      %v1377 = vld [vmem:[%s2] sm:$0x1]
      %v1379 = vlaneseq
      %v1380 = vshrl.u32 %v1379, 7
      %v1381 = vsub.s32 0, %v1380
      %v1382 = vrot.slane %v1377, %v1381
      %v1384 = vmul.f32 %v867, %v1382
      %v1385 = vmul.f32 %v870, %v1382
      %v1386 = vmul.f32 %v875, %v1382
      %v1387 = vmul.f32 %v878, %v1382
      %v1388 = vmul.f32 %v883, %v1382
      %v1389 = vmul.f32 %v886, %v1382
      %v1390 = vmul.f32 %v891, %v1382
      %v1391 = vmul.f32 %v894, %v1382
      %v1392 = vmul.f32 %v899, %v1382
      %v1393 = vmul.f32 %v902, %v1382
      %v1394 = vmul.f32 %v907, %v1382
      %v1395 = vmul.f32 %v910, %v1382
      %v1396 = vmul.f32 %v915, %v1382
      %v1397 = vmul.f32 %v918, %v1382
      %v1398 = vmul.f32 %v923, %v1382
      %v1399 = vmul.f32 %v926, %v1382
      %v1400 = vmul.f32 %v931, %v1382
      %v1401 = vmul.f32 %v934, %v1382
      %v1402 = vmul.f32 %v939, %v1382
      %v1403 = vmul.f32 %v942, %v1382
      %v1404 = vmul.f32 %v947, %v1382
      %v1405 = vmul.f32 %v950, %v1382
      %v1406 = vmul.f32 %v955, %v1382
      %v1407 = vmul.f32 %v958, %v1382
      %v1408 = vmul.f32 %v963, %v1382
      %v1409 = vmul.f32 %v966, %v1382
      %v1410 = vmul.f32 %v971, %v1382
      %v1411 = vmul.f32 %v974, %v1382
      %v1412 = vmul.f32 %v979, %v1382
      %v1413 = vmul.f32 %v982, %v1382
      %v1414 = vmul.f32 %v987, %v1382
      %v1415 = vmul.f32 %v990, %v1382
      %v1416 = vmul.f32 %v995, %v1382
      %v1417 = vmul.f32 %v998, %v1382
      %v1418 = vmul.f32 %v1003, %v1382
      %v1419 = vmul.f32 %v1006, %v1382
      %v1420 = vmul.f32 %v1011, %v1382
      %v1421 = vmul.f32 %v1014, %v1382
      %v1422 = vmul.f32 %v1019, %v1382
      %v1423 = vmul.f32 %v1022, %v1382
      %v1424 = vmul.f32 %v1027, %v1382
      %v1425 = vmul.f32 %v1030, %v1382
      %v1426 = vmul.f32 %v1035, %v1382
      %v1427 = vmul.f32 %v1038, %v1382
      %v1428 = vmul.f32 %v1043, %v1382
      %v1429 = vmul.f32 %v1046, %v1382
      %v1430 = vmul.f32 %v1051, %v1382
      %v1431 = vmul.f32 %v1054, %v1382
      %v1432 = vmul.f32 %v1059, %v1382
      %v1433 = vmul.f32 %v1062, %v1382
      %v1434 = vmul.f32 %v1067, %v1382
      %v1435 = vmul.f32 %v1070, %v1382
      %v1436 = vmul.f32 %v1075, %v1382
      %v1437 = vmul.f32 %v1078, %v1382
      %v1438 = vmul.f32 %v1083, %v1382
      %v1439 = vmul.f32 %v1086, %v1382
      %v1440 = vmul.f32 %v1091, %v1382
      %v1441 = vmul.f32 %v1094, %v1382
      %v1442 = vmul.f32 %v1099, %v1382
      %v1443 = vmul.f32 %v1102, %v1382
      %v1444 = vmul.f32 %v1107, %v1382
      %v1445 = vmul.f32 %v1110, %v1382
      %v1446 = vmul.f32 %v1115, %v1382
      %v1447 = vmul.f32 %v1118, %v1382
      %v1448 = vmul.f32 %v1123, %v1382
      %v1449 = vmul.f32 %v1126, %v1382
      %v1450 = vmul.f32 %v1131, %v1382
      %v1451 = vmul.f32 %v1134, %v1382
      %v1452 = vmul.f32 %v1139, %v1382
      %v1453 = vmul.f32 %v1142, %v1382
      %v1454 = vmul.f32 %v1147, %v1382
      %v1455 = vmul.f32 %v1150, %v1382
      %v1456 = vmul.f32 %v1155, %v1382
      %v1457 = vmul.f32 %v1158, %v1382
      %v1458 = vmul.f32 %v1163, %v1382
      %v1459 = vmul.f32 %v1166, %v1382
      %v1460 = vmul.f32 %v1171, %v1382
      %v1461 = vmul.f32 %v1174, %v1382
      %v1462 = vmul.f32 %v1179, %v1382
      %v1463 = vmul.f32 %v1182, %v1382
      %v1464 = vmul.f32 %v1187, %v1382
      %v1465 = vmul.f32 %v1190, %v1382
      %v1466 = vmul.f32 %v1195, %v1382
      %v1467 = vmul.f32 %v1198, %v1382
      %v1468 = vmul.f32 %v1203, %v1382
      %v1469 = vmul.f32 %v1206, %v1382
      %v1470 = vmul.f32 %v1211, %v1382
      %v1471 = vmul.f32 %v1214, %v1382
      %v1472 = vmul.f32 %v1219, %v1382
      %v1473 = vmul.f32 %v1222, %v1382
      %v1474 = vmul.f32 %v1227, %v1382
      %v1475 = vmul.f32 %v1230, %v1382
      %v1476 = vmul.f32 %v1235, %v1382
      %v1477 = vmul.f32 %v1238, %v1382
      %v1478 = vmul.f32 %v1243, %v1382
      %v1479 = vmul.f32 %v1246, %v1382
      %v1480 = vmul.f32 %v1251, %v1382
      %v1481 = vmul.f32 %v1254, %v1382
      %v1482 = vmul.f32 %v1259, %v1382
      %v1483 = vmul.f32 %v1262, %v1382
      %v1484 = vmul.f32 %v1267, %v1382
      %v1485 = vmul.f32 %v1270, %v1382
      %v1486 = vmul.f32 %v1275, %v1382
      %v1487 = vmul.f32 %v1278, %v1382
      %v1488 = vmul.f32 %v1283, %v1382
      %v1489 = vmul.f32 %v1286, %v1382
      %v1490 = vmul.f32 %v1291, %v1382
      %v1491 = vmul.f32 %v1294, %v1382
      %v1492 = vmul.f32 %v1299, %v1382
      %v1493 = vmul.f32 %v1302, %v1382
      %v1494 = vmul.f32 %v1307, %v1382
      %v1495 = vmul.f32 %v1310, %v1382
      %v1496 = vmul.f32 %v1315, %v1382
      %v1497 = vmul.f32 %v1318, %v1382
      %v1498 = vmul.f32 %v1323, %v1382
      %v1499 = vmul.f32 %v1326, %v1382
      %v1500 = vmul.f32 %v1331, %v1382
      %v1501 = vmul.f32 %v1334, %v1382
      %v1502 = vmul.f32 %v1339, %v1382
      %v1503 = vmul.f32 %v1342, %v1382
      %v1504 = vmul.f32 %v1347, %v1382
      %v1505 = vmul.f32 %v1350, %v1382
      %v1506 = vmul.f32 %v1355, %v1382
      %v1507 = vmul.f32 %v1358, %v1382
      %v1508 = vmul.f32 %v1363, %v1382
      %v1509 = vmul.f32 %v1366, %v1382
      %v1510 = vmul.f32 %v1371, %v1382
      %v1511 = vmul.f32 %v1374, %v1382
      %1512 = vst [vmem:[%s172] sm:$0xff] %v1384
      %1513 = vst [vmem:[%s172 + $0x8] sm:$0xff] %v1385
      %1514 = vst [vmem:[%s172 + $0x10] sm:$0xff] %v1386
      %1515 = vst [vmem:[%s172 + $0x18] sm:$0xff] %v1387
      %1516 = vst [vmem:[%s172 + $0x20] sm:$0xff] %v1388
      %1517 = vst [vmem:[%s172 + $0x28] sm:$0xff] %v1389
      %1518 = vst [vmem:[%s172 + $0x30] sm:$0xff] %v1390
      %1519 = vst [vmem:[%s172 + $0x38] sm:$0xff] %v1391
      %1520 = vst [vmem:[%s172 + $0x40] sm:$0xff] %v1392
      %1521 = vst [vmem:[%s172 + $0x48] sm:$0xff] %v1393
      %1522 = vst [vmem:[%s172 + $0x50] sm:$0xff] %v1394
      %1523 = vst [vmem:[%s172 + $0x58] sm:$0xff] %v1395
      %1524 = vst [vmem:[%s172 + $0x60] sm:$0xff] %v1396
      %1525 = vst [vmem:[%s172 + $0x68] sm:$0xff] %v1397
      %1526 = vst [vmem:[%s172 + $0x70] sm:$0xff] %v1398
      %1527 = vst [vmem:[%s172 + $0x78] sm:$0xff] %v1399
      %1528 = vst [vmem:[%s172 + $0x80] sm:$0xff] %v1400
      %1529 = vst [vmem:[%s172 + $0x88] sm:$0xff] %v1401
      %1530 = vst [vmem:[%s172 + $0x90] sm:$0xff] %v1402
      %1531 = vst [vmem:[%s172 + $0x98] sm:$0xff] %v1403
      %1532 = vst [vmem:[%s172 + $0xa0] sm:$0xff] %v1404
      %1533 = vst [vmem:[%s172 + $0xa8] sm:$0xff] %v1405
      %1534 = vst [vmem:[%s172 + $0xb0] sm:$0xff] %v1406
      %1535 = vst [vmem:[%s172 + $0xb8] sm:$0xff] %v1407
      %1536 = vst [vmem:[%s172 + $0xc0] sm:$0xff] %v1408
      %1537 = vst [vmem:[%s172 + $0xc8] sm:$0xff] %v1409
      %1538 = vst [vmem:[%s172 + $0xd0] sm:$0xff] %v1410
      %1539 = vst [vmem:[%s172 + $0xd8] sm:$0xff] %v1411
      %1540 = vst [vmem:[%s172 + $0xe0] sm:$0xff] %v1412
      %1541 = vst [vmem:[%s172 + $0xe8] sm:$0xff] %v1413
      %1542 = vst [vmem:[%s172 + $0xf0] sm:$0xff] %v1414
      %1543 = vst [vmem:[%s172 + $0xf8] sm:$0xff] %v1415
      %1544 = vst [vmem:[%s172 + $0x100] sm:$0xff] %v1416
      %1545 = vst [vmem:[%s172 + $0x108] sm:$0xff] %v1417
      %1546 = vst [vmem:[%s172 + $0x110] sm:$0xff] %v1418
      %1547 = vst [vmem:[%s172 + $0x118] sm:$0xff] %v1419
      %1548 = vst [vmem:[%s172 + $0x120] sm:$0xff] %v1420
      %1549 = vst [vmem:[%s172 + $0x128] sm:$0xff] %v1421
      %1550 = vst [vmem:[%s172 + $0x130] sm:$0xff] %v1422
      %1551 = vst [vmem:[%s172 + $0x138] sm:$0xff] %v1423
      %1552 = vst [vmem:[%s172 + $0x140] sm:$0xff] %v1424
      %1553 = vst [vmem:[%s172 + $0x148] sm:$0xff] %v1425
      %1554 = vst [vmem:[%s172 + $0x150] sm:$0xff] %v1426
      %1555 = vst [vmem:[%s172 + $0x158] sm:$0xff] %v1427
      %1556 = vst [vmem:[%s172 + $0x160] sm:$0xff] %v1428
      %1557 = vst [vmem:[%s172 + $0x168] sm:$0xff] %v1429
      %1558 = vst [vmem:[%s172 + $0x170] sm:$0xff] %v1430
      %1559 = vst [vmem:[%s172 + $0x178] sm:$0xff] %v1431
      %1560 = vst [vmem:[%s172 + $0x180] sm:$0xff] %v1432
      %1561 = vst [vmem:[%s172 + $0x188] sm:$0xff] %v1433
      %1562 = vst [vmem:[%s172 + $0x190] sm:$0xff] %v1434
      %1563 = vst [vmem:[%s172 + $0x198] sm:$0xff] %v1435
      %1564 = vst [vmem:[%s172 + $0x1a0] sm:$0xff] %v1436
      %1565 = vst [vmem:[%s172 + $0x1a8] sm:$0xff] %v1437
      %1566 = vst [vmem:[%s172 + $0x1b0] sm:$0xff] %v1438
      %1567 = vst [vmem:[%s172 + $0x1b8] sm:$0xff] %v1439
      %1568 = vst [vmem:[%s172 + $0x1c0] sm:$0xff] %v1440
      %1569 = vst [vmem:[%s172 + $0x1c8] sm:$0xff] %v1441
      %1570 = vst [vmem:[%s172 + $0x1d0] sm:$0xff] %v1442
      %1571 = vst [vmem:[%s172 + $0x1d8] sm:$0xff] %v1443
      %1572 = vst [vmem:[%s172 + $0x1e0] sm:$0xff] %v1444
      %1573 = vst [vmem:[%s172 + $0x1e8] sm:$0xff] %v1445
      %1574 = vst [vmem:[%s172 + $0x1f0] sm:$0xff] %v1446
      %1575 = vst [vmem:[%s172 + $0x1f8] sm:$0xff] %v1447
      %1576 = vst [vmem:[%s172 + $0x200] sm:$0xff] %v1448
      %1577 = vst [vmem:[%s172 + $0x208] sm:$0xff] %v1449
      %1578 = vst [vmem:[%s172 + $0x210] sm:$0xff] %v1450
      %1579 = vst [vmem:[%s172 + $0x218] sm:$0xff] %v1451
      %1580 = vst [vmem:[%s172 + $0x220] sm:$0xff] %v1452
      %1581 = vst [vmem:[%s172 + $0x228] sm:$0xff] %v1453
      %1582 = vst [vmem:[%s172 + $0x230] sm:$0xff] %v1454
      %1583 = vst [vmem:[%s172 + $0x238] sm:$0xff] %v1455
      %1584 = vst [vmem:[%s172 + $0x240] sm:$0xff] %v1456
      %1585 = vst [vmem:[%s172 + $0x248] sm:$0xff] %v1457
      %1586 = vst [vmem:[%s172 + $0x250] sm:$0xff] %v1458
      %1587 = vst [vmem:[%s172 + $0x258] sm:$0xff] %v1459
      %1588 = vst [vmem:[%s172 + $0x260] sm:$0xff] %v1460
      %1589 = vst [vmem:[%s172 + $0x268] sm:$0xff] %v1461
      %1590 = vst [vmem:[%s172 + $0x270] sm:$0xff] %v1462
      %1591 = vst [vmem:[%s172 + $0x278] sm:$0xff] %v1463
      %1592 = vst [vmem:[%s172 + $0x280] sm:$0xff] %v1464
      %1593 = vst [vmem:[%s172 + $0x288] sm:$0xff] %v1465
      %1594 = vst [vmem:[%s172 + $0x290] sm:$0xff] %v1466
      %1595 = vst [vmem:[%s172 + $0x298] sm:$0xff] %v1467
      %1596 = vst [vmem:[%s172 + $0x2a0] sm:$0xff] %v1468
      %1597 = vst [vmem:[%s172 + $0x2a8] sm:$0xff] %v1469
      %1598 = vst [vmem:[%s172 + $0x2b0] sm:$0xff] %v1470
      %1599 = vst [vmem:[%s172 + $0x2b8] sm:$0xff] %v1471
      %1600 = vst [vmem:[%s172 + $0x2c0] sm:$0xff] %v1472
      %1601 = vst [vmem:[%s172 + $0x2c8] sm:$0xff] %v1473
      %1602 = vst [vmem:[%s172 + $0x2d0] sm:$0xff] %v1474
      %1603 = vst [vmem:[%s172 + $0x2d8] sm:$0xff] %v1475
      %1604 = vst [vmem:[%s172 + $0x2e0] sm:$0xff] %v1476
      %1605 = vst [vmem:[%s172 + $0x2e8] sm:$0xff] %v1477
      %1606 = vst [vmem:[%s172 + $0x2f0] sm:$0xff] %v1478
      %1607 = vst [vmem:[%s172 + $0x2f8] sm:$0xff] %v1479
      %1608 = vst [vmem:[%s172 + $0x300] sm:$0xff] %v1480
      %1609 = vst [vmem:[%s172 + $0x308] sm:$0xff] %v1481
      %1610 = vst [vmem:[%s172 + $0x310] sm:$0xff] %v1482
      %1611 = vst [vmem:[%s172 + $0x318] sm:$0xff] %v1483
      %1612 = vst [vmem:[%s172 + $0x320] sm:$0xff] %v1484
      %1613 = vst [vmem:[%s172 + $0x328] sm:$0xff] %v1485
      %1614 = vst [vmem:[%s172 + $0x330] sm:$0xff] %v1486
      %1615 = vst [vmem:[%s172 + $0x338] sm:$0xff] %v1487
      %1616 = vst [vmem:[%s172 + $0x340] sm:$0xff] %v1488
      %1617 = vst [vmem:[%s172 + $0x348] sm:$0xff] %v1489
      %1618 = vst [vmem:[%s172 + $0x350] sm:$0xff] %v1490
      %1619 = vst [vmem:[%s172 + $0x358] sm:$0xff] %v1491
      %1620 = vst [vmem:[%s172 + $0x360] sm:$0xff] %v1492
      %1621 = vst [vmem:[%s172 + $0x368] sm:$0xff] %v1493
      %1622 = vst [vmem:[%s172 + $0x370] sm:$0xff] %v1494
      %1623 = vst [vmem:[%s172 + $0x378] sm:$0xff] %v1495
      %1624 = vst [vmem:[%s172 + $0x380] sm:$0xff] %v1496
      %1625 = vst [vmem:[%s172 + $0x388] sm:$0xff] %v1497
      %1626 = vst [vmem:[%s172 + $0x390] sm:$0xff] %v1498
      %1627 = vst [vmem:[%s172 + $0x398] sm:$0xff] %v1499
      %1628 = vst [vmem:[%s172 + $0x3a0] sm:$0xff] %v1500
      %1629 = vst [vmem:[%s172 + $0x3a8] sm:$0xff] %v1501
      %1630 = vst [vmem:[%s172 + $0x3b0] sm:$0xff] %v1502
      %1631 = vst [vmem:[%s172 + $0x3b8] sm:$0xff] %v1503
      %1632 = vst [vmem:[%s172 + $0x3c0] sm:$0xff] %v1504
      %1633 = vst [vmem:[%s172 + $0x3c8] sm:$0xff] %v1505
      %1634 = vst [vmem:[%s172 + $0x3d0] sm:$0xff] %v1506
      %1635 = vst [vmem:[%s172 + $0x3d8] sm:$0xff] %v1507
      %1636 = vst [vmem:[%s172 + $0x3e0] sm:$0xff] %v1508
      %1637 = vst [vmem:[%s172 + $0x3e8] sm:$0xff] %v1509
      %1638 = vst [vmem:[%s172 + $0x3f0] sm:$0xff] %v1510
      %1639 = vst [vmem:[%s172 + $0x3f8] sm:$0xff] %v1511
      %s1640 = smul.u32 128, %s14
      %p1641 = scmp.lt.s32.totalorder %s1640, 255
      %s1642 = scalar_select %p1641, %s1640, 255
      %s1643 = smul.addr %s1642, 8
      %s1644 = scalar_lea.vmem %s3, %s1643
      // Predicated region
      $region33: #{conv_decoder_forward.9} parent=31 // pred_check
        %p1645 = pneg %p100
      $region34: #{conv_decoder_forward.9} parent=31 // pred_check_branch
        %1647 = sbr.rel (%p1645) target = $region36
      $region35: #{conv_decoder_forward.9} parent=31 // pred_region
        %s1648 = smul.u32 128, %s14
      $region36: #{conv_decoder_forward.9} parent=31 // pred_fallthru
        _
    $region32: #{conv_decoder_forward.9} parent=5 // pred_fallthru
      _
    %p1649 = scmp.le.s32.totalorder 2, %s9
    // Predicated region
    $region37: #{conv_decoder_forward.9} parent=5 // pred_check
      %p1650 = pneg %p1649
    $region38: #{conv_decoder_forward.9} parent=5 // pred_check_branch
      %1652 = sbr.rel (%p1650) target = $region40
    $region39: #{conv_decoder_forward.9} parent=5 // pred_region
      %s1653 = ssub.s32 %s9, 2
      // Predicated region
      $region41: #{conv_decoder_forward.9} parent=39 // pred_check
        %p1654 = pneg %p106
      $region42: #{conv_decoder_forward.9} parent=39 // pred_check_branch
        %1656 = sbr.rel (%p1654) target = $region44
      $region43: #{conv_decoder_forward.9} parent=39 // pred_region
        %s1657 = smul.u32 128, %s15
        %p1658 = scmp.lt.s32.totalorder %s1657, 255
        %s1659 = scalar_select %p1658, %s1657, 255
        %s1660 = smul.addr %s1659, 8
        %s1661 = scalar_lea.vmem %s3, %s1660
      $region44: #{conv_decoder_forward.9} parent=39 // pred_fallthru
        _
    $region40: #{conv_decoder_forward.9} parent=5 // pred_fallthru
      _
  $region6: #{conv_decoder_forward.9} parent=0 // loop_footer
    %s13 = sadd.s32 1, %s9
  $region7: #{conv_decoder_forward.9} parent=0 // loop_footer_branch
    %8 = sbr.rel target = $region3
  $region8: #{conv_decoder_forward.9} parent=0 // loop_exit
    _

</llo_original>
